<compile_context>
chip_gen: v6e
topology: v6e:2x2x1
jax: 0.10.0
libtpu: 0.0.40
codegen_flags: <defaults>
</compile_context>

<pallas_src>
import math

import jax
import jax.numpy as jnp
from jax import lax
from jax.experimental import pallas as pl
from jax.experimental.pallas import tpu as pltpu

# --- toy config (TinyStories-1M shape family, shrunk) -----------------------
VOCAB = 256      # vocab size
MAXPOS = 64      # max positions
D = 32           # hidden size
H = 4            # attention heads
DH = D // H      # head dim
I = 4 * D        # MLP intermediate
NLAYER = 2       # transformer blocks
EPS = 1e-5       # layer_norm_epsilon
NEG = -1e30      # additive mask value

B, T = 2, 8      # example batch / sequence length (T must be a multiple of 8)


# --- in-kernel helpers -------------------------------------------------------
def _layernorm(x, g, b):
    mu = jnp.mean(x, axis=-1, keepdims=True)
    xc = x - mu
    var = jnp.mean(xc * xc, axis=-1, keepdims=True)
    return xc * lax.rsqrt(var + EPS) * g + b


def _gelu_new(x):
    # GPT-Neo uses the tanh ("gelu_new") approximation.
    c = math.sqrt(2.0 / math.pi)
    return 0.5 * x * (1.0 + jnp.tanh(c * (x + 0.044715 * x * x * x)))


# --- single fused Pallas kernel: token ids in -> per-row argmax ids out -------
def fused_gpt_kernel(ids_ref,                                   # SMEM [B, T] int32 (prefetch)
                     wte_ref, wpe_ref, wqv_ref, wkt_ref, wo_ref,
                     wfc_ref, wpj_ref, rows_ref, bfc_ref, lnf_ref,
                     out_ref):                                  # VMEM [1, T, 128] int32
    t_len = ids_ref.shape[1]
    bi = pl.program_id(0)                                       # sequence index

    # ---- token embedding: one-hot gather on the MXU (in-kernel) --------------
    pos = lax.broadcasted_iota(jnp.int32, (t_len, 1), 0)
    idcol = jnp.zeros((t_len, 1), jnp.int32)
    for t in range(t_len):                                       # T scalar SMEM reads
        idcol = jnp.where(pos == t, ids_ref[bi, t], idcol)
    vocab_iota = lax.broadcasted_iota(jnp.int32, (t_len, VOCAB), 1)
    onehot = (vocab_iota == idcol).astype(jnp.bfloat16)          # [T, V]
    x = jnp.dot(onehot, wte_ref[...],
                preferred_element_type=jnp.float32)              # [T, D] f32
    x = x + wpe_ref[0:t_len, :]                                  # position embedding

    # ---- causal mask built in-kernel -----------------------------------------
    ri = lax.broadcasted_iota(jnp.int32, (t_len, t_len), 0)
    ci = lax.broadcasted_iota(jnp.int32, (t_len, t_len), 1)
    causal = jnp.where(ri >= ci, 0.0, NEG).astype(jnp.float32)   # [T, T]

    for l in range(NLAYER):                                      # static unroll
        rows = rows_ref[l]                                       # [6, D] f32
        ln1g, ln1b = rows[0:1], rows[1:2]
        ln2g, ln2b = rows[2:3], rows[3:4]
        bo, bpj = rows[4:5], rows[5:6]

        # ---- attention (head-batched, MXU-native layouts) --------------------
        h = _layernorm(x, ln1g, ln1b)                            # [T, D] f32
        hb = h.astype(jnp.bfloat16)                              # [T, D]
        htb = h.T.astype(jnp.bfloat16)                           # [D, T]

        # q and v for all heads in one batched matmul: [2H, T, DH]
        qv = jnp.einsum('btd,bdk->btk',
                        jnp.broadcast_to(hb, (2 * H, t_len, D)), wqv_ref[l],
                        preferred_element_type=jnp.float32)
        q3, v3 = qv[0:H], qv[H:2 * H]                            # [H, T, DH]
        # K^T produced directly (no in-kernel K transpose): [H, DH, T]
        kt3 = jnp.einsum('hed,hdt->het',
                         wkt_ref[l], jnp.broadcast_to(htb, (H, D, t_len)),
                         preferred_element_type=jnp.float32)

        # GPT-Neo attention: NO 1/sqrt(head_dim) scaling.
        s = jnp.einsum('htd,hdk->htk',
                       q3.astype(jnp.bfloat16), kt3.astype(jnp.bfloat16),
                       preferred_element_type=jnp.float32)       # [H, T, T]
        s = s + causal[None]
        m = jnp.max(s, axis=-1, keepdims=True)
        e = jnp.exp(s - m)
        p = e * pl.reciprocal(jnp.sum(e, axis=-1, keepdims=True), approx=True)

        ctx = jnp.einsum('hqk,hkd->hqd',
                         p.astype(jnp.bfloat16), v3.astype(jnp.bfloat16),
                         preferred_element_type=jnp.float32)     # [H, T, DH]
        # out_proj folded per head, summed over heads (== concat @ wo)
        attn = jnp.sum(
            jnp.einsum('htd,hdk->htk', ctx.astype(jnp.bfloat16), wo_ref[l],
                       preferred_element_type=jnp.float32), axis=0)   # [T, D]
        x = x + attn + bo                                        # residual 1

        # ---- MLP --------------------------------------------------------------
        h2 = _layernorm(x, ln2g, ln2b)
        f = _gelu_new(jnp.dot(h2.astype(jnp.bfloat16), wfc_ref[l],
                              preferred_element_type=jnp.float32) + bfc_ref[l])
        x = x + jnp.dot(f.astype(jnp.bfloat16), wpj_ref[l],
                        preferred_element_type=jnp.float32) + bpj    # residual 2

    # ---- final LN + tied lm_head + argmax (all rows, lane-dense store) --------
    lnf = lnf_ref[...]                                           # [2, D]
    hf = _layernorm(x, lnf[0:1], lnf[1:2])
    logits = jnp.einsum('td,vd->tv', hf.astype(jnp.bfloat16), wte_ref[...],
                        preferred_element_type=jnp.float32)      # [T, V]
    maxv = jnp.max(logits, axis=-1, keepdims=True)
    vid = lax.broadcasted_iota(jnp.int32, logits.shape, 1)
    # first index attaining the max (torch.argmax-compatible for unique max)
    idx = jnp.min(jnp.where(logits == maxv, vid, VOCAB), axis=-1, keepdims=True)
    out_ref[...] = jnp.broadcast_to(idx, (t_len, 128)).reshape(1, t_len, 128)


# --- parameter init (deterministic, synthetic, packed per-head slabs) ---------
def init_params(key):
    std = 0.02
    keys = jax.random.split(key, 2 + NLAYER)
    wte = jax.random.normal(keys[0], (VOCAB, D), jnp.float32) * std
    wpe = jax.random.normal(keys[1], (MAXPOS, D), jnp.float32) * std
    ones_d = jnp.ones((D,), jnp.float32)
    zeros_d = jnp.zeros((D,), jnp.float32)

    wqv, wkt, wo3, wfc, wpj, rows, bfc = [], [], [], [], [], [], []
    for l in range(NLAYER):
        lk = jax.random.split(keys[2 + l], 6)
        wq = jax.random.normal(lk[0], (D, D), jnp.float32) * std
        wk = jax.random.normal(lk[1], (D, D), jnp.float32) * std
        wv = jax.random.normal(lk[2], (D, D), jnp.float32) * std
        wo = jax.random.normal(lk[3], (D, D), jnp.float32) * std
        # per-head, MXU-native orientations (packed once at init, free):
        wq_h = wq.reshape(D, H, DH).transpose(1, 0, 2)           # [H, D, DH]
        wv_h = wv.reshape(D, H, DH).transpose(1, 0, 2)           # [H, D, DH]
        wk_ht = wk.reshape(D, H, DH).transpose(1, 2, 0)          # [H, DH, D] == wk_h^T
        wo_h = wo.reshape(H, DH, D)                              # [H, DH, D]
        wqv.append(jnp.concatenate([wq_h, wv_h], axis=0))        # [2H, D, DH]
        wkt.append(wk_ht)
        wo3.append(wo_h)
        wfc.append(jax.random.normal(lk[4], (D, I), jnp.float32) * std)
        wpj.append(jax.random.normal(lk[5], (I, D), jnp.float32) * std)
        # packed row slab: [ln1_g, ln1_b, ln2_g, ln2_b, bo, bpj]
        rows.append(jnp.stack([ones_d, zeros_d, ones_d, zeros_d, zeros_d, zeros_d]))
        bfc.append(jnp.zeros((1, I), jnp.float32))

    return {
        "wte": wte.astype(jnp.bfloat16),          # [V, D] bf16 (embed + tied lm_head)
        "wpe": wpe,                               # [MAXPOS, D] f32
        "wqv": jnp.stack(wqv).astype(jnp.bfloat16),   # [L, 2H, D, DH]
        "wkT": jnp.stack(wkt).astype(jnp.bfloat16),   # [L, H, DH, D]
        "wo":  jnp.stack(wo3).astype(jnp.bfloat16),   # [L, H, DH, D]
        "wfc": jnp.stack(wfc).astype(jnp.bfloat16),   # [L, D, I]
        "wpj": jnp.stack(wpj).astype(jnp.bfloat16),   # [L, I, D]
        "rows": jnp.stack(rows),                  # [L, 6, D] f32
        "bfc": jnp.stack(bfc),                    # [L, 1, I] f32
        "lnf": jnp.stack([ones_d, zeros_d]),      # [2, D] f32 final LN gamma/beta
    }


# --- wrapper: GPTWrapper.forward ----------------------------------------------
@jax.jit
def gpt_wrapper_forward(input_ids, params):
    """input_ids: [B, T] int32 -> [B] int32 (argmax token id at last position)."""
    b, t = input_ids.shape
    assert t % 8 == 0, "toy kernel assumes T is a multiple of 8 (sublane tile)"
    vmem = pl.BlockSpec(memory_space=pltpu.MemorySpace.VMEM)

    out = pl.pallas_call(
        fused_gpt_kernel,
        out_shape=jax.ShapeDtypeStruct((b, t, 128), jnp.int32),
        grid_spec=pltpu.PrefetchScalarGridSpec(
            num_scalar_prefetch=1,                # input_ids -> SMEM
            grid=(b,),                            # one grid point per sequence
            in_specs=[vmem] * 10,                 # whole model (~few 100 KB) in VMEM
            out_specs=pl.BlockSpec((1, t, 128), lambda i, ids_ref: (i, 0, 0)),
        ),
        compiler_params=pltpu.CompilerParams(
            dimension_semantics=("parallel",)),   # 2nd TensorCore on v7x
    )(input_ids.astype(jnp.int32),
      params["wte"], params["wpe"], params["wqv"], params["wkT"], params["wo"],
      params["wfc"], params["wpj"], params["rows"], params["bfc"], params["lnf"])
    return out[:, -1, 0]


if __name__ == "__main__":
    key = jax.random.PRNGKey(0)
    pkey, dkey = jax.random.split(key)
    params = init_params(pkey)
    input_ids = jax.random.randint(dkey, (B, T), 0, VOCAB, dtype=jnp.int32)

    out = gpt_wrapper_forward(input_ids, params)
    out = jax.block_until_ready(out)
    assert out.shape == (B,) and out.dtype == jnp.int32
    print("KERNEL_OK")
</pallas_src>

<mosaic_0001>
module attributes {stable_mosaic.version = 11 : i64} {
  func.func @fused_gpt_kernel(%arg0: i32, %arg1: memref<2x8xi32, #tpu.memory_space<smem>>, %arg2: memref<256x32xbf16, #tpu.memory_space<vmem>>, %arg3: memref<64x32xf32, #tpu.memory_space<vmem>>, %arg4: memref<2x8x32x8xbf16, #tpu.memory_space<vmem>>, %arg5: memref<2x4x8x32xbf16, #tpu.memory_space<vmem>>, %arg6: memref<2x4x8x32xbf16, #tpu.memory_space<vmem>>, %arg7: memref<2x32x128xbf16, #tpu.memory_space<vmem>>, %arg8: memref<2x128x32xbf16, #tpu.memory_space<vmem>>, %arg9: memref<2x6x32xf32, #tpu.memory_space<vmem>>, %arg10: memref<2x1x128xf32, #tpu.memory_space<vmem>>, %arg11: memref<2x32xf32, #tpu.memory_space<vmem>>, %arg12: memref<1x8x128xi32, #tpu.memory_space<vmem>>) attributes {dimension_semantics = [#tpu.dimension_semantics<parallel>], iteration_bounds = array<i64: 2>, scalar_prefetch = 1 : i64, scratch_operands = 0 : i64, tpu.core_type = #tpu.core_type<tc>, window_params = [{pipeline_mode = #tpu.pipeline_mode<synchronous>, transform_indices = @transform_0, window_bounds = array<i64: 256, 32>}, {pipeline_mode = #tpu.pipeline_mode<synchronous>, transform_indices = @transform_1, window_bounds = array<i64: 64, 32>}, {pipeline_mode = #tpu.pipeline_mode<synchronous>, transform_indices = @transform_2, window_bounds = array<i64: 2, 8, 32, 8>}, {pipeline_mode = #tpu.pipeline_mode<synchronous>, transform_indices = @transform_3, window_bounds = array<i64: 2, 4, 8, 32>}, {pipeline_mode = #tpu.pipeline_mode<synchronous>, transform_indices = @transform_4, window_bounds = array<i64: 2, 4, 8, 32>}, {pipeline_mode = #tpu.pipeline_mode<synchronous>, transform_indices = @transform_5, window_bounds = array<i64: 2, 32, 128>}, {pipeline_mode = #tpu.pipeline_mode<synchronous>, transform_indices = @transform_6, window_bounds = array<i64: 2, 128, 32>}, {pipeline_mode = #tpu.pipeline_mode<synchronous>, transform_indices = @transform_7, window_bounds = array<i64: 2, 6, 32>}, {pipeline_mode = #tpu.pipeline_mode<synchronous>, transform_indices = @transform_8, window_bounds = array<i64: 2, 1, 128>}, {pipeline_mode = #tpu.pipeline_mode<synchronous>, transform_indices = @transform_9, window_bounds = array<i64: 2, 32>}, {transform_indices = @transform_10, window_bounds = array<i64: 1, 8, 128>}]} {
    %0 = tpu.iota {dimensions = array<i32: 0>} : vector<8x1xi32>
    %c0_i32 = arith.constant 0 : i32
    %1 = vector.broadcast %c0_i32 : i32 to vector<8x1xi32>
    %c0_i32_0 = arith.constant 0 : i32
    %2 = vector.broadcast %c0_i32_0 : i32 to vector<8x1xi32>
    %3 = arith.cmpi eq, %0, %2 : vector<8x1xi32>
    %4 = arith.index_cast %arg0 : i32 to index
    %c0 = arith.constant 0 : index
    %5 = memref.load %arg1[%4, %c0] : memref<2x8xi32, #tpu.memory_space<smem>>
    %6 = vector.broadcast %5 : i32 to vector<8x1xi32>
    %7 = arith.select %3, %6, %1 : vector<8x1xi1>, vector<8x1xi32>
    %c1_i32 = arith.constant 1 : i32
    %8 = vector.broadcast %c1_i32 : i32 to vector<8x1xi32>
    %9 = arith.cmpi eq, %0, %8 : vector<8x1xi32>
    %10 = arith.index_cast %arg0 : i32 to index
    %c1 = arith.constant 1 : index
    %11 = memref.load %arg1[%10, %c1] : memref<2x8xi32, #tpu.memory_space<smem>>
    %12 = vector.broadcast %11 : i32 to vector<8x1xi32>
    %13 = arith.select %9, %12, %7 : vector<8x1xi1>, vector<8x1xi32>
    %c2_i32 = arith.constant 2 : i32
    %14 = vector.broadcast %c2_i32 : i32 to vector<8x1xi32>
    %15 = arith.cmpi eq, %0, %14 : vector<8x1xi32>
    %16 = arith.index_cast %arg0 : i32 to index
    %c2 = arith.constant 2 : index
    %17 = memref.load %arg1[%16, %c2] : memref<2x8xi32, #tpu.memory_space<smem>>
    %18 = vector.broadcast %17 : i32 to vector<8x1xi32>
    %19 = arith.select %15, %18, %13 : vector<8x1xi1>, vector<8x1xi32>
    %c3_i32 = arith.constant 3 : i32
    %20 = vector.broadcast %c3_i32 : i32 to vector<8x1xi32>
    %21 = arith.cmpi eq, %0, %20 : vector<8x1xi32>
    %22 = arith.index_cast %arg0 : i32 to index
    %c3 = arith.constant 3 : index
    %23 = memref.load %arg1[%22, %c3] : memref<2x8xi32, #tpu.memory_space<smem>>
    %24 = vector.broadcast %23 : i32 to vector<8x1xi32>
    %25 = arith.select %21, %24, %19 : vector<8x1xi1>, vector<8x1xi32>
    %c4_i32 = arith.constant 4 : i32
    %26 = vector.broadcast %c4_i32 : i32 to vector<8x1xi32>
    %27 = arith.cmpi eq, %0, %26 : vector<8x1xi32>
    %28 = arith.index_cast %arg0 : i32 to index
    %c4 = arith.constant 4 : index
    %29 = memref.load %arg1[%28, %c4] : memref<2x8xi32, #tpu.memory_space<smem>>
    %30 = vector.broadcast %29 : i32 to vector<8x1xi32>
    %31 = arith.select %27, %30, %25 : vector<8x1xi1>, vector<8x1xi32>
    %c5_i32 = arith.constant 5 : i32
    %32 = vector.broadcast %c5_i32 : i32 to vector<8x1xi32>
    %33 = arith.cmpi eq, %0, %32 : vector<8x1xi32>
    %34 = arith.index_cast %arg0 : i32 to index
    %c5 = arith.constant 5 : index
    %35 = memref.load %arg1[%34, %c5] : memref<2x8xi32, #tpu.memory_space<smem>>
    %36 = vector.broadcast %35 : i32 to vector<8x1xi32>
    %37 = arith.select %33, %36, %31 : vector<8x1xi1>, vector<8x1xi32>
    %c6_i32 = arith.constant 6 : i32
    %38 = vector.broadcast %c6_i32 : i32 to vector<8x1xi32>
    %39 = arith.cmpi eq, %0, %38 : vector<8x1xi32>
    %40 = arith.index_cast %arg0 : i32 to index
    %c6 = arith.constant 6 : index
    %41 = memref.load %arg1[%40, %c6] : memref<2x8xi32, #tpu.memory_space<smem>>
    %42 = vector.broadcast %41 : i32 to vector<8x1xi32>
    %43 = arith.select %39, %42, %37 : vector<8x1xi1>, vector<8x1xi32>
    %c7_i32 = arith.constant 7 : i32
    %44 = vector.broadcast %c7_i32 : i32 to vector<8x1xi32>
    %45 = arith.cmpi eq, %0, %44 : vector<8x1xi32>
    %46 = arith.index_cast %arg0 : i32 to index
    %c7 = arith.constant 7 : index
    %47 = memref.load %arg1[%46, %c7] : memref<2x8xi32, #tpu.memory_space<smem>>
    %48 = vector.broadcast %47 : i32 to vector<8x1xi32>
    %49 = arith.select %45, %48, %43 : vector<8x1xi1>, vector<8x1xi32>
    %50 = tpu.iota {dimensions = array<i32: 1>} : vector<8x256xi32>
    %51 = vector.broadcast %49 : vector<8x1xi32> to vector<8x256xi32>
    %52 = arith.cmpi eq, %50, %51 : vector<8x256xi32>
    %53 = arith.extui %52 : vector<8x256xi1> to vector<8x256xi32>
    %54 = arith.sitofp %53 : vector<8x256xi32> to vector<8x256xf32>
    %55 = arith.truncf %54 : vector<8x256xf32> to vector<8x256xbf16>
    %c0_1 = arith.constant 0 : index
    %c0_2 = arith.constant 0 : index
    %56 = vector.load %arg2[%c0_1, %c0_2] : memref<256x32xbf16, #tpu.memory_space<vmem>>, vector<256x32xbf16>
    %cst = arith.constant dense<0.000000e+00> : vector<8x32xf32>
    %57 = tpu.matmul %55, %56, %cst {dimension_numbers = #tpu.dot_dimension_numbers<[1], [0], [0], [1], [0, 0, 1, 1], [], []>} : vector<8x256xbf16>, vector<256x32xbf16>, vector<8x32xf32> -> vector<8x32xf32>
    %c0_3 = arith.constant 0 : index
    %c0_4 = arith.constant 0 : index
    %58 = vector.load %arg3[%c0_3, %c0_4] : memref<64x32xf32, #tpu.memory_space<vmem>>, vector<8x32xf32>
    %59 = arith.addf %57, %58 : vector<8x32xf32>
    %60 = tpu.iota {dimensions = array<i32: 0>} : vector<8x8xi32>
    %61 = tpu.iota {dimensions = array<i32: 1>} : vector<8x8xi32>
    %62 = arith.cmpi sge, %60, %61 : vector<8x8xi32>
    %cst_5 = arith.constant 0.000000e+00 : f32
    %cst_6 = arith.constant -1.000000e+30 : f32
    %63 = vector.broadcast %cst_5 : f32 to vector<8x8xf32>
    %64 = vector.broadcast %cst_6 : f32 to vector<8x8xf32>
    %65 = arith.select %62, %63, %64 : vector<8x8xi1>, vector<8x8xf32>
    %c0_7 = arith.constant 0 : index
    %c0_8 = arith.constant 0 : index
    %c0_9 = arith.constant 0 : index
    %66 = vector.load %arg9[%c0_7, %c0_8, %c0_9] : memref<2x6x32xf32, #tpu.memory_space<vmem>>, vector<1x6x32xf32>
    %67 = vector.shape_cast %66 : vector<1x6x32xf32> to vector<6x32xf32>
    %68 = vector.extract_strided_slice %67 {offsets = [0, 0], sizes = [1, 32], strides = [1, 1]} : vector<6x32xf32> to vector<1x32xf32>
    %69 = vector.extract_strided_slice %67 {offsets = [1, 0], sizes = [1, 32], strides = [1, 1]} : vector<6x32xf32> to vector<1x32xf32>
    %70 = vector.extract_strided_slice %67 {offsets = [2, 0], sizes = [1, 32], strides = [1, 1]} : vector<6x32xf32> to vector<1x32xf32>
    %71 = vector.extract_strided_slice %67 {offsets = [3, 0], sizes = [1, 32], strides = [1, 1]} : vector<6x32xf32> to vector<1x32xf32>
    %72 = vector.extract_strided_slice %67 {offsets = [4, 0], sizes = [1, 32], strides = [1, 1]} : vector<6x32xf32> to vector<1x32xf32>
    %73 = vector.extract_strided_slice %67 {offsets = [5, 0], sizes = [1, 32], strides = [1, 1]} : vector<6x32xf32> to vector<1x32xf32>
    %cst_10 = arith.constant dense<0.000000e+00> : vector<8xf32>
    %74 = vector.multi_reduction <add>, %59, %cst_10 [1] : vector<8x32xf32> to vector<8xf32>
    %75 = vector.shape_cast %74 : vector<8xf32> to vector<8x1xf32>
    %cst_11 = arith.constant 3.200000e+01 : f32
    %76 = vector.broadcast %cst_11 : f32 to vector<8x1xf32>
    %77 = arith.divf %75, %76 : vector<8x1xf32>
    %78 = vector.broadcast %77 : vector<8x1xf32> to vector<8x32xf32>
    %79 = arith.subf %59, %78 : vector<8x32xf32>
    %80 = arith.mulf %79, %79 : vector<8x32xf32>
    %cst_12 = arith.constant dense<0.000000e+00> : vector<8xf32>
    %81 = vector.multi_reduction <add>, %80, %cst_12 [1] : vector<8x32xf32> to vector<8xf32>
    %82 = vector.shape_cast %81 : vector<8xf32> to vector<8x1xf32>
    %cst_13 = arith.constant 3.200000e+01 : f32
    %83 = vector.broadcast %cst_13 : f32 to vector<8x1xf32>
    %84 = arith.divf %82, %83 : vector<8x1xf32>
    %cst_14 = arith.constant 9.99999974E-6 : f32
    %85 = vector.broadcast %cst_14 : f32 to vector<8x1xf32>
    %86 = arith.addf %84, %85 : vector<8x1xf32>
    %87 = math.rsqrt %86 : vector<8x1xf32>
    %88 = vector.broadcast %87 : vector<8x1xf32> to vector<8x32xf32>
    %89 = arith.mulf %79, %88 : vector<8x32xf32>
    %90 = vector.broadcast %68 : vector<1x32xf32> to vector<8x32xf32>
    %91 = arith.mulf %89, %90 : vector<8x32xf32>
    %92 = vector.broadcast %69 : vector<1x32xf32> to vector<8x32xf32>
    %93 = arith.addf %91, %92 : vector<8x32xf32>
    %94 = arith.truncf %93 : vector<8x32xf32> to vector<8x32xbf16>
    %95 = tpu.transpose %93, [1, 0] : vector<8x32xf32> -> vector<32x8xf32>
    %96 = arith.truncf %95 : vector<32x8xf32> to vector<32x8xbf16>
    %97 = vector.shape_cast %94 : vector<8x32xbf16> to vector<1x8x32xbf16>
    %98 = vector.broadcast %97 : vector<1x8x32xbf16> to vector<8x8x32xbf16>
    %c0_15 = arith.constant 0 : index
    %c0_16 = arith.constant 0 : index
    %c0_17 = arith.constant 0 : index
    %c0_18 = arith.constant 0 : index
    %99 = vector.load %arg4[%c0_15, %c0_16, %c0_17, %c0_18] : memref<2x8x32x8xbf16, #tpu.memory_space<vmem>>, vector<1x8x32x8xbf16>
    %100 = vector.shape_cast %99 : vector<1x8x32x8xbf16> to vector<8x32x8xbf16>
    "tpu.trace_start"() <{level = 10 : i32, message = "btd,bdk->btk"}> : () -> ()
    %cst_19 = arith.constant dense<0.000000e+00> : vector<8x8x8xf32>
    %101 = tpu.matmul %98, %100, %cst_19 {dimension_numbers = #tpu.dot_dimension_numbers<[2], [1], [1], [2], [0, 0, 0, 1, 1, 2], [0], [0]>} : vector<8x8x32xbf16>, vector<8x32x8xbf16>, vector<8x8x8xf32> -> vector<8x8x8xf32>
    "tpu.trace_stop"() : () -> ()
    %102 = vector.extract_strided_slice %101 {offsets = [0, 0, 0], sizes = [4, 8, 8], strides = [1, 1, 1]} : vector<8x8x8xf32> to vector<4x8x8xf32>
    %103 = vector.extract_strided_slice %101 {offsets = [4, 0, 0], sizes = [4, 8, 8], strides = [1, 1, 1]} : vector<8x8x8xf32> to vector<4x8x8xf32>
    %c0_20 = arith.constant 0 : index
    %c0_21 = arith.constant 0 : index
    %c0_22 = arith.constant 0 : index
    %c0_23 = arith.constant 0 : index
    %104 = vector.load %arg5[%c0_20, %c0_21, %c0_22, %c0_23] : memref<2x4x8x32xbf16, #tpu.memory_space<vmem>>, vector<1x4x8x32xbf16>
    %105 = vector.shape_cast %104 : vector<1x4x8x32xbf16> to vector<4x8x32xbf16>
    %106 = vector.shape_cast %96 : vector<32x8xbf16> to vector<1x32x8xbf16>
    %107 = vector.broadcast %106 : vector<1x32x8xbf16> to vector<4x32x8xbf16>
    "tpu.trace_start"() <{level = 10 : i32, message = "hed,hdt->het"}> : () -> ()
    %cst_24 = arith.constant dense<0.000000e+00> : vector<4x8x8xf32>
    %108 = tpu.matmul %105, %107, %cst_24 {dimension_numbers = #tpu.dot_dimension_numbers<[2], [1], [1], [2], [0, 0, 0, 1, 1, 2], [0], [0]>} : vector<4x8x32xbf16>, vector<4x32x8xbf16>, vector<4x8x8xf32> -> vector<4x8x8xf32>
    "tpu.trace_stop"() : () -> ()
    %109 = arith.truncf %102 : vector<4x8x8xf32> to vector<4x8x8xbf16>
    %110 = arith.truncf %108 : vector<4x8x8xf32> to vector<4x8x8xbf16>
    "tpu.trace_start"() <{level = 10 : i32, message = "htd,hdk->htk"}> : () -> ()
    %cst_25 = arith.constant dense<0.000000e+00> : vector<4x8x8xf32>
    %111 = tpu.matmul %109, %110, %cst_25 {dimension_numbers = #tpu.dot_dimension_numbers<[2], [1], [1], [2], [0, 0, 0, 1, 1, 2], [0], [0]>} : vector<4x8x8xbf16>, vector<4x8x8xbf16>, vector<4x8x8xf32> -> vector<4x8x8xf32>
    "tpu.trace_stop"() : () -> ()
    %112 = vector.shape_cast %65 : vector<8x8xf32> to vector<1x8x8xf32>
    %113 = vector.broadcast %112 : vector<1x8x8xf32> to vector<4x8x8xf32>
    %114 = arith.addf %111, %113 : vector<4x8x8xf32>
    %cst_26 = arith.constant dense<0xFF800000> : vector<4x8xf32>
    %115 = vector.multi_reduction <maximumf>, %114, %cst_26 [2] : vector<4x8x8xf32> to vector<4x8xf32>
    %116 = vector.shape_cast %115 : vector<4x8xf32> to vector<4x8x1xf32>
    %117 = vector.broadcast %116 : vector<4x8x1xf32> to vector<4x8x8xf32>
    %118 = arith.subf %114, %117 : vector<4x8x8xf32>
    %119 = math.exp %118 : vector<4x8x8xf32>
    %cst_27 = arith.constant dense<0.000000e+00> : vector<4x8xf32>
    %120 = vector.multi_reduction <add>, %119, %cst_27 [2] : vector<4x8x8xf32> to vector<4x8xf32>
    %121 = vector.shape_cast %120 : vector<4x8xf32> to vector<4x8x1xf32>
    %122 = tpu.reciprocal %121 {approx = true} : vector<4x8x1xf32> -> vector<4x8x1xf32>
    %123 = vector.broadcast %122 : vector<4x8x1xf32> to vector<4x8x8xf32>
    %124 = arith.mulf %119, %123 : vector<4x8x8xf32>
    %125 = arith.truncf %124 : vector<4x8x8xf32> to vector<4x8x8xbf16>
    %126 = arith.truncf %103 : vector<4x8x8xf32> to vector<4x8x8xbf16>
    "tpu.trace_start"() <{level = 10 : i32, message = "hqk,hkd->hqd"}> : () -> ()
    %cst_28 = arith.constant dense<0.000000e+00> : vector<4x8x8xf32>
    %127 = tpu.matmul %125, %126, %cst_28 {dimension_numbers = #tpu.dot_dimension_numbers<[2], [1], [1], [2], [0, 0, 0, 1, 1, 2], [0], [0]>} : vector<4x8x8xbf16>, vector<4x8x8xbf16>, vector<4x8x8xf32> -> vector<4x8x8xf32>
    "tpu.trace_stop"() : () -> ()
    %128 = arith.truncf %127 : vector<4x8x8xf32> to vector<4x8x8xbf16>
    %c0_29 = arith.constant 0 : index
    %c0_30 = arith.constant 0 : index
    %c0_31 = arith.constant 0 : index
    %c0_32 = arith.constant 0 : index
    %129 = vector.load %arg6[%c0_29, %c0_30, %c0_31, %c0_32] : memref<2x4x8x32xbf16, #tpu.memory_space<vmem>>, vector<1x4x8x32xbf16>
    %130 = vector.shape_cast %129 : vector<1x4x8x32xbf16> to vector<4x8x32xbf16>
    "tpu.trace_start"() <{level = 10 : i32, message = "htd,hdk->htk"}> : () -> ()
    %cst_33 = arith.constant dense<0.000000e+00> : vector<4x8x32xf32>
    %131 = tpu.matmul %128, %130, %cst_33 {dimension_numbers = #tpu.dot_dimension_numbers<[2], [1], [1], [2], [0, 0, 0, 1, 1, 2], [0], [0]>} : vector<4x8x8xbf16>, vector<4x8x32xbf16>, vector<4x8x32xf32> -> vector<4x8x32xf32>
    "tpu.trace_stop"() : () -> ()
    %cst_34 = arith.constant dense<0.000000e+00> : vector<8x32xf32>
    %132 = vector.multi_reduction <add>, %131, %cst_34 [0] : vector<4x8x32xf32> to vector<8x32xf32>
    %133 = arith.addf %59, %132 : vector<8x32xf32>
    %134 = vector.broadcast %72 : vector<1x32xf32> to vector<8x32xf32>
    %135 = arith.addf %133, %134 : vector<8x32xf32>
    %cst_35 = arith.constant dense<0.000000e+00> : vector<8xf32>
    %136 = vector.multi_reduction <add>, %135, %cst_35 [1] : vector<8x32xf32> to vector<8xf32>
    %137 = vector.shape_cast %136 : vector<8xf32> to vector<8x1xf32>
    %cst_36 = arith.constant 3.200000e+01 : f32
    %138 = vector.broadcast %cst_36 : f32 to vector<8x1xf32>
    %139 = arith.divf %137, %138 : vector<8x1xf32>
    %140 = vector.broadcast %139 : vector<8x1xf32> to vector<8x32xf32>
    %141 = arith.subf %135, %140 : vector<8x32xf32>
    %142 = arith.mulf %141, %141 : vector<8x32xf32>
    %cst_37 = arith.constant dense<0.000000e+00> : vector<8xf32>
    %143 = vector.multi_reduction <add>, %142, %cst_37 [1] : vector<8x32xf32> to vector<8xf32>
    %144 = vector.shape_cast %143 : vector<8xf32> to vector<8x1xf32>
    %cst_38 = arith.constant 3.200000e+01 : f32
    %145 = vector.broadcast %cst_38 : f32 to vector<8x1xf32>
    %146 = arith.divf %144, %145 : vector<8x1xf32>
    %cst_39 = arith.constant 9.99999974E-6 : f32
    %147 = vector.broadcast %cst_39 : f32 to vector<8x1xf32>
    %148 = arith.addf %146, %147 : vector<8x1xf32>
    %149 = math.rsqrt %148 : vector<8x1xf32>
    %150 = vector.broadcast %149 : vector<8x1xf32> to vector<8x32xf32>
    %151 = arith.mulf %141, %150 : vector<8x32xf32>
    %152 = vector.broadcast %70 : vector<1x32xf32> to vector<8x32xf32>
    %153 = arith.mulf %151, %152 : vector<8x32xf32>
    %154 = vector.broadcast %71 : vector<1x32xf32> to vector<8x32xf32>
    %155 = arith.addf %153, %154 : vector<8x32xf32>
    %156 = arith.truncf %155 : vector<8x32xf32> to vector<8x32xbf16>
    %c0_40 = arith.constant 0 : index
    %c0_41 = arith.constant 0 : index
    %c0_42 = arith.constant 0 : index
    %157 = vector.load %arg7[%c0_40, %c0_41, %c0_42] : memref<2x32x128xbf16, #tpu.memory_space<vmem>>, vector<1x32x128xbf16>
    %158 = vector.shape_cast %157 : vector<1x32x128xbf16> to vector<32x128xbf16>
    %cst_43 = arith.constant dense<0.000000e+00> : vector<8x128xf32>
    %159 = tpu.matmul %156, %158, %cst_43 {dimension_numbers = #tpu.dot_dimension_numbers<[1], [0], [0], [1], [0, 0, 1, 1], [], []>} : vector<8x32xbf16>, vector<32x128xbf16>, vector<8x128xf32> -> vector<8x128xf32>
    %c0_44 = arith.constant 0 : index
    %c0_45 = arith.constant 0 : index
    %c0_46 = arith.constant 0 : index
    %160 = vector.load %arg10[%c0_44, %c0_45, %c0_46] : memref<2x1x128xf32, #tpu.memory_space<vmem>>, vector<1x1x128xf32>
    %161 = vector.shape_cast %160 : vector<1x1x128xf32> to vector<1x128xf32>
    %162 = vector.broadcast %161 : vector<1x128xf32> to vector<8x128xf32>
    %163 = arith.addf %159, %162 : vector<8x128xf32>
    %cst_47 = arith.constant 5.000000e-01 : f32
    %164 = vector.broadcast %cst_47 : f32 to vector<8x128xf32>
    %165 = arith.mulf %164, %163 : vector<8x128xf32>
    %cst_48 = arith.constant 4.471500e-02 : f32
    %166 = vector.broadcast %cst_48 : f32 to vector<8x128xf32>
    %167 = arith.mulf %166, %163 : vector<8x128xf32>
    %168 = arith.mulf %167, %163 : vector<8x128xf32>
    %169 = arith.mulf %168, %163 : vector<8x128xf32>
    %170 = arith.addf %163, %169 : vector<8x128xf32>
    %cst_49 = arith.constant 0.797884583 : f32
    %171 = vector.broadcast %cst_49 : f32 to vector<8x128xf32>
    %172 = arith.mulf %171, %170 : vector<8x128xf32>
    %173 = math.tanh %172 : vector<8x128xf32>
    %cst_50 = arith.constant 1.000000e+00 : f32
    %174 = vector.broadcast %cst_50 : f32 to vector<8x128xf32>
    %175 = arith.addf %174, %173 : vector<8x128xf32>
    %176 = arith.mulf %165, %175 : vector<8x128xf32>
    %177 = arith.truncf %176 : vector<8x128xf32> to vector<8x128xbf16>
    %c0_51 = arith.constant 0 : index
    %c0_52 = arith.constant 0 : index
    %c0_53 = arith.constant 0 : index
    %178 = vector.load %arg8[%c0_51, %c0_52, %c0_53] : memref<2x128x32xbf16, #tpu.memory_space<vmem>>, vector<1x128x32xbf16>
    %179 = vector.shape_cast %178 : vector<1x128x32xbf16> to vector<128x32xbf16>
    %cst_54 = arith.constant dense<0.000000e+00> : vector<8x32xf32>
    %180 = tpu.matmul %177, %179, %cst_54 {dimension_numbers = #tpu.dot_dimension_numbers<[1], [0], [0], [1], [0, 0, 1, 1], [], []>} : vector<8x128xbf16>, vector<128x32xbf16>, vector<8x32xf32> -> vector<8x32xf32>
    %181 = arith.addf %135, %180 : vector<8x32xf32>
    %182 = vector.broadcast %73 : vector<1x32xf32> to vector<8x32xf32>
    %183 = arith.addf %181, %182 : vector<8x32xf32>
    %c1_55 = arith.constant 1 : index
    %c0_56 = arith.constant 0 : index
    %c0_57 = arith.constant 0 : index
    %184 = vector.load %arg9[%c1_55, %c0_56, %c0_57] : memref<2x6x32xf32, #tpu.memory_space<vmem>>, vector<1x6x32xf32>
    %185 = vector.shape_cast %184 : vector<1x6x32xf32> to vector<6x32xf32>
    %186 = vector.extract_strided_slice %185 {offsets = [0, 0], sizes = [1, 32], strides = [1, 1]} : vector<6x32xf32> to vector<1x32xf32>
    %187 = vector.extract_strided_slice %185 {offsets = [1, 0], sizes = [1, 32], strides = [1, 1]} : vector<6x32xf32> to vector<1x32xf32>
    %188 = vector.extract_strided_slice %185 {offsets = [2, 0], sizes = [1, 32], strides = [1, 1]} : vector<6x32xf32> to vector<1x32xf32>
    %189 = vector.extract_strided_slice %185 {offsets = [3, 0], sizes = [1, 32], strides = [1, 1]} : vector<6x32xf32> to vector<1x32xf32>
    %190 = vector.extract_strided_slice %185 {offsets = [4, 0], sizes = [1, 32], strides = [1, 1]} : vector<6x32xf32> to vector<1x32xf32>
    %191 = vector.extract_strided_slice %185 {offsets = [5, 0], sizes = [1, 32], strides = [1, 1]} : vector<6x32xf32> to vector<1x32xf32>
    %cst_58 = arith.constant dense<0.000000e+00> : vector<8xf32>
    %192 = vector.multi_reduction <add>, %183, %cst_58 [1] : vector<8x32xf32> to vector<8xf32>
    %193 = vector.shape_cast %192 : vector<8xf32> to vector<8x1xf32>
    %cst_59 = arith.constant 3.200000e+01 : f32
    %194 = vector.broadcast %cst_59 : f32 to vector<8x1xf32>
    %195 = arith.divf %193, %194 : vector<8x1xf32>
    %196 = vector.broadcast %195 : vector<8x1xf32> to vector<8x32xf32>
    %197 = arith.subf %183, %196 : vector<8x32xf32>
    %198 = arith.mulf %197, %197 : vector<8x32xf32>
    %cst_60 = arith.constant dense<0.000000e+00> : vector<8xf32>
    %199 = vector.multi_reduction <add>, %198, %cst_60 [1] : vector<8x32xf32> to vector<8xf32>
    %200 = vector.shape_cast %199 : vector<8xf32> to vector<8x1xf32>
    %cst_61 = arith.constant 3.200000e+01 : f32
    %201 = vector.broadcast %cst_61 : f32 to vector<8x1xf32>
    %202 = arith.divf %200, %201 : vector<8x1xf32>
    %cst_62 = arith.constant 9.99999974E-6 : f32
    %203 = vector.broadcast %cst_62 : f32 to vector<8x1xf32>
    %204 = arith.addf %202, %203 : vector<8x1xf32>
    %205 = math.rsqrt %204 : vector<8x1xf32>
    %206 = vector.broadcast %205 : vector<8x1xf32> to vector<8x32xf32>
    %207 = arith.mulf %197, %206 : vector<8x32xf32>
    %208 = vector.broadcast %186 : vector<1x32xf32> to vector<8x32xf32>
    %209 = arith.mulf %207, %208 : vector<8x32xf32>
    %210 = vector.broadcast %187 : vector<1x32xf32> to vector<8x32xf32>
    %211 = arith.addf %209, %210 : vector<8x32xf32>
    %212 = arith.truncf %211 : vector<8x32xf32> to vector<8x32xbf16>
    %213 = tpu.transpose %211, [1, 0] : vector<8x32xf32> -> vector<32x8xf32>
    %214 = arith.truncf %213 : vector<32x8xf32> to vector<32x8xbf16>
    %215 = vector.shape_cast %212 : vector<8x32xbf16> to vector<1x8x32xbf16>
    %216 = vector.broadcast %215 : vector<1x8x32xbf16> to vector<8x8x32xbf16>
    %c1_63 = arith.constant 1 : index
    %c0_64 = arith.constant 0 : index
    %c0_65 = arith.constant 0 : index
    %c0_66 = arith.constant 0 : index
    %217 = vector.load %arg4[%c1_63, %c0_64, %c0_65, %c0_66] : memref<2x8x32x8xbf16, #tpu.memory_space<vmem>>, vector<1x8x32x8xbf16>
    %218 = vector.shape_cast %217 : vector<1x8x32x8xbf16> to vector<8x32x8xbf16>
    "tpu.trace_start"() <{level = 10 : i32, message = "btd,bdk->btk"}> : () -> ()
    %cst_67 = arith.constant dense<0.000000e+00> : vector<8x8x8xf32>
    %219 = tpu.matmul %216, %218, %cst_67 {dimension_numbers = #tpu.dot_dimension_numbers<[2], [1], [1], [2], [0, 0, 0, 1, 1, 2], [0], [0]>} : vector<8x8x32xbf16>, vector<8x32x8xbf16>, vector<8x8x8xf32> -> vector<8x8x8xf32>
    "tpu.trace_stop"() : () -> ()
    %220 = vector.extract_strided_slice %219 {offsets = [0, 0, 0], sizes = [4, 8, 8], strides = [1, 1, 1]} : vector<8x8x8xf32> to vector<4x8x8xf32>
    %221 = vector.extract_strided_slice %219 {offsets = [4, 0, 0], sizes = [4, 8, 8], strides = [1, 1, 1]} : vector<8x8x8xf32> to vector<4x8x8xf32>
    %c1_68 = arith.constant 1 : index
    %c0_69 = arith.constant 0 : index
    %c0_70 = arith.constant 0 : index
    %c0_71 = arith.constant 0 : index
    %222 = vector.load %arg5[%c1_68, %c0_69, %c0_70, %c0_71] : memref<2x4x8x32xbf16, #tpu.memory_space<vmem>>, vector<1x4x8x32xbf16>
    %223 = vector.shape_cast %222 : vector<1x4x8x32xbf16> to vector<4x8x32xbf16>
    %224 = vector.shape_cast %214 : vector<32x8xbf16> to vector<1x32x8xbf16>
    %225 = vector.broadcast %224 : vector<1x32x8xbf16> to vector<4x32x8xbf16>
    "tpu.trace_start"() <{level = 10 : i32, message = "hed,hdt->het"}> : () -> ()
    %cst_72 = arith.constant dense<0.000000e+00> : vector<4x8x8xf32>
    %226 = tpu.matmul %223, %225, %cst_72 {dimension_numbers = #tpu.dot_dimension_numbers<[2], [1], [1], [2], [0, 0, 0, 1, 1, 2], [0], [0]>} : vector<4x8x32xbf16>, vector<4x32x8xbf16>, vector<4x8x8xf32> -> vector<4x8x8xf32>
    "tpu.trace_stop"() : () -> ()
    %227 = arith.truncf %220 : vector<4x8x8xf32> to vector<4x8x8xbf16>
    %228 = arith.truncf %226 : vector<4x8x8xf32> to vector<4x8x8xbf16>
    "tpu.trace_start"() <{level = 10 : i32, message = "htd,hdk->htk"}> : () -> ()
    %cst_73 = arith.constant dense<0.000000e+00> : vector<4x8x8xf32>
    %229 = tpu.matmul %227, %228, %cst_73 {dimension_numbers = #tpu.dot_dimension_numbers<[2], [1], [1], [2], [0, 0, 0, 1, 1, 2], [0], [0]>} : vector<4x8x8xbf16>, vector<4x8x8xbf16>, vector<4x8x8xf32> -> vector<4x8x8xf32>
    "tpu.trace_stop"() : () -> ()
    %230 = vector.shape_cast %65 : vector<8x8xf32> to vector<1x8x8xf32>
    %231 = vector.broadcast %230 : vector<1x8x8xf32> to vector<4x8x8xf32>
    %232 = arith.addf %229, %231 : vector<4x8x8xf32>
    %cst_74 = arith.constant dense<0xFF800000> : vector<4x8xf32>
    %233 = vector.multi_reduction <maximumf>, %232, %cst_74 [2] : vector<4x8x8xf32> to vector<4x8xf32>
    %234 = vector.shape_cast %233 : vector<4x8xf32> to vector<4x8x1xf32>
    %235 = vector.broadcast %234 : vector<4x8x1xf32> to vector<4x8x8xf32>
    %236 = arith.subf %232, %235 : vector<4x8x8xf32>
    %237 = math.exp %236 : vector<4x8x8xf32>
    %cst_75 = arith.constant dense<0.000000e+00> : vector<4x8xf32>
    %238 = vector.multi_reduction <add>, %237, %cst_75 [2] : vector<4x8x8xf32> to vector<4x8xf32>
    %239 = vector.shape_cast %238 : vector<4x8xf32> to vector<4x8x1xf32>
    %240 = tpu.reciprocal %239 {approx = true} : vector<4x8x1xf32> -> vector<4x8x1xf32>
    %241 = vector.broadcast %240 : vector<4x8x1xf32> to vector<4x8x8xf32>
    %242 = arith.mulf %237, %241 : vector<4x8x8xf32>
    %243 = arith.truncf %242 : vector<4x8x8xf32> to vector<4x8x8xbf16>
    %244 = arith.truncf %221 : vector<4x8x8xf32> to vector<4x8x8xbf16>
    "tpu.trace_start"() <{level = 10 : i32, message = "hqk,hkd->hqd"}> : () -> ()
    %cst_76 = arith.constant dense<0.000000e+00> : vector<4x8x8xf32>
    %245 = tpu.matmul %243, %244, %cst_76 {dimension_numbers = #tpu.dot_dimension_numbers<[2], [1], [1], [2], [0, 0, 0, 1, 1, 2], [0], [0]>} : vector<4x8x8xbf16>, vector<4x8x8xbf16>, vector<4x8x8xf32> -> vector<4x8x8xf32>
    "tpu.trace_stop"() : () -> ()
    %246 = arith.truncf %245 : vector<4x8x8xf32> to vector<4x8x8xbf16>
    %c1_77 = arith.constant 1 : index
    %c0_78 = arith.constant 0 : index
    %c0_79 = arith.constant 0 : index
    %c0_80 = arith.constant 0 : index
    %247 = vector.load %arg6[%c1_77, %c0_78, %c0_79, %c0_80] : memref<2x4x8x32xbf16, #tpu.memory_space<vmem>>, vector<1x4x8x32xbf16>
    %248 = vector.shape_cast %247 : vector<1x4x8x32xbf16> to vector<4x8x32xbf16>
    "tpu.trace_start"() <{level = 10 : i32, message = "htd,hdk->htk"}> : () -> ()
    %cst_81 = arith.constant dense<0.000000e+00> : vector<4x8x32xf32>
    %249 = tpu.matmul %246, %248, %cst_81 {dimension_numbers = #tpu.dot_dimension_numbers<[2], [1], [1], [2], [0, 0, 0, 1, 1, 2], [0], [0]>} : vector<4x8x8xbf16>, vector<4x8x32xbf16>, vector<4x8x32xf32> -> vector<4x8x32xf32>
    "tpu.trace_stop"() : () -> ()
    %cst_82 = arith.constant dense<0.000000e+00> : vector<8x32xf32>
    %250 = vector.multi_reduction <add>, %249, %cst_82 [0] : vector<4x8x32xf32> to vector<8x32xf32>
    %251 = arith.addf %183, %250 : vector<8x32xf32>
    %252 = vector.broadcast %190 : vector<1x32xf32> to vector<8x32xf32>
    %253 = arith.addf %251, %252 : vector<8x32xf32>
    %cst_83 = arith.constant dense<0.000000e+00> : vector<8xf32>
    %254 = vector.multi_reduction <add>, %253, %cst_83 [1] : vector<8x32xf32> to vector<8xf32>
    %255 = vector.shape_cast %254 : vector<8xf32> to vector<8x1xf32>
    %cst_84 = arith.constant 3.200000e+01 : f32
    %256 = vector.broadcast %cst_84 : f32 to vector<8x1xf32>
    %257 = arith.divf %255, %256 : vector<8x1xf32>
    %258 = vector.broadcast %257 : vector<8x1xf32> to vector<8x32xf32>
    %259 = arith.subf %253, %258 : vector<8x32xf32>
    %260 = arith.mulf %259, %259 : vector<8x32xf32>
    %cst_85 = arith.constant dense<0.000000e+00> : vector<8xf32>
    %261 = vector.multi_reduction <add>, %260, %cst_85 [1] : vector<8x32xf32> to vector<8xf32>
    %262 = vector.shape_cast %261 : vector<8xf32> to vector<8x1xf32>
    %cst_86 = arith.constant 3.200000e+01 : f32
    %263 = vector.broadcast %cst_86 : f32 to vector<8x1xf32>
    %264 = arith.divf %262, %263 : vector<8x1xf32>
    %cst_87 = arith.constant 9.99999974E-6 : f32
    %265 = vector.broadcast %cst_87 : f32 to vector<8x1xf32>
    %266 = arith.addf %264, %265 : vector<8x1xf32>
    %267 = math.rsqrt %266 : vector<8x1xf32>
    %268 = vector.broadcast %267 : vector<8x1xf32> to vector<8x32xf32>
    %269 = arith.mulf %259, %268 : vector<8x32xf32>
    %270 = vector.broadcast %188 : vector<1x32xf32> to vector<8x32xf32>
    %271 = arith.mulf %269, %270 : vector<8x32xf32>
    %272 = vector.broadcast %189 : vector<1x32xf32> to vector<8x32xf32>
    %273 = arith.addf %271, %272 : vector<8x32xf32>
    %274 = arith.truncf %273 : vector<8x32xf32> to vector<8x32xbf16>
    %c1_88 = arith.constant 1 : index
    %c0_89 = arith.constant 0 : index
    %c0_90 = arith.constant 0 : index
    %275 = vector.load %arg7[%c1_88, %c0_89, %c0_90] : memref<2x32x128xbf16, #tpu.memory_space<vmem>>, vector<1x32x128xbf16>
    %276 = vector.shape_cast %275 : vector<1x32x128xbf16> to vector<32x128xbf16>
    %cst_91 = arith.constant dense<0.000000e+00> : vector<8x128xf32>
    %277 = tpu.matmul %274, %276, %cst_91 {dimension_numbers = #tpu.dot_dimension_numbers<[1], [0], [0], [1], [0, 0, 1, 1], [], []>} : vector<8x32xbf16>, vector<32x128xbf16>, vector<8x128xf32> -> vector<8x128xf32>
    %c1_92 = arith.constant 1 : index
    %c0_93 = arith.constant 0 : index
    %c0_94 = arith.constant 0 : index
    %278 = vector.load %arg10[%c1_92, %c0_93, %c0_94] : memref<2x1x128xf32, #tpu.memory_space<vmem>>, vector<1x1x128xf32>
    %279 = vector.shape_cast %278 : vector<1x1x128xf32> to vector<1x128xf32>
    %280 = vector.broadcast %279 : vector<1x128xf32> to vector<8x128xf32>
    %281 = arith.addf %277, %280 : vector<8x128xf32>
    %cst_95 = arith.constant 5.000000e-01 : f32
    %282 = vector.broadcast %cst_95 : f32 to vector<8x128xf32>
    %283 = arith.mulf %282, %281 : vector<8x128xf32>
    %cst_96 = arith.constant 4.471500e-02 : f32
    %284 = vector.broadcast %cst_96 : f32 to vector<8x128xf32>
    %285 = arith.mulf %284, %281 : vector<8x128xf32>
    %286 = arith.mulf %285, %281 : vector<8x128xf32>
    %287 = arith.mulf %286, %281 : vector<8x128xf32>
    %288 = arith.addf %281, %287 : vector<8x128xf32>
    %cst_97 = arith.constant 0.797884583 : f32
    %289 = vector.broadcast %cst_97 : f32 to vector<8x128xf32>
    %290 = arith.mulf %289, %288 : vector<8x128xf32>
    %291 = math.tanh %290 : vector<8x128xf32>
    %cst_98 = arith.constant 1.000000e+00 : f32
    %292 = vector.broadcast %cst_98 : f32 to vector<8x128xf32>
    %293 = arith.addf %292, %291 : vector<8x128xf32>
    %294 = arith.mulf %283, %293 : vector<8x128xf32>
    %295 = arith.truncf %294 : vector<8x128xf32> to vector<8x128xbf16>
    %c1_99 = arith.constant 1 : index
    %c0_100 = arith.constant 0 : index
    %c0_101 = arith.constant 0 : index
    %296 = vector.load %arg8[%c1_99, %c0_100, %c0_101] : memref<2x128x32xbf16, #tpu.memory_space<vmem>>, vector<1x128x32xbf16>
    %297 = vector.shape_cast %296 : vector<1x128x32xbf16> to vector<128x32xbf16>
    %cst_102 = arith.constant dense<0.000000e+00> : vector<8x32xf32>
    %298 = tpu.matmul %295, %297, %cst_102 {dimension_numbers = #tpu.dot_dimension_numbers<[1], [0], [0], [1], [0, 0, 1, 1], [], []>} : vector<8x128xbf16>, vector<128x32xbf16>, vector<8x32xf32> -> vector<8x32xf32>
    %299 = arith.addf %253, %298 : vector<8x32xf32>
    %300 = vector.broadcast %191 : vector<1x32xf32> to vector<8x32xf32>
    %301 = arith.addf %299, %300 : vector<8x32xf32>
    %c0_103 = arith.constant 0 : index
    %c0_104 = arith.constant 0 : index
    %302 = vector.load %arg11[%c0_103, %c0_104] : memref<2x32xf32, #tpu.memory_space<vmem>>, vector<2x32xf32>
    %303 = vector.extract_strided_slice %302 {offsets = [0, 0], sizes = [1, 32], strides = [1, 1]} : vector<2x32xf32> to vector<1x32xf32>
    %304 = vector.extract_strided_slice %302 {offsets = [1, 0], sizes = [1, 32], strides = [1, 1]} : vector<2x32xf32> to vector<1x32xf32>
    %cst_105 = arith.constant dense<0.000000e+00> : vector<8xf32>
    %305 = vector.multi_reduction <add>, %301, %cst_105 [1] : vector<8x32xf32> to vector<8xf32>
    %306 = vector.shape_cast %305 : vector<8xf32> to vector<8x1xf32>
    %cst_106 = arith.constant 3.200000e+01 : f32
    %307 = vector.broadcast %cst_106 : f32 to vector<8x1xf32>
    %308 = arith.divf %306, %307 : vector<8x1xf32>
    %309 = vector.broadcast %308 : vector<8x1xf32> to vector<8x32xf32>
    %310 = arith.subf %301, %309 : vector<8x32xf32>
    %311 = arith.mulf %310, %310 : vector<8x32xf32>
    %cst_107 = arith.constant dense<0.000000e+00> : vector<8xf32>
    %312 = vector.multi_reduction <add>, %311, %cst_107 [1] : vector<8x32xf32> to vector<8xf32>
    %313 = vector.shape_cast %312 : vector<8xf32> to vector<8x1xf32>
    %cst_108 = arith.constant 3.200000e+01 : f32
    %314 = vector.broadcast %cst_108 : f32 to vector<8x1xf32>
    %315 = arith.divf %313, %314 : vector<8x1xf32>
    %cst_109 = arith.constant 9.99999974E-6 : f32
    %316 = vector.broadcast %cst_109 : f32 to vector<8x1xf32>
    %317 = arith.addf %315, %316 : vector<8x1xf32>
    %318 = math.rsqrt %317 : vector<8x1xf32>
    %319 = vector.broadcast %318 : vector<8x1xf32> to vector<8x32xf32>
    %320 = arith.mulf %310, %319 : vector<8x32xf32>
    %321 = vector.broadcast %303 : vector<1x32xf32> to vector<8x32xf32>
    %322 = arith.mulf %320, %321 : vector<8x32xf32>
    %323 = vector.broadcast %304 : vector<1x32xf32> to vector<8x32xf32>
    %324 = arith.addf %322, %323 : vector<8x32xf32>
    %325 = arith.truncf %324 : vector<8x32xf32> to vector<8x32xbf16>
    %c0_110 = arith.constant 0 : index
    %c0_111 = arith.constant 0 : index
    %326 = vector.load %arg2[%c0_110, %c0_111] : memref<256x32xbf16, #tpu.memory_space<vmem>>, vector<256x32xbf16>
    "tpu.trace_start"() <{level = 10 : i32, message = "td,vd->tv"}> : () -> ()
    %cst_112 = arith.constant dense<0.000000e+00> : vector<8x256xf32>
    %327 = tpu.matmul %325, %326, %cst_112 {dimension_numbers = #tpu.dot_dimension_numbers<[1], [1], [0], [0], [0, 0, 1, 0], [], []>} : vector<8x32xbf16>, vector<256x32xbf16>, vector<8x256xf32> -> vector<8x256xf32>
    "tpu.trace_stop"() : () -> ()
    %cst_113 = arith.constant dense<0xFF800000> : vector<8xf32>
    %328 = vector.multi_reduction <maximumf>, %327, %cst_113 [1] : vector<8x256xf32> to vector<8xf32>
    %329 = vector.shape_cast %328 : vector<8xf32> to vector<8x1xf32>
    %330 = tpu.iota {dimensions = array<i32: 1>} : vector<8x256xi32>
    %331 = vector.broadcast %329 : vector<8x1xf32> to vector<8x256xf32>
    %332 = arith.cmpf oeq, %327, %331 : vector<8x256xf32>
    %c256_i32 = arith.constant 256 : i32
    %333 = vector.broadcast %c256_i32 : i32 to vector<8x256xi32>
    %334 = arith.select %332, %330, %333 : vector<8x256xi1>, vector<8x256xi32>
    %cst_114 = arith.constant dense<2147483647> : vector<8xi32>
    %335 = vector.multi_reduction <minsi>, %334, %cst_114 [1] : vector<8x256xi32> to vector<8xi32>
    %336 = vector.shape_cast %335 : vector<8xi32> to vector<8x1xi32>
    %337 = vector.shape_cast %336 : vector<8x1xi32> to vector<8x1xi32>
    %338 = vector.broadcast %337 : vector<8x1xi32> to vector<8x128xi32>
    %339 = vector.shape_cast %338 : vector<8x128xi32> to vector<1x8x128xi32>
    %c0_115 = arith.constant 0 : index
    %c0_116 = arith.constant 0 : index
    %c0_117 = arith.constant 0 : index
    %340 = vector.load %arg12[%c0_115, %c0_116, %c0_117] : memref<1x8x128xi32, #tpu.memory_space<vmem>>, vector<1x8x128xi32>
    tpu.vector_store %arg12[%c0_115, %c0_116, %c0_117], %339 {strides = array<i32>} : memref<1x8x128xi32, #tpu.memory_space<vmem>>, vector<1x8x128xi32>,
    return
  }
  func.func @transform_0(%arg0: i32, %arg1: memref<2x8xi32, #tpu.memory_space<smem>>) -> (i32, i32) {
    %c0_i32 = arith.constant 0 : i32
    %c0_i32_0 = arith.constant 0 : i32
    %c0_i32_1 = arith.constant 0 : i32
    return %c0_i32, %c0_i32_0 : i32, i32
  }
  func.func @transform_1(%arg0: i32, %arg1: memref<2x8xi32, #tpu.memory_space<smem>>) -> (i32, i32) {
    %c0_i32 = arith.constant 0 : i32
    %c0_i32_0 = arith.constant 0 : i32
    %c0_i32_1 = arith.constant 0 : i32
    return %c0_i32, %c0_i32_0 : i32, i32
  }
  func.func @transform_2(%arg0: i32, %arg1: memref<2x8xi32, #tpu.memory_space<smem>>) -> (i32, i32, i32, i32) {
    %c0_i32 = arith.constant 0 : i32
    %c0_i32_0 = arith.constant 0 : i32
    %c0_i32_1 = arith.constant 0 : i32
    %c0_i32_2 = arith.constant 0 : i32
    %c0_i32_3 = arith.constant 0 : i32
    return %c0_i32, %c0_i32_0, %c0_i32_1, %c0_i32_2 : i32, i32, i32, i32
  }
  func.func @transform_3(%arg0: i32, %arg1: memref<2x8xi32, #tpu.memory_space<smem>>) -> (i32, i32, i32, i32) {
    %c0_i32 = arith.constant 0 : i32
    %c0_i32_0 = arith.constant 0 : i32
    %c0_i32_1 = arith.constant 0 : i32
    %c0_i32_2 = arith.constant 0 : i32
    %c0_i32_3 = arith.constant 0 : i32
    return %c0_i32, %c0_i32_0, %c0_i32_1, %c0_i32_2 : i32, i32, i32, i32
  }
  func.func @transform_4(%arg0: i32, %arg1: memref<2x8xi32, #tpu.memory_space<smem>>) -> (i32, i32, i32, i32) {
    %c0_i32 = arith.constant 0 : i32
    %c0_i32_0 = arith.constant 0 : i32
    %c0_i32_1 = arith.constant 0 : i32
    %c0_i32_2 = arith.constant 0 : i32
    %c0_i32_3 = arith.constant 0 : i32
    return %c0_i32, %c0_i32_0, %c0_i32_1, %c0_i32_2 : i32, i32, i32, i32
  }
  func.func @transform_5(%arg0: i32, %arg1: memref<2x8xi32, #tpu.memory_space<smem>>) -> (i32, i32, i32) {
    %c0_i32 = arith.constant 0 : i32
    %c0_i32_0 = arith.constant 0 : i32
    %c0_i32_1 = arith.constant 0 : i32
    %c0_i32_2 = arith.constant 0 : i32
    return %c0_i32, %c0_i32_0, %c0_i32_1 : i32, i32, i32
  }
  func.func @transform_6(%arg0: i32, %arg1: memref<2x8xi32, #tpu.memory_space<smem>>) -> (i32, i32, i32) {
    %c0_i32 = arith.constant 0 : i32
    %c0_i32_0 = arith.constant 0 : i32
    %c0_i32_1 = arith.constant 0 : i32
    %c0_i32_2 = arith.constant 0 : i32
    return %c0_i32, %c0_i32_0, %c0_i32_1 : i32, i32, i32
  }
  func.func @transform_7(%arg0: i32, %arg1: memref<2x8xi32, #tpu.memory_space<smem>>) -> (i32, i32, i32) {
    %c0_i32 = arith.constant 0 : i32
    %c0_i32_0 = arith.constant 0 : i32
    %c0_i32_1 = arith.constant 0 : i32
    %c0_i32_2 = arith.constant 0 : i32
    return %c0_i32, %c0_i32_0, %c0_i32_1 : i32, i32, i32
  }
  func.func @transform_8(%arg0: i32, %arg1: memref<2x8xi32, #tpu.memory_space<smem>>) -> (i32, i32, i32) {
    %c0_i32 = arith.constant 0 : i32
    %c0_i32_0 = arith.constant 0 : i32
    %c0_i32_1 = arith.constant 0 : i32
    %c0_i32_2 = arith.constant 0 : i32
    return %c0_i32, %c0_i32_0, %c0_i32_1 : i32, i32, i32
  }
  func.func @transform_9(%arg0: i32, %arg1: memref<2x8xi32, #tpu.memory_space<smem>>) -> (i32, i32) {
    %c0_i32 = arith.constant 0 : i32
    %c0_i32_0 = arith.constant 0 : i32
    %c0_i32_1 = arith.constant 0 : i32
    return %c0_i32, %c0_i32_0 : i32, i32
  }
  func.func @transform_10(%arg0: i32, %arg1: memref<2x8xi32, #tpu.memory_space<smem>>) -> (i32, i32, i32) {
    %c0_i32 = arith.constant 0 : i32
    %c0_i32_0 = arith.constant 0 : i32
    %c0_i32_1 = arith.constant 0 : i32
    return %arg0, %c0_i32, %c0_i32_0 : i32, i32, i32
  }
}

</mosaic_0001>

<llo_original>
// kernel: gpt_wrapper_forward.1
$region0: #{gpt_wrapper_forward.1}
  #allocation0 [shape = 'u32[]', space=smem, size = 0x4, offset = 0x4, fixed_abs, tag = 'smem constant byte address 0x4 - core index']
  #allocation1 [shape = 'u32[144,128]{1,0:T(1,128)}', space=vmem, size = 0x12000, scoped, tag = 'internal scratch']
  #allocation2 [shape = 's32[1]{0}', space=sflag, size = 0x4, scoped, tag = 'scoped memory for gpt_wrapper_forward.1']
  #allocation3 [shape = 'u8[1024]{0}', space=smem, size = 0x400, scoped, tag = 'prefetched SMEM operand 0']
  %s0 = inlined_call_operand.vmem [shape: s32[2,8], index: 0, kind: input, shape index: {}]
  %s1 = inlined_call_operand.vmem [shape: bf16[256,32], index: 1, kind: input, shape index: {}]
  %s2 = inlined_call_operand.vmem [shape: f32[64,32], index: 2, kind: input, shape index: {}]
  %s3 = inlined_call_operand.vmem [shape: bf16[2,8,32,8], index: 3, kind: input, shape index: {}]
  %s4 = inlined_call_operand.vmem [shape: bf16[2,4,8,32], index: 4, kind: input, shape index: {}]
  %s5 = inlined_call_operand.vmem [shape: bf16[2,4,8,32], index: 5, kind: input, shape index: {}]
  %s6 = inlined_call_operand.vmem [shape: bf16[2,32,128], index: 6, kind: input, shape index: {}]
  %s7 = inlined_call_operand.vmem [shape: bf16[2,128,32], index: 7, kind: input, shape index: {}]
  %s8 = inlined_call_operand.vmem [shape: f32[2,6,32], index: 8, kind: input, shape index: {}]
  %s9 = inlined_call_operand.vmem [shape: f32[2,1,128], index: 9, kind: input, shape index: {}]
  %s10 = inlined_call_operand.vmem [shape: f32[2,32], index: 10, kind: input, shape index: {}]
  %s11 = inlined_call_operand.vmem [shape: s32[2,8,128], index: 11, kind: output, shape index: {}]
  %s12 = sld [smem:[#allocation0]]
  $region73: #{gpt_wrapper_forward.1} parent=0
    _
  %s14 = ssub.s32 1, %s12
  %s15 = scalar_select 0, %s14, %s12
  %s16 = sshll.u32 %s0, 4
  %s17 = int_to_ptr.vmem [resolvable:$true] %s16
  %19 = dma.vmem_to_smem %s17, 32, [#allocation3], [#allocation2]
  %20 = dma.done [#allocation2], 32
  %21 = sfence
  loop: start=0, step=1, limit=4
  $region2: #{gpt_wrapper_forward.1} parent=0 // loop_pre_header
    _
  $region3: #{gpt_wrapper_forward.1} parent=0 // loop_header
    %s23 = sphi 0, %s27
    %p24 = scmp.ge.s32.totalorder %s23, 4
    %s31 = sphi 0, %s31
    %s33 = sphi 0, %s31
    %s34 = sphi 0, %s33
    %s48 = sphi 0, %s34
    %s52 = sphi 0, %s52
    %s54 = sphi 0, %s52
    %s55 = sphi 0, %s54
    %s69 = sphi 0, %s55
    %s73 = sphi 0, %s73
    %s75 = sphi 0, %s73
    %s76 = sphi 0, %s75
    %s90 = sphi 0, %s76
    %s94 = sphi 0, %s94
    %s96 = sphi 0, %s94
    %s97 = sphi 0, %s96
    %s111 = sphi 0, %s97
    %s115 = sphi 0, %s115
    %s117 = sphi 0, %s115
    %s118 = sphi 0, %s117
    %s132 = sphi 0, %s118
    %s136 = sphi 0, %s136
    %s138 = sphi 0, %s136
    %s139 = sphi 0, %s138
    %s153 = sphi 0, %s139
    %s157 = sphi 0, %s157
    %s159 = sphi 0, %s157
    %s160 = sphi 0, %s159
    %s174 = sphi 0, %s160
    %s178 = sphi 0, %s178
    %s180 = sphi 0, %s178
    %s181 = sphi 0, %s180
    %s195 = sphi 0, %s181
    %s199 = sphi 0, %s199
    %s201 = sphi 0, %s199
    %s202 = sphi 0, %s201
    %s216 = sphi 0, %s202
    %s220 = sphi 0, %s220
    %s222 = sphi 0, %s220
    %s223 = sphi 0, %s222
    %s237 = sphi 0, %s223
    %s243 = sphi 0, %s245
    %s246 = sphi 0, %s243
    %s247 = sphi 0, %s246
    %s263 = sphi 0, %s247
  $region4: #{gpt_wrapper_forward.1} parent=0 // loop_header_branch
    %26 = sbr.rel (%p24) target = $region8
  $region5: #{gpt_wrapper_forward.1} parent=0 // loop_body
    %s28 = ssub.s32 %s23, 1
    %s29 = ssub.s32 %s23, 2
    %s30 = sadd.s32 %s23, 1
    %s32 = sadd.s32 %s31, 1
    %p35 = scmp.eq.s32.totalorder %s23, 1
    %p36 = scmp.ne.s32.totalorder %s31, %s33
    %p37 = scmp.eq.s32.totalorder %s23, 0
    %p38 = por %p36, %p37
    %p39 = scmp.ne.s32.totalorder %s31, %s33
    %p40 = scmp.eq.s32.totalorder %s28, 1
    %p41 = por %p39, %p40
    %p42 = scmp.ne.s32.totalorder %s33, %s34
    %p43 = scmp.eq.s32.totalorder %s28, 0
    %p44 = por %p42, %p43
    %p45 = scmp.ne.s32.totalorder %s33, %s34
    %p46 = scmp.eq.s32.totalorder %s29, 1
    %p47 = por %p45, %p46
    %p49 = scmp.ne.s32.totalorder %s34, %s48
    %p50 = scmp.eq.s32.totalorder %s29, 0
    %p51 = por %p49, %p50
    %s53 = sadd.s32 %s52, 1
    %p56 = scmp.eq.s32.totalorder %s23, 1
    %p57 = scmp.ne.s32.totalorder %s52, %s54
    %p58 = scmp.eq.s32.totalorder %s23, 0
    %p59 = por %p57, %p58
    %p60 = scmp.ne.s32.totalorder %s52, %s54
    %p61 = scmp.eq.s32.totalorder %s28, 1
    %p62 = por %p60, %p61
    %p63 = scmp.ne.s32.totalorder %s54, %s55
    %p64 = scmp.eq.s32.totalorder %s28, 0
    %p65 = por %p63, %p64
    %p66 = scmp.ne.s32.totalorder %s54, %s55
    %p67 = scmp.eq.s32.totalorder %s29, 1
    %p68 = por %p66, %p67
    %p70 = scmp.ne.s32.totalorder %s55, %s69
    %p71 = scmp.eq.s32.totalorder %s29, 0
    %p72 = por %p70, %p71
    %s74 = sadd.s32 %s73, 1
    %p77 = scmp.eq.s32.totalorder %s23, 1
    %p78 = scmp.ne.s32.totalorder %s73, %s75
    %p79 = scmp.eq.s32.totalorder %s23, 0
    %p80 = por %p78, %p79
    %p81 = scmp.ne.s32.totalorder %s73, %s75
    %p82 = scmp.eq.s32.totalorder %s28, 1
    %p83 = por %p81, %p82
    %p84 = scmp.ne.s32.totalorder %s75, %s76
    %p85 = scmp.eq.s32.totalorder %s28, 0
    %p86 = por %p84, %p85
    %p87 = scmp.ne.s32.totalorder %s75, %s76
    %p88 = scmp.eq.s32.totalorder %s29, 1
    %p89 = por %p87, %p88
    %p91 = scmp.ne.s32.totalorder %s76, %s90
    %p92 = scmp.eq.s32.totalorder %s29, 0
    %p93 = por %p91, %p92
    %s95 = sadd.s32 %s94, 1
    %p98 = scmp.eq.s32.totalorder %s23, 1
    %p99 = scmp.ne.s32.totalorder %s94, %s96
    %p100 = scmp.eq.s32.totalorder %s23, 0
    %p101 = por %p99, %p100
    %p102 = scmp.ne.s32.totalorder %s94, %s96
    %p103 = scmp.eq.s32.totalorder %s28, 1
    %p104 = por %p102, %p103
    %p105 = scmp.ne.s32.totalorder %s96, %s97
    %p106 = scmp.eq.s32.totalorder %s28, 0
    %p107 = por %p105, %p106
    %p108 = scmp.ne.s32.totalorder %s96, %s97
    %p109 = scmp.eq.s32.totalorder %s29, 1
    %p110 = por %p108, %p109
    %p112 = scmp.ne.s32.totalorder %s97, %s111
    %p113 = scmp.eq.s32.totalorder %s29, 0
    %p114 = por %p112, %p113
    %s116 = sadd.s32 %s115, 1
    %p119 = scmp.eq.s32.totalorder %s23, 1
    %p120 = scmp.ne.s32.totalorder %s115, %s117
    %p121 = scmp.eq.s32.totalorder %s23, 0
    %p122 = por %p120, %p121
    %p123 = scmp.ne.s32.totalorder %s115, %s117
    %p124 = scmp.eq.s32.totalorder %s28, 1
    %p125 = por %p123, %p124
    %p126 = scmp.ne.s32.totalorder %s117, %s118
    %p127 = scmp.eq.s32.totalorder %s28, 0
    %p128 = por %p126, %p127
    %p129 = scmp.ne.s32.totalorder %s117, %s118
    %p130 = scmp.eq.s32.totalorder %s29, 1
    %p131 = por %p129, %p130
    %p133 = scmp.ne.s32.totalorder %s118, %s132
    %p134 = scmp.eq.s32.totalorder %s29, 0
    %p135 = por %p133, %p134
    %s137 = sadd.s32 %s136, 1
    %p140 = scmp.eq.s32.totalorder %s23, 1
    %p141 = scmp.ne.s32.totalorder %s136, %s138
    %p142 = scmp.eq.s32.totalorder %s23, 0
    %p143 = por %p141, %p142
    %p144 = scmp.ne.s32.totalorder %s136, %s138
    %p145 = scmp.eq.s32.totalorder %s28, 1
    %p146 = por %p144, %p145
    %p147 = scmp.ne.s32.totalorder %s138, %s139
    %p148 = scmp.eq.s32.totalorder %s28, 0
    %p149 = por %p147, %p148
    %p150 = scmp.ne.s32.totalorder %s138, %s139
    %p151 = scmp.eq.s32.totalorder %s29, 1
    %p152 = por %p150, %p151
    %p154 = scmp.ne.s32.totalorder %s139, %s153
    %p155 = scmp.eq.s32.totalorder %s29, 0
    %p156 = por %p154, %p155
    %s158 = sadd.s32 %s157, 1
    %p161 = scmp.eq.s32.totalorder %s23, 1
    %p162 = scmp.ne.s32.totalorder %s157, %s159
    %p163 = scmp.eq.s32.totalorder %s23, 0
    %p164 = por %p162, %p163
    %p165 = scmp.ne.s32.totalorder %s157, %s159
    %p166 = scmp.eq.s32.totalorder %s28, 1
    %p167 = por %p165, %p166
    %p168 = scmp.ne.s32.totalorder %s159, %s160
    %p169 = scmp.eq.s32.totalorder %s28, 0
    %p170 = por %p168, %p169
    %p171 = scmp.ne.s32.totalorder %s159, %s160
    %p172 = scmp.eq.s32.totalorder %s29, 1
    %p173 = por %p171, %p172
    %p175 = scmp.ne.s32.totalorder %s160, %s174
    %p176 = scmp.eq.s32.totalorder %s29, 0
    %p177 = por %p175, %p176
    %s179 = sadd.s32 %s178, 1
    %p182 = scmp.eq.s32.totalorder %s23, 1
    %p183 = scmp.ne.s32.totalorder %s178, %s180
    %p184 = scmp.eq.s32.totalorder %s23, 0
    %p185 = por %p183, %p184
    %p186 = scmp.ne.s32.totalorder %s178, %s180
    %p187 = scmp.eq.s32.totalorder %s28, 1
    %p188 = por %p186, %p187
    %p189 = scmp.ne.s32.totalorder %s180, %s181
    %p190 = scmp.eq.s32.totalorder %s28, 0
    %p191 = por %p189, %p190
    %p192 = scmp.ne.s32.totalorder %s180, %s181
    %p193 = scmp.eq.s32.totalorder %s29, 1
    %p194 = por %p192, %p193
    %p196 = scmp.ne.s32.totalorder %s181, %s195
    %p197 = scmp.eq.s32.totalorder %s29, 0
    %p198 = por %p196, %p197
    %s200 = sadd.s32 %s199, 1
    %p203 = scmp.eq.s32.totalorder %s23, 1
    %p204 = scmp.ne.s32.totalorder %s199, %s201
    %p205 = scmp.eq.s32.totalorder %s23, 0
    %p206 = por %p204, %p205
    %p207 = scmp.ne.s32.totalorder %s199, %s201
    %p208 = scmp.eq.s32.totalorder %s28, 1
    %p209 = por %p207, %p208
    %p210 = scmp.ne.s32.totalorder %s201, %s202
    %p211 = scmp.eq.s32.totalorder %s28, 0
    %p212 = por %p210, %p211
    %p213 = scmp.ne.s32.totalorder %s201, %s202
    %p214 = scmp.eq.s32.totalorder %s29, 1
    %p215 = por %p213, %p214
    %p217 = scmp.ne.s32.totalorder %s202, %s216
    %p218 = scmp.eq.s32.totalorder %s29, 0
    %p219 = por %p217, %p218
    %s221 = sadd.s32 %s220, 1
    %p224 = scmp.eq.s32.totalorder %s23, 1
    %p225 = scmp.ne.s32.totalorder %s220, %s222
    %p226 = scmp.eq.s32.totalorder %s23, 0
    %p227 = por %p225, %p226
    %p228 = scmp.ne.s32.totalorder %s220, %s222
    %p229 = scmp.eq.s32.totalorder %s28, 1
    %p230 = por %p228, %p229
    %p231 = scmp.ne.s32.totalorder %s222, %s223
    %p232 = scmp.eq.s32.totalorder %s28, 0
    %p233 = por %p231, %p232
    %p234 = scmp.ne.s32.totalorder %s222, %s223
    %p235 = scmp.eq.s32.totalorder %s29, 1
    %p236 = por %p234, %p235
    %p238 = scmp.ne.s32.totalorder %s223, %s237
    %p239 = scmp.eq.s32.totalorder %s29, 0
    %p240 = por %p238, %p239
    %s241 = ssub.s32 %s23, %s30
    %p242 = scmp.eq.s32.totalorder %s241, 0
    %s244 = sadd.s32 %s243, 1
    %s245 = scalar_select %p242, %s243, %s244
    %p248 = pneg %p242
    %p249 = scmp.eq.s32.totalorder %s23, 1
    %p250 = por %p248, %p249
    %p251 = scmp.ne.s32.totalorder %s243, %s246
    %p252 = scmp.eq.s32.totalorder %s23, 0
    %p253 = por %p251, %p252
    %p254 = scmp.ne.s32.totalorder %s243, %s246
    %p255 = scmp.eq.s32.totalorder %s28, 1
    %p256 = por %p254, %p255
    %p257 = scmp.ne.s32.totalorder %s246, %s247
    %p258 = scmp.eq.s32.totalorder %s28, 0
    %p259 = por %p257, %p258
    %p260 = scmp.ne.s32.totalorder %s246, %s247
    %p261 = scmp.eq.s32.totalorder %s29, 1
    %p262 = por %p260, %p261
    %p264 = scmp.ne.s32.totalorder %s247, %s263
    %p265 = scmp.eq.s32.totalorder %s29, 0
    %p266 = por %p264, %p265
    %p267 = scmp.le.s32.totalorder 1, %s23
    %p268 = scmp.lt.s32.totalorder %s23, 3
    %p269 = pnand %p267, %p268
    %p270 = pneg %p269
    // Predicated region
    $region9: #{gpt_wrapper_forward.1} parent=5 // pred_check
      _
    $region10: #{gpt_wrapper_forward.1} parent=5 // pred_check_branch
      %272 = sbr.rel (%p269) target = $region12
    $region11: #{gpt_wrapper_forward.1} parent=5 // pred_region
      %s273 = ssub.s32 %s23, 1
      // Predicated region
      $region13: #{gpt_wrapper_forward.1} parent=11 // pred_check
        %p274 = pneg %p44
      $region14: #{gpt_wrapper_forward.1} parent=11 // pred_check_branch
        %276 = sbr.rel (%p274) target = $region16
      $region15: #{gpt_wrapper_forward.1} parent=11 // pred_region
        _
      $region16: #{gpt_wrapper_forward.1} parent=11 // pred_fallthru
        _
      // Predicated region
      $region17: #{gpt_wrapper_forward.1} parent=11 // pred_check
        %p277 = pneg %p65
      $region18: #{gpt_wrapper_forward.1} parent=11 // pred_check_branch
        %279 = sbr.rel (%p277) target = $region20
      $region19: #{gpt_wrapper_forward.1} parent=11 // pred_region
        _
      $region20: #{gpt_wrapper_forward.1} parent=11 // pred_fallthru
        _
      // Predicated region
      $region21: #{gpt_wrapper_forward.1} parent=11 // pred_check
        %p280 = pneg %p86
      $region22: #{gpt_wrapper_forward.1} parent=11 // pred_check_branch
        %282 = sbr.rel (%p280) target = $region24
      $region23: #{gpt_wrapper_forward.1} parent=11 // pred_region
        _
      $region24: #{gpt_wrapper_forward.1} parent=11 // pred_fallthru
        _
      // Predicated region
      $region25: #{gpt_wrapper_forward.1} parent=11 // pred_check
        %p283 = pneg %p107
      $region26: #{gpt_wrapper_forward.1} parent=11 // pred_check_branch
        %285 = sbr.rel (%p283) target = $region28
      $region27: #{gpt_wrapper_forward.1} parent=11 // pred_region
        _
      $region28: #{gpt_wrapper_forward.1} parent=11 // pred_fallthru
        _
      // Predicated region
      $region29: #{gpt_wrapper_forward.1} parent=11 // pred_check
        %p286 = pneg %p128
      $region30: #{gpt_wrapper_forward.1} parent=11 // pred_check_branch
        %288 = sbr.rel (%p286) target = $region32
      $region31: #{gpt_wrapper_forward.1} parent=11 // pred_region
        _
      $region32: #{gpt_wrapper_forward.1} parent=11 // pred_fallthru
        _
      // Predicated region
      $region33: #{gpt_wrapper_forward.1} parent=11 // pred_check
        %p289 = pneg %p149
      $region34: #{gpt_wrapper_forward.1} parent=11 // pred_check_branch
        %291 = sbr.rel (%p289) target = $region36
      $region35: #{gpt_wrapper_forward.1} parent=11 // pred_region
        _
      $region36: #{gpt_wrapper_forward.1} parent=11 // pred_fallthru
        _
      // Predicated region
      $region37: #{gpt_wrapper_forward.1} parent=11 // pred_check
        %p292 = pneg %p170
      $region38: #{gpt_wrapper_forward.1} parent=11 // pred_check_branch
        %294 = sbr.rel (%p292) target = $region40
      $region39: #{gpt_wrapper_forward.1} parent=11 // pred_region
        _
      $region40: #{gpt_wrapper_forward.1} parent=11 // pred_fallthru
        _
      // Predicated region
      $region41: #{gpt_wrapper_forward.1} parent=11 // pred_check
        %p295 = pneg %p191
      $region42: #{gpt_wrapper_forward.1} parent=11 // pred_check_branch
        %297 = sbr.rel (%p295) target = $region44
      $region43: #{gpt_wrapper_forward.1} parent=11 // pred_region
        _
      $region44: #{gpt_wrapper_forward.1} parent=11 // pred_fallthru
        _
      // Predicated region
      $region45: #{gpt_wrapper_forward.1} parent=11 // pred_check
        %p298 = pneg %p212
      $region46: #{gpt_wrapper_forward.1} parent=11 // pred_check_branch
        %300 = sbr.rel (%p298) target = $region48
      $region47: #{gpt_wrapper_forward.1} parent=11 // pred_region
        _
      $region48: #{gpt_wrapper_forward.1} parent=11 // pred_fallthru
        _
      // Predicated region
      $region49: #{gpt_wrapper_forward.1} parent=11 // pred_check
        %p301 = pneg %p233
      $region50: #{gpt_wrapper_forward.1} parent=11 // pred_check_branch
        %303 = sbr.rel (%p301) target = $region52
      $region51: #{gpt_wrapper_forward.1} parent=11 // pred_region
        _
      $region52: #{gpt_wrapper_forward.1} parent=11 // pred_fallthru
        _
    $region12: #{gpt_wrapper_forward.1} parent=5 // pred_fallthru
      _
    %p304 = scmp.lt.s32.totalorder %s23, 2
    // Predicated region
    $region53: #{gpt_wrapper_forward.1} parent=5 // pred_check
      %p305 = pneg %p304
    $region54: #{gpt_wrapper_forward.1} parent=5 // pred_check_branch
      %307 = sbr.rel (%p305) target = $region56
    $region55: #{gpt_wrapper_forward.1} parent=5 // pred_region
      _
    $region56: #{gpt_wrapper_forward.1} parent=5 // pred_fallthru
      _
    %p308 = scmp.le.s32.totalorder 1, %s23
    %p309 = scmp.lt.s32.totalorder %s23, 3
    %p310 = pnand %p308, %p309
    %p311 = pneg %p310
    // Predicated region
    $region57: #{gpt_wrapper_forward.1} parent=5 // pred_check
      _
    $region58: #{gpt_wrapper_forward.1} parent=5 // pred_check_branch
      %313 = sbr.rel (%p310) target = $region60
    $region59: #{gpt_wrapper_forward.1} parent=5 // pred_region
      %s314 = ssub.s32 %s23, 1
      %p315 = pneg %p44
      %p316 = pneg %p41
      %p317 = pneg %p65
      %p318 = pneg %p62
      %p319 = pneg %p86
      %p320 = pneg %p83
      %p321 = pneg %p107
      %p322 = pneg %p104
      %p323 = pneg %p128
      %p324 = pneg %p125
      %p325 = pneg %p149
      %p326 = pneg %p146
      %p327 = pneg %p170
      %p328 = pneg %p167
      %p329 = pneg %p191
      %p330 = pneg %p188
      %p331 = pneg %p212
      %p332 = pneg %p209
      %p333 = pneg %p233
      %p334 = pneg %p230
      %p335 = pneg %p259
      %p336 = pneg %p256
      %p337 = scmp.lt.s32.totalorder %s28, 1
      %s338 = scalar_select %p337, %s28, 1
      %s339 = smul.addr %s338, 8
      %s340 = scalar_lea.vmem %s11, %s339
      %p341 = scmp.lt.s32.totalorder %s28, 1
      %s342 = scalar_select %p341, %s28, 1
      %s343 = smul.addr %s342, 8
      %s344 = scalar_lea.vmem %s11, %s343
      %v346 = vlaneseq
      %v347 = vshrl.u32 %v346, 7
      %vm348 = vcmp.eq.s32.totalorder %v347, 0
      %s349 = smul.u32 %s28, 128
      %s350 = sld [smem:[#allocation3 + %s349]]
      %v351 = vstv %s350
      %v352 = vsel %vm348, %v351, 0
      %vm353 = vcmp.eq.s32.totalorder %v347, 1
      %s354 = sadd.s32 %s349, 1
      %s355 = sld [smem:[#allocation3 + %s354]]
      %v356 = vstv %s355
      %v357 = vsel %vm353, %v356, %v352
      %vm358 = vcmp.eq.s32.totalorder %v347, 2
      %s359 = sadd.s32 %s349, 2
      %s360 = sld [smem:[#allocation3 + %s359]]
      %v361 = vstv %s360
      %v362 = vsel %vm358, %v361, %v357
      %vm363 = vcmp.eq.s32.totalorder %v347, 3
      %s364 = sadd.s32 %s349, 3
      %s365 = sld [smem:[#allocation3 + %s364]]
      %v366 = vstv %s365
      %v367 = vsel %vm363, %v366, %v362
      %vm368 = vcmp.eq.s32.totalorder %v347, 4
      %s369 = sadd.s32 %s349, 4
      %s370 = sld [smem:[#allocation3 + %s369]]
      %v371 = vstv %s370
      %v372 = vsel %vm368, %v371, %v367
      %vm373 = vcmp.eq.s32.totalorder %v347, 5
      %s374 = sadd.s32 %s349, 5
      %s375 = sld [smem:[#allocation3 + %s374]]
      %v376 = vstv %s375
      %v377 = vsel %vm373, %v376, %v372
      %vm378 = vcmp.eq.s32.totalorder %v347, 6
      %s379 = sadd.s32 %s349, 6
      %s380 = sld [smem:[#allocation3 + %s379]]
      %v381 = vstv %s380
      %v382 = vsel %vm378, %v381, %v377
      %vm383 = vcmp.eq.s32.totalorder %v347, 7
      %s384 = sadd.s32 %s349, 7
      %s385 = sld [smem:[#allocation3 + %s384]]
      %v386 = vstv %s385
      %v387 = vsel %vm383, %v386, %v382
      %v388 = vlaneseq
      %v389 = vand.u32 %v388, 127
      %v390 = vadd.s32 %v389, 128
      %vm391 = vcmp.eq.s32.totalorder %v389, %v387
      %vm392 = vcmp.eq.s32.totalorder %v390, %v387
      %v393 = vsel %vm391, 1, 0
      %v394 = vsel %vm392, 1, 0
      %v395 = vcvt.s32.f32 %v393
      %v396 = vcvt.s32.f32 %v394
      %v397 = vpack.c.bf16 %v395, %v395
      %v398 = vpack.c.bf16 %v396, %v396
      %v399 = vld [vmem:[%s1] sm:$0xf]
      %v400 = vld [vmem:[%s1 + $0x4] sm:$0xf]
      %v401 = vld [vmem:[%s1 + $0x8] sm:$0xf]
      %v402 = vld [vmem:[%s1 + $0xc] sm:$0xf]
      %v403 = vld [vmem:[%s1 + $0x10] sm:$0xf]
      %v404 = vld [vmem:[%s1 + $0x14] sm:$0xf]
      %v405 = vld [vmem:[%s1 + $0x18] sm:$0xf]
      %v406 = vld [vmem:[%s1 + $0x1c] sm:$0xf]
      %v407 = vld [vmem:[%s1 + $0x20] sm:$0xf]
      %v408 = vld [vmem:[%s1 + $0x24] sm:$0xf]
      %v409 = vld [vmem:[%s1 + $0x28] sm:$0xf]
      %v410 = vld [vmem:[%s1 + $0x2c] sm:$0xf]
      %v411 = vld [vmem:[%s1 + $0x30] sm:$0xf]
      %v412 = vld [vmem:[%s1 + $0x34] sm:$0xf]
      %v413 = vld [vmem:[%s1 + $0x38] sm:$0xf]
      %v414 = vld [vmem:[%s1 + $0x3c] sm:$0xf]
      %v415 = vld [vmem:[%s1 + $0x40] sm:$0xf]
      %v416 = vld [vmem:[%s1 + $0x44] sm:$0xf]
      %v417 = vld [vmem:[%s1 + $0x48] sm:$0xf]
      %v418 = vld [vmem:[%s1 + $0x4c] sm:$0xf]
      %v419 = vld [vmem:[%s1 + $0x50] sm:$0xf]
      %v420 = vld [vmem:[%s1 + $0x54] sm:$0xf]
      %v421 = vld [vmem:[%s1 + $0x58] sm:$0xf]
      %v422 = vld [vmem:[%s1 + $0x5c] sm:$0xf]
      %v423 = vld [vmem:[%s1 + $0x60] sm:$0xf]
      %v424 = vld [vmem:[%s1 + $0x64] sm:$0xf]
      %v425 = vld [vmem:[%s1 + $0x68] sm:$0xf]
      %v426 = vld [vmem:[%s1 + $0x6c] sm:$0xf]
      %v427 = vld [vmem:[%s1 + $0x70] sm:$0xf]
      %v428 = vld [vmem:[%s1 + $0x74] sm:$0xf]
      %v429 = vld [vmem:[%s1 + $0x78] sm:$0xf]
      %v430 = vld [vmem:[%s1 + $0x7c] sm:$0xf]
      %v431 = vld [vmem:[%s2] sm:$0xff]
      %v464 = vunpack.c.l.b16 %v399
      %v465 = vunpack.c.l.b16 %v400
      %v466 = vunpack.c.l.b16 %v401
      %v467 = vunpack.c.l.b16 %v402
      %v468 = vunpack.c.l.b16 %v403
      %v469 = vunpack.c.l.b16 %v404
      %v470 = vunpack.c.l.b16 %v405
      %v471 = vunpack.c.l.b16 %v406
      %v472 = vunpack.c.l.b16 %v407
      %v473 = vunpack.c.l.b16 %v408
      %v474 = vunpack.c.l.b16 %v409
      %v475 = vunpack.c.l.b16 %v410
      %v476 = vunpack.c.l.b16 %v411
      %v477 = vunpack.c.l.b16 %v412
      %v478 = vunpack.c.l.b16 %v413
      %v479 = vunpack.c.l.b16 %v414
      %v480 = vunpack.c.l.b16 %v415
      %v481 = vunpack.c.l.b16 %v416
      %v482 = vunpack.c.l.b16 %v417
      %v483 = vunpack.c.l.b16 %v418
      %v484 = vunpack.c.l.b16 %v419
      %v485 = vunpack.c.l.b16 %v420
      %v486 = vunpack.c.l.b16 %v421
      %v487 = vunpack.c.l.b16 %v422
      %v488 = vunpack.c.l.b16 %v423
      %v489 = vunpack.c.l.b16 %v424
      %v490 = vunpack.c.l.b16 %v425
      %v491 = vunpack.c.l.b16 %v426
      %v492 = vunpack.c.l.b16 %v427
      %v493 = vunpack.c.l.b16 %v428
      %v494 = vunpack.c.l.b16 %v429
      %v495 = vunpack.c.l.b16 %v430
      %v496 = vpack.c.b16 %v465, %v464
      %v497 = vpack.c.b16 %v467, %v466
      %v498 = vpack.c.b16 %v469, %v468
      %v499 = vpack.c.b16 %v471, %v470
      %v500 = vpack.c.b16 %v473, %v472
      %v501 = vpack.c.b16 %v475, %v474
      %v502 = vpack.c.b16 %v477, %v476
      %v503 = vpack.c.b16 %v479, %v478
      %v504 = vpack.c.b16 %v481, %v480
      %v505 = vpack.c.b16 %v483, %v482
      %v506 = vpack.c.b16 %v485, %v484
      %v507 = vpack.c.b16 %v487, %v486
      %v508 = vpack.c.b16 %v489, %v488
      %v509 = vpack.c.b16 %v491, %v490
      %v510 = vpack.c.b16 %v493, %v492
      %v511 = vpack.c.b16 %v495, %v494
      %528 = vmatprep.subr.bf16.mxu0 0
      %529 = vmatpush1.bf16.msra.mxu0 %v503
      %530 = vmatprep.subr.bf16.mxu0 0
      %531 = vmatpush1.bf16.msra.mxu0 %v502
      %532 = vmatprep.subr.bf16.mxu0 0
      %533 = vmatpush1.bf16.msra.mxu0 %v501
      %534 = vmatprep.subr.bf16.mxu0 0
      %535 = vmatpush1.bf16.msra.mxu0 %v500
      %536 = vmatprep.subr.bf16.mxu0 0
      %537 = vmatpush1.bf16.msra.mxu0 %v499
      %538 = vmatprep.subr.bf16.mxu0 0
      %539 = vmatpush1.bf16.msra.mxu0 %v498
      %540 = vmatprep.subr.bf16.mxu0 0
      %541 = vmatpush1.bf16.msra.mxu0 %v497
      %542 = vmatprep.subr.bf16.mxu0 0
      %543 = vmatpush1.bf16.msra.mxu0 %v496
      %544 = vmatprep.subr.bf16.mxu0 0
      %545 = vmatpush2.bf16.msra.mxu0 %v511
      %546 = vmatprep.subr.bf16.mxu0 0
      %547 = vmatpush2.bf16.msra.mxu0 %v510
      %548 = vmatprep.subr.bf16.mxu0 0
      %549 = vmatpush2.bf16.msra.mxu0 %v509
      %550 = vmatprep.subr.bf16.mxu0 0
      %551 = vmatpush2.bf16.msra.mxu0 %v508
      %552 = vmatprep.subr.bf16.mxu0 0
      %553 = vmatpush2.bf16.msra.mxu0 %v507
      %554 = vmatprep.subr.bf16.mxu0 0
      %555 = vmatpush2.bf16.msra.mxu0 %v506
      %556 = vmatprep.subr.bf16.mxu0 0
      %557 = vmatpush2.bf16.msra.mxu0 %v505
      %558 = vmatprep.subr.bf16.mxu0 0
      %559 = vmatpush2.bf16.msra.mxu0 %v504
      %560 = vmatprep.mubr.bf16.mxu0 %v398
      %561 = vmatmul.mubr.bf16.gmra.mxu0 %v397
      %v562 = vpop.f32.mrf.mxu0
      %v563 = vadd.f32 %v431, %v562
      %v564 = vpop.f32.mrf.mxu0
      %v565 = vpop.f32.mrf.mxu0
      %v566 = vpop.f32.mrf.mxu0
      %567 = vdwg.mxu0
      %vm568 = vcmp.ge.s32.totalorder %v347, %v389
      %v569 = vsel %vm568, 0.0, -1e+30
      %v570 = vld [vmem:[%s8] sm:$0x3f]
      %vm571 = vcmask 261120
      %v572 = vsel %vm571, %v563, 0.0
      %573 = vadd.xlane.f32.xlu0 %v572
      %v574 = vpop.xlane.xlu0 %573
      %v575 = vrcp.pop 32.0
      %v576 = vmul.f32 %v574, %v575
      %v577 = vsub.f32 %v563, %v576
      %v578 = vmul.f32 %v577, %v577
      %v579 = vsel %vm571, %v578, 0.0
      %580 = vadd.xlane.f32.xlu0 %v579
      %v581 = vpop.xlane.xlu0 %580
      %v582 = vmul.f32 %v581, %v575
      %v583 = vadd.f32 %v582, 1e-05
      %v584 = vrsqrt.pop %v583
      %v585 = vmul.f32 %v577, %v584
      %v586 = vlaneseq
      %v587 = vshrl.u32 %v586, 7
      %v588 = vsub.s32 0, %v587
      %v589 = vrot.slane %v570, %v588
      %v590 = vmul.f32 %v585, %v589
      %v591 = vlaneseq
      %v592 = vshrl.u32 %v591, 7
      %v593 = vsub.s32 1, %v592
      %v594 = vrot.slane %v570, %v593
      %v595 = vadd.f32 %v590, %v594
      %v596 = vpack.c.bf16 %v595, %v595
      %597 = vxpose.xlu0.b32.start [1/16] %v595, 128
      %598 = vxpose.xlu0.b32.cont [2/16] 0.0, 128
      %599 = vxpose.xlu0.b32.cont [3/16] 0.0, 128
      %600 = vxpose.xlu0.b32.cont [4/16] 0.0, 128
      %601 = vxpose.xlu0.b32.cont [5/16] 0.0, 128
      %602 = vxpose.xlu0.b32.cont [6/16] 0.0, 128
      %603 = vxpose.xlu0.b32.cont [7/16] 0.0, 128
      %604 = vxpose.xlu0.b32.cont [8/16] 0.0, 128
      %605 = vxpose.xlu0.b32.cont [9/16] 0.0, 128
      %606 = vxpose.xlu0.b32.cont [10/16] 0.0, 128
      %607 = vxpose.xlu0.b32.cont [11/16] 0.0, 128
      %608 = vxpose.xlu0.b32.cont [12/16] 0.0, 128
      %609 = vxpose.xlu0.b32.cont [13/16] 0.0, 128
      %610 = vxpose.xlu0.b32.cont [14/16] 0.0, 128
      %611 = vxpose.xlu0.b32.cont [15/16] 0.0, 128
      %612 = vxpose.xlu0.b32.end [16/16] 0.0, 128
      %v613 = vpop.trf.xlu0
      %v614 = vpop.trf.xlu0
      %v615 = vpop.trf.xlu0
      %v616 = vpop.trf.xlu0
      %v617 = vpop.trf.xlu0
      %v618 = vpop.trf.xlu0
      %v619 = vpop.trf.xlu0
      %v620 = vpop.trf.xlu0
      %v621 = vpop.trf.xlu0
      %v622 = vpop.trf.xlu0
      %v623 = vpop.trf.xlu0
      %v624 = vpop.trf.xlu0
      %v625 = vpop.trf.xlu0
      %v626 = vpop.trf.xlu0
      %v627 = vpop.trf.xlu0
      %v628 = vpop.trf.xlu0
      %v629 = vpack.c.bf16 %v614, %v613
      %v630 = vpack.c.bf16 %v616, %v615
      %v631 = vld [vmem:[%s3] sm:$0xf]
      %v632 = vld [vmem:[%s3 + $0x4] sm:$0xf]
      %v633 = vld [vmem:[%s3 + $0x8] sm:$0xf]
      %v634 = vld [vmem:[%s3 + $0xc] sm:$0xf]
      %v635 = vld [vmem:[%s3 + $0x10] sm:$0xf]
      %v636 = vld [vmem:[%s3 + $0x14] sm:$0xf]
      %v637 = vld [vmem:[%s3 + $0x18] sm:$0xf]
      %v638 = vld [vmem:[%s3 + $0x1c] sm:$0xf]
      %v639 = vld [vmem:[%s3 + $0x20] sm:$0xf]
      %v640 = vld [vmem:[%s3 + $0x24] sm:$0xf]
      %v641 = vld [vmem:[%s3 + $0x28] sm:$0xf]
      %v642 = vld [vmem:[%s3 + $0x2c] sm:$0xf]
      %v643 = vld [vmem:[%s3 + $0x30] sm:$0xf]
      %v644 = vld [vmem:[%s3 + $0x34] sm:$0xf]
      %v645 = vld [vmem:[%s3 + $0x38] sm:$0xf]
      %v646 = vld [vmem:[%s3 + $0x3c] sm:$0xf]
      %v647 = vld [vmem:[%s3 + $0x40] sm:$0xf]
      %v648 = vld [vmem:[%s3 + $0x44] sm:$0xf]
      %v649 = vld [vmem:[%s3 + $0x48] sm:$0xf]
      %v650 = vld [vmem:[%s3 + $0x4c] sm:$0xf]
      %v651 = vld [vmem:[%s3 + $0x50] sm:$0xf]
      %v652 = vld [vmem:[%s3 + $0x54] sm:$0xf]
      %v653 = vld [vmem:[%s3 + $0x58] sm:$0xf]
      %v654 = vld [vmem:[%s3 + $0x5c] sm:$0xf]
      %v655 = vld [vmem:[%s3 + $0x60] sm:$0xf]
      %v656 = vld [vmem:[%s3 + $0x64] sm:$0xf]
      %v657 = vld [vmem:[%s3 + $0x68] sm:$0xf]
      %v658 = vld [vmem:[%s3 + $0x6c] sm:$0xf]
      %v659 = vld [vmem:[%s3 + $0x70] sm:$0xf]
      %v660 = vld [vmem:[%s3 + $0x74] sm:$0xf]
      %v661 = vld [vmem:[%s3 + $0x78] sm:$0xf]
      %v662 = vld [vmem:[%s3 + $0x7c] sm:$0xf]
      %v667 = vunpack.c.l.b16 %v631
      %v668 = vunpack.c.l.b16 %v632
      %v669 = vunpack.c.l.b16 %v633
      %v670 = vunpack.c.l.b16 %v634
      %v671 = vpack.c.b16 %v668, %v667
      %v672 = vpack.c.b16 %v670, %v669
      %v676 = vsel %vm571, %v596, 0
      %678 = vmatprep.subr.bf16.mxu0 0
      %679 = vmatpush1.bf16.msra.mxu0 0
      %680 = vmatprep.subr.bf16.mxu0 0
      %681 = vmatpush1.bf16.msra.mxu0 0
      %682 = vmatprep.subr.bf16.mxu0 0
      %683 = vmatpush1.bf16.msra.mxu0 0
      %684 = vmatprep.subr.bf16.mxu0 0
      %685 = vmatpush1.bf16.msra.mxu0 0
      %686 = vmatprep.subr.bf16.mxu0 0
      %687 = vmatpush1.bf16.msra.mxu0 0
      %688 = vmatprep.subr.bf16.mxu0 0
      %689 = vmatpush1.bf16.msra.mxu0 0
      %690 = vmatprep.subr.bf16.mxu0 0
      %691 = vmatpush1.bf16.msra.mxu0 %v672
      %692 = vmatprep.subr.bf16.mxu0 0
      %693 = vmatpush1.bf16.msra.mxu0 %v671
      %694 = vmatprep.subr.bf16.mxu0 0
      %695 = vmatpush2.bf16.msra.mxu0 0
      %696 = vmatprep.subr.bf16.mxu0 0
      %697 = vmatpush2.bf16.msra.mxu0 0
      %698 = vmatprep.subr.bf16.mxu0 0
      %699 = vmatpush2.bf16.msra.mxu0 0
      %700 = vmatprep.subr.bf16.mxu0 0
      %701 = vmatpush2.bf16.msra.mxu0 0
      %702 = vmatprep.subr.bf16.mxu0 0
      %703 = vmatpush2.bf16.msra.mxu0 0
      %704 = vmatprep.subr.bf16.mxu0 0
      %705 = vmatpush2.bf16.msra.mxu0 0
      %706 = vmatprep.subr.bf16.mxu0 0
      %707 = vmatpush2.bf16.msra.mxu0 0
      %708 = vmatprep.subr.bf16.mxu0 0
      %709 = vmatpush2.bf16.msra.mxu0 0
      %710 = vmatprep.mubr.bf16.mxu0 0
      %711 = vmatmul.mubr.bf16.gmra.mxu0 %v676
      %v712 = vpop.f32.mrf.mxu0
      %v713 = vadd.f32 0.0, %v712
      %v714 = vpop.f32.mrf.mxu0
      %v715 = vpop.f32.mrf.mxu0
      %v716 = vpop.f32.mrf.mxu0
      %717 = vdwg.mxu0
      %v722 = vunpack.c.l.b16 %v635
      %v723 = vunpack.c.l.b16 %v636
      %v724 = vunpack.c.l.b16 %v637
      %v725 = vunpack.c.l.b16 %v638
      %v726 = vpack.c.b16 %v723, %v722
      %v727 = vpack.c.b16 %v725, %v724
      %730 = vmatprep.subr.bf16.mxu0 0
      %731 = vmatpush1.bf16.msra.mxu0 0
      %732 = vmatprep.subr.bf16.mxu0 0
      %733 = vmatpush1.bf16.msra.mxu0 0
      %734 = vmatprep.subr.bf16.mxu0 0
      %735 = vmatpush1.bf16.msra.mxu0 0
      %736 = vmatprep.subr.bf16.mxu0 0
      %737 = vmatpush1.bf16.msra.mxu0 0
      %738 = vmatprep.subr.bf16.mxu0 0
      %739 = vmatpush1.bf16.msra.mxu0 0
      %740 = vmatprep.subr.bf16.mxu0 0
      %741 = vmatpush1.bf16.msra.mxu0 0
      %742 = vmatprep.subr.bf16.mxu0 0
      %743 = vmatpush1.bf16.msra.mxu0 %v727
      %744 = vmatprep.subr.bf16.mxu0 0
      %745 = vmatpush1.bf16.msra.mxu0 %v726
      %746 = vmatprep.subr.bf16.mxu0 0
      %747 = vmatpush2.bf16.msra.mxu0 0
      %748 = vmatprep.subr.bf16.mxu0 0
      %749 = vmatpush2.bf16.msra.mxu0 0
      %750 = vmatprep.subr.bf16.mxu0 0
      %751 = vmatpush2.bf16.msra.mxu0 0
      %752 = vmatprep.subr.bf16.mxu0 0
      %753 = vmatpush2.bf16.msra.mxu0 0
      %754 = vmatprep.subr.bf16.mxu0 0
      %755 = vmatpush2.bf16.msra.mxu0 0
      %756 = vmatprep.subr.bf16.mxu0 0
      %757 = vmatpush2.bf16.msra.mxu0 0
      %758 = vmatprep.subr.bf16.mxu0 0
      %759 = vmatpush2.bf16.msra.mxu0 0
      %760 = vmatprep.subr.bf16.mxu0 0
      %761 = vmatpush2.bf16.msra.mxu0 0
      %762 = vmatprep.mubr.bf16.mxu0 0
      %763 = vmatmul.mubr.bf16.gmra.mxu0 %v676
      %v764 = vpop.f32.mrf.mxu0
      %v765 = vadd.f32 0.0, %v764
      %v766 = vpop.f32.mrf.mxu0
      %v767 = vpop.f32.mrf.mxu0
      %v768 = vpop.f32.mrf.mxu0
      %769 = vdwg.mxu0
      %v774 = vunpack.c.l.b16 %v639
      %v775 = vunpack.c.l.b16 %v640
      %v776 = vunpack.c.l.b16 %v641
      %v777 = vunpack.c.l.b16 %v642
      %v778 = vpack.c.b16 %v775, %v774
      %v779 = vpack.c.b16 %v777, %v776
      %782 = vmatprep.subr.bf16.mxu0 0
      %783 = vmatpush1.bf16.msra.mxu0 0
      %784 = vmatprep.subr.bf16.mxu0 0
      %785 = vmatpush1.bf16.msra.mxu0 0
      %786 = vmatprep.subr.bf16.mxu0 0
      %787 = vmatpush1.bf16.msra.mxu0 0
      %788 = vmatprep.subr.bf16.mxu0 0
      %789 = vmatpush1.bf16.msra.mxu0 0
      %790 = vmatprep.subr.bf16.mxu0 0
      %791 = vmatpush1.bf16.msra.mxu0 0
      %792 = vmatprep.subr.bf16.mxu0 0
      %793 = vmatpush1.bf16.msra.mxu0 0
      %794 = vmatprep.subr.bf16.mxu0 0
      %795 = vmatpush1.bf16.msra.mxu0 %v779
      %796 = vmatprep.subr.bf16.mxu0 0
      %797 = vmatpush1.bf16.msra.mxu0 %v778
      %798 = vmatprep.subr.bf16.mxu0 0
      %799 = vmatpush2.bf16.msra.mxu0 0
      %800 = vmatprep.subr.bf16.mxu0 0
      %801 = vmatpush2.bf16.msra.mxu0 0
      %802 = vmatprep.subr.bf16.mxu0 0
      %803 = vmatpush2.bf16.msra.mxu0 0
      %804 = vmatprep.subr.bf16.mxu0 0
      %805 = vmatpush2.bf16.msra.mxu0 0
      %806 = vmatprep.subr.bf16.mxu0 0
      %807 = vmatpush2.bf16.msra.mxu0 0
      %808 = vmatprep.subr.bf16.mxu0 0
      %809 = vmatpush2.bf16.msra.mxu0 0
      %810 = vmatprep.subr.bf16.mxu0 0
      %811 = vmatpush2.bf16.msra.mxu0 0
      %812 = vmatprep.subr.bf16.mxu0 0
      %813 = vmatpush2.bf16.msra.mxu0 0
      %814 = vmatprep.mubr.bf16.mxu0 0
      %815 = vmatmul.mubr.bf16.gmra.mxu0 %v676
      %v816 = vpop.f32.mrf.mxu0
      %v817 = vadd.f32 0.0, %v816
      %v818 = vpop.f32.mrf.mxu0
      %v819 = vpop.f32.mrf.mxu0
      %v820 = vpop.f32.mrf.mxu0
      %821 = vdwg.mxu0
      %v826 = vunpack.c.l.b16 %v643
      %v827 = vunpack.c.l.b16 %v644
      %v828 = vunpack.c.l.b16 %v645
      %v829 = vunpack.c.l.b16 %v646
      %v830 = vpack.c.b16 %v827, %v826
      %v831 = vpack.c.b16 %v829, %v828
      %834 = vmatprep.subr.bf16.mxu0 0
      %835 = vmatpush1.bf16.msra.mxu0 0
      %836 = vmatprep.subr.bf16.mxu0 0
      %837 = vmatpush1.bf16.msra.mxu0 0
      %838 = vmatprep.subr.bf16.mxu0 0
      %839 = vmatpush1.bf16.msra.mxu0 0
      %840 = vmatprep.subr.bf16.mxu0 0
      %841 = vmatpush1.bf16.msra.mxu0 0
      %842 = vmatprep.subr.bf16.mxu0 0
      %843 = vmatpush1.bf16.msra.mxu0 0
      %844 = vmatprep.subr.bf16.mxu0 0
      %845 = vmatpush1.bf16.msra.mxu0 0
      %846 = vmatprep.subr.bf16.mxu0 0
      %847 = vmatpush1.bf16.msra.mxu0 %v831
      %848 = vmatprep.subr.bf16.mxu0 0
      %849 = vmatpush1.bf16.msra.mxu0 %v830
      %850 = vmatprep.subr.bf16.mxu0 0
      %851 = vmatpush2.bf16.msra.mxu0 0
      %852 = vmatprep.subr.bf16.mxu0 0
      %853 = vmatpush2.bf16.msra.mxu0 0
      %854 = vmatprep.subr.bf16.mxu0 0
      %855 = vmatpush2.bf16.msra.mxu0 0
      %856 = vmatprep.subr.bf16.mxu0 0
      %857 = vmatpush2.bf16.msra.mxu0 0
      %858 = vmatprep.subr.bf16.mxu0 0
      %859 = vmatpush2.bf16.msra.mxu0 0
      %860 = vmatprep.subr.bf16.mxu0 0
      %861 = vmatpush2.bf16.msra.mxu0 0
      %862 = vmatprep.subr.bf16.mxu0 0
      %863 = vmatpush2.bf16.msra.mxu0 0
      %864 = vmatprep.subr.bf16.mxu0 0
      %865 = vmatpush2.bf16.msra.mxu0 0
      %866 = vmatprep.mubr.bf16.mxu0 0
      %867 = vmatmul.mubr.bf16.gmra.mxu0 %v676
      %v868 = vpop.f32.mrf.mxu0
      %v869 = vadd.f32 0.0, %v868
      %v870 = vpop.f32.mrf.mxu0
      %v871 = vpop.f32.mrf.mxu0
      %v872 = vpop.f32.mrf.mxu0
      %873 = vdwg.mxu0
      %v878 = vunpack.c.l.b16 %v647
      %v879 = vunpack.c.l.b16 %v648
      %v880 = vunpack.c.l.b16 %v649
      %v881 = vunpack.c.l.b16 %v650
      %v882 = vpack.c.b16 %v879, %v878
      %v883 = vpack.c.b16 %v881, %v880
      %886 = vmatprep.subr.bf16.mxu0 0
      %887 = vmatpush1.bf16.msra.mxu0 0
      %888 = vmatprep.subr.bf16.mxu0 0
      %889 = vmatpush1.bf16.msra.mxu0 0
      %890 = vmatprep.subr.bf16.mxu0 0
      %891 = vmatpush1.bf16.msra.mxu0 0
      %892 = vmatprep.subr.bf16.mxu0 0
      %893 = vmatpush1.bf16.msra.mxu0 0
      %894 = vmatprep.subr.bf16.mxu0 0
      %895 = vmatpush1.bf16.msra.mxu0 0
      %896 = vmatprep.subr.bf16.mxu0 0
      %897 = vmatpush1.bf16.msra.mxu0 0
      %898 = vmatprep.subr.bf16.mxu0 0
      %899 = vmatpush1.bf16.msra.mxu0 %v883
      %900 = vmatprep.subr.bf16.mxu0 0
      %901 = vmatpush1.bf16.msra.mxu0 %v882
      %902 = vmatprep.subr.bf16.mxu0 0
      %903 = vmatpush2.bf16.msra.mxu0 0
      %904 = vmatprep.subr.bf16.mxu0 0
      %905 = vmatpush2.bf16.msra.mxu0 0
      %906 = vmatprep.subr.bf16.mxu0 0
      %907 = vmatpush2.bf16.msra.mxu0 0
      %908 = vmatprep.subr.bf16.mxu0 0
      %909 = vmatpush2.bf16.msra.mxu0 0
      %910 = vmatprep.subr.bf16.mxu0 0
      %911 = vmatpush2.bf16.msra.mxu0 0
      %912 = vmatprep.subr.bf16.mxu0 0
      %913 = vmatpush2.bf16.msra.mxu0 0
      %914 = vmatprep.subr.bf16.mxu0 0
      %915 = vmatpush2.bf16.msra.mxu0 0
      %916 = vmatprep.subr.bf16.mxu0 0
      %917 = vmatpush2.bf16.msra.mxu0 0
      %918 = vmatprep.mubr.bf16.mxu0 0
      %919 = vmatmul.mubr.bf16.gmra.mxu0 %v676
      %v920 = vpop.f32.mrf.mxu0
      %v921 = vadd.f32 0.0, %v920
      %v922 = vpop.f32.mrf.mxu0
      %v923 = vpop.f32.mrf.mxu0
      %v924 = vpop.f32.mrf.mxu0
      %925 = vdwg.mxu0
      %v930 = vunpack.c.l.b16 %v651
      %v931 = vunpack.c.l.b16 %v652
      %v932 = vunpack.c.l.b16 %v653
      %v933 = vunpack.c.l.b16 %v654
      %v934 = vpack.c.b16 %v931, %v930
      %v935 = vpack.c.b16 %v933, %v932
      %938 = vmatprep.subr.bf16.mxu0 0
      %939 = vmatpush1.bf16.msra.mxu0 0
      %940 = vmatprep.subr.bf16.mxu0 0
      %941 = vmatpush1.bf16.msra.mxu0 0
      %942 = vmatprep.subr.bf16.mxu0 0
      %943 = vmatpush1.bf16.msra.mxu0 0
      %944 = vmatprep.subr.bf16.mxu0 0
      %945 = vmatpush1.bf16.msra.mxu0 0
      %946 = vmatprep.subr.bf16.mxu0 0
      %947 = vmatpush1.bf16.msra.mxu0 0
      %948 = vmatprep.subr.bf16.mxu0 0
      %949 = vmatpush1.bf16.msra.mxu0 0
      %950 = vmatprep.subr.bf16.mxu0 0
      %951 = vmatpush1.bf16.msra.mxu0 %v935
      %952 = vmatprep.subr.bf16.mxu0 0
      %953 = vmatpush1.bf16.msra.mxu0 %v934
      %954 = vmatprep.subr.bf16.mxu0 0
      %955 = vmatpush2.bf16.msra.mxu0 0
      %956 = vmatprep.subr.bf16.mxu0 0
      %957 = vmatpush2.bf16.msra.mxu0 0
      %958 = vmatprep.subr.bf16.mxu0 0
      %959 = vmatpush2.bf16.msra.mxu0 0
      %960 = vmatprep.subr.bf16.mxu0 0
      %961 = vmatpush2.bf16.msra.mxu0 0
      %962 = vmatprep.subr.bf16.mxu0 0
      %963 = vmatpush2.bf16.msra.mxu0 0
      %964 = vmatprep.subr.bf16.mxu0 0
      %965 = vmatpush2.bf16.msra.mxu0 0
      %966 = vmatprep.subr.bf16.mxu0 0
      %967 = vmatpush2.bf16.msra.mxu0 0
      %968 = vmatprep.subr.bf16.mxu0 0
      %969 = vmatpush2.bf16.msra.mxu0 0
      %970 = vmatprep.mubr.bf16.mxu0 0
      %971 = vmatmul.mubr.bf16.gmra.mxu0 %v676
      %v972 = vpop.f32.mrf.mxu0
      %v973 = vadd.f32 0.0, %v972
      %v974 = vpop.f32.mrf.mxu0
      %v975 = vpop.f32.mrf.mxu0
      %v976 = vpop.f32.mrf.mxu0
      %977 = vdwg.mxu0
      %v982 = vunpack.c.l.b16 %v655
      %v983 = vunpack.c.l.b16 %v656
      %v984 = vunpack.c.l.b16 %v657
      %v985 = vunpack.c.l.b16 %v658
      %v986 = vpack.c.b16 %v983, %v982
      %v987 = vpack.c.b16 %v985, %v984
      %990 = vmatprep.subr.bf16.mxu0 0
      %991 = vmatpush1.bf16.msra.mxu0 0
      %992 = vmatprep.subr.bf16.mxu0 0
      %993 = vmatpush1.bf16.msra.mxu0 0
      %994 = vmatprep.subr.bf16.mxu0 0
      %995 = vmatpush1.bf16.msra.mxu0 0
      %996 = vmatprep.subr.bf16.mxu0 0
      %997 = vmatpush1.bf16.msra.mxu0 0
      %998 = vmatprep.subr.bf16.mxu0 0
      %999 = vmatpush1.bf16.msra.mxu0 0
      %1000 = vmatprep.subr.bf16.mxu0 0
      %1001 = vmatpush1.bf16.msra.mxu0 0
      %1002 = vmatprep.subr.bf16.mxu0 0
      %1003 = vmatpush1.bf16.msra.mxu0 %v987
      %1004 = vmatprep.subr.bf16.mxu0 0
      %1005 = vmatpush1.bf16.msra.mxu0 %v986
      %1006 = vmatprep.subr.bf16.mxu0 0
      %1007 = vmatpush2.bf16.msra.mxu0 0
      %1008 = vmatprep.subr.bf16.mxu0 0
      %1009 = vmatpush2.bf16.msra.mxu0 0
      %1010 = vmatprep.subr.bf16.mxu0 0
      %1011 = vmatpush2.bf16.msra.mxu0 0
      %1012 = vmatprep.subr.bf16.mxu0 0
      %1013 = vmatpush2.bf16.msra.mxu0 0
      %1014 = vmatprep.subr.bf16.mxu0 0
      %1015 = vmatpush2.bf16.msra.mxu0 0
      %1016 = vmatprep.subr.bf16.mxu0 0
      %1017 = vmatpush2.bf16.msra.mxu0 0
      %1018 = vmatprep.subr.bf16.mxu0 0
      %1019 = vmatpush2.bf16.msra.mxu0 0
      %1020 = vmatprep.subr.bf16.mxu0 0
      %1021 = vmatpush2.bf16.msra.mxu0 0
      %1022 = vmatprep.mubr.bf16.mxu0 0
      %1023 = vmatmul.mubr.bf16.gmra.mxu0 %v676
      %v1024 = vpop.f32.mrf.mxu0
      %v1025 = vadd.f32 0.0, %v1024
      %v1026 = vpop.f32.mrf.mxu0
      %v1027 = vpop.f32.mrf.mxu0
      %v1028 = vpop.f32.mrf.mxu0
      %1029 = vdwg.mxu0
      %v1034 = vunpack.c.l.b16 %v659
      %v1035 = vunpack.c.l.b16 %v660
      %v1036 = vunpack.c.l.b16 %v661
      %v1037 = vunpack.c.l.b16 %v662
      %v1038 = vpack.c.b16 %v1035, %v1034
      %v1039 = vpack.c.b16 %v1037, %v1036
      %1042 = vmatprep.subr.bf16.mxu0 0
      %1043 = vmatpush1.bf16.msra.mxu0 0
      %1044 = vmatprep.subr.bf16.mxu0 0
      %1045 = vmatpush1.bf16.msra.mxu0 0
      %1046 = vmatprep.subr.bf16.mxu0 0
      %1047 = vmatpush1.bf16.msra.mxu0 0
      %1048 = vmatprep.subr.bf16.mxu0 0
      %1049 = vmatpush1.bf16.msra.mxu0 0
      %1050 = vmatprep.subr.bf16.mxu0 0
      %1051 = vmatpush1.bf16.msra.mxu0 0
      %1052 = vmatprep.subr.bf16.mxu0 0
      %1053 = vmatpush1.bf16.msra.mxu0 0
      %1054 = vmatprep.subr.bf16.mxu0 0
      %1055 = vmatpush1.bf16.msra.mxu0 %v1039
      %1056 = vmatprep.subr.bf16.mxu0 0
      %1057 = vmatpush1.bf16.msra.mxu0 %v1038
      %1058 = vmatprep.subr.bf16.mxu0 0
      %1059 = vmatpush2.bf16.msra.mxu0 0
      %1060 = vmatprep.subr.bf16.mxu0 0
      %1061 = vmatpush2.bf16.msra.mxu0 0
      %1062 = vmatprep.subr.bf16.mxu0 0
      %1063 = vmatpush2.bf16.msra.mxu0 0
      %1064 = vmatprep.subr.bf16.mxu0 0
      %1065 = vmatpush2.bf16.msra.mxu0 0
      %1066 = vmatprep.subr.bf16.mxu0 0
      %1067 = vmatpush2.bf16.msra.mxu0 0
      %1068 = vmatprep.subr.bf16.mxu0 0
      %1069 = vmatpush2.bf16.msra.mxu0 0
      %1070 = vmatprep.subr.bf16.mxu0 0
      %1071 = vmatpush2.bf16.msra.mxu0 0
      %1072 = vmatprep.subr.bf16.mxu0 0
      %1073 = vmatpush2.bf16.msra.mxu0 0
      %1074 = vmatprep.mubr.bf16.mxu0 0
      %1075 = vmatmul.mubr.bf16.gmra.mxu0 %v676
      %v1076 = vpop.f32.mrf.mxu0
      %v1077 = vadd.f32 0.0, %v1076
      %v1078 = vpop.f32.mrf.mxu0
      %v1079 = vpop.f32.mrf.mxu0
      %v1080 = vpop.f32.mrf.mxu0
      %1081 = vdwg.mxu0
      %v1082 = vld [vmem:[%s4] sm:$0xf]
      %v1083 = vld [vmem:[%s4 + $0x4] sm:$0xf]
      %v1084 = vld [vmem:[%s4 + $0x8] sm:$0xf]
      %v1085 = vld [vmem:[%s4 + $0xc] sm:$0xf]
      %v1087 = vsel %vm571, %v1082, 0
      %1089 = vmatprep.subr.bf16.mxu0 0
      %1090 = vmatpush1.bf16.msra.mxu0 0
      %1091 = vmatprep.subr.bf16.mxu0 0
      %1092 = vmatpush1.bf16.msra.mxu0 0
      %1093 = vmatprep.subr.bf16.mxu0 0
      %1094 = vmatpush1.bf16.msra.mxu0 0
      %1095 = vmatprep.subr.bf16.mxu0 0
      %1096 = vmatpush1.bf16.msra.mxu0 0
      %1097 = vmatprep.subr.bf16.mxu0 0
      %1098 = vmatpush1.bf16.msra.mxu0 0
      %1099 = vmatprep.subr.bf16.mxu0 0
      %1100 = vmatpush1.bf16.msra.mxu0 0
      %1101 = vmatprep.subr.bf16.mxu0 0
      %1102 = vmatpush1.bf16.msra.mxu0 %v630
      %1103 = vmatprep.subr.bf16.mxu0 0
      %1104 = vmatpush1.bf16.msra.mxu0 %v629
      %1105 = vmatprep.subr.bf16.mxu0 0
      %1106 = vmatpush2.bf16.msra.mxu0 0
      %1107 = vmatprep.subr.bf16.mxu0 0
      %1108 = vmatpush2.bf16.msra.mxu0 0
      %1109 = vmatprep.subr.bf16.mxu0 0
      %1110 = vmatpush2.bf16.msra.mxu0 0
      %1111 = vmatprep.subr.bf16.mxu0 0
      %1112 = vmatpush2.bf16.msra.mxu0 0
      %1113 = vmatprep.subr.bf16.mxu0 0
      %1114 = vmatpush2.bf16.msra.mxu0 0
      %1115 = vmatprep.subr.bf16.mxu0 0
      %1116 = vmatpush2.bf16.msra.mxu0 0
      %1117 = vmatprep.subr.bf16.mxu0 0
      %1118 = vmatpush2.bf16.msra.mxu0 0
      %1119 = vmatprep.subr.bf16.mxu0 0
      %1120 = vmatpush2.bf16.msra.mxu0 0
      %1121 = vmatprep.mubr.bf16.mxu0 0
      %1122 = vmatmul.mubr.bf16.gmra.mxu0 %v1087
      %v1123 = vpop.f32.mrf.mxu0
      %v1124 = vadd.f32 0.0, %v1123
      %v1125 = vpop.f32.mrf.mxu0
      %v1126 = vpop.f32.mrf.mxu0
      %v1127 = vpop.f32.mrf.mxu0
      %1128 = vdwg.mxu0
      %v1130 = vsel %vm571, %v1083, 0
      %1132 = vmatprep.subr.bf16.mxu0 0
      %1133 = vmatpush1.bf16.msra.mxu0 0
      %1134 = vmatprep.subr.bf16.mxu0 0
      %1135 = vmatpush1.bf16.msra.mxu0 0
      %1136 = vmatprep.subr.bf16.mxu0 0
      %1137 = vmatpush1.bf16.msra.mxu0 0
      %1138 = vmatprep.subr.bf16.mxu0 0
      %1139 = vmatpush1.bf16.msra.mxu0 0
      %1140 = vmatprep.subr.bf16.mxu0 0
      %1141 = vmatpush1.bf16.msra.mxu0 0
      %1142 = vmatprep.subr.bf16.mxu0 0
      %1143 = vmatpush1.bf16.msra.mxu0 0
      %1144 = vmatprep.subr.bf16.mxu0 0
      %1145 = vmatpush1.bf16.msra.mxu0 %v630
      %1146 = vmatprep.subr.bf16.mxu0 0
      %1147 = vmatpush1.bf16.msra.mxu0 %v629
      %1148 = vmatprep.subr.bf16.mxu0 0
      %1149 = vmatpush2.bf16.msra.mxu0 0
      %1150 = vmatprep.subr.bf16.mxu0 0
      %1151 = vmatpush2.bf16.msra.mxu0 0
      %1152 = vmatprep.subr.bf16.mxu0 0
      %1153 = vmatpush2.bf16.msra.mxu0 0
      %1154 = vmatprep.subr.bf16.mxu0 0
      %1155 = vmatpush2.bf16.msra.mxu0 0
      %1156 = vmatprep.subr.bf16.mxu0 0
      %1157 = vmatpush2.bf16.msra.mxu0 0
      %1158 = vmatprep.subr.bf16.mxu0 0
      %1159 = vmatpush2.bf16.msra.mxu0 0
      %1160 = vmatprep.subr.bf16.mxu0 0
      %1161 = vmatpush2.bf16.msra.mxu0 0
      %1162 = vmatprep.subr.bf16.mxu0 0
      %1163 = vmatpush2.bf16.msra.mxu0 0
      %1164 = vmatprep.mubr.bf16.mxu0 0
      %1165 = vmatmul.mubr.bf16.gmra.mxu0 %v1130
      %v1166 = vpop.f32.mrf.mxu0
      %v1167 = vadd.f32 0.0, %v1166
      %v1168 = vpop.f32.mrf.mxu0
      %v1169 = vpop.f32.mrf.mxu0
      %v1170 = vpop.f32.mrf.mxu0
      %1171 = vdwg.mxu0
      %v1173 = vsel %vm571, %v1084, 0
      %1175 = vmatprep.subr.bf16.mxu0 0
      %1176 = vmatpush1.bf16.msra.mxu0 0
      %1177 = vmatprep.subr.bf16.mxu0 0
      %1178 = vmatpush1.bf16.msra.mxu0 0
      %1179 = vmatprep.subr.bf16.mxu0 0
      %1180 = vmatpush1.bf16.msra.mxu0 0
      %1181 = vmatprep.subr.bf16.mxu0 0
      %1182 = vmatpush1.bf16.msra.mxu0 0
      %1183 = vmatprep.subr.bf16.mxu0 0
      %1184 = vmatpush1.bf16.msra.mxu0 0
      %1185 = vmatprep.subr.bf16.mxu0 0
      %1186 = vmatpush1.bf16.msra.mxu0 0
      %1187 = vmatprep.subr.bf16.mxu0 0
      %1188 = vmatpush1.bf16.msra.mxu0 %v630
      %1189 = vmatprep.subr.bf16.mxu0 0
      %1190 = vmatpush1.bf16.msra.mxu0 %v629
      %1191 = vmatprep.subr.bf16.mxu0 0
      %1192 = vmatpush2.bf16.msra.mxu0 0
      %1193 = vmatprep.subr.bf16.mxu0 0
      %1194 = vmatpush2.bf16.msra.mxu0 0
      %1195 = vmatprep.subr.bf16.mxu0 0
      %1196 = vmatpush2.bf16.msra.mxu0 0
      %1197 = vmatprep.subr.bf16.mxu0 0
      %1198 = vmatpush2.bf16.msra.mxu0 0
      %1199 = vmatprep.subr.bf16.mxu0 0
      %1200 = vmatpush2.bf16.msra.mxu0 0
      %1201 = vmatprep.subr.bf16.mxu0 0
      %1202 = vmatpush2.bf16.msra.mxu0 0
      %1203 = vmatprep.subr.bf16.mxu0 0
      %1204 = vmatpush2.bf16.msra.mxu0 0
      %1205 = vmatprep.subr.bf16.mxu0 0
      %1206 = vmatpush2.bf16.msra.mxu0 0
      %1207 = vmatprep.mubr.bf16.mxu0 0
      %1208 = vmatmul.mubr.bf16.gmra.mxu0 %v1173
      %v1209 = vpop.f32.mrf.mxu0
      %v1210 = vadd.f32 0.0, %v1209
      %v1211 = vpop.f32.mrf.mxu0
      %v1212 = vpop.f32.mrf.mxu0
      %v1213 = vpop.f32.mrf.mxu0
      %1214 = vdwg.mxu0
      %v1216 = vsel %vm571, %v1085, 0
      %1218 = vmatprep.subr.bf16.mxu0 0
      %1219 = vmatpush1.bf16.msra.mxu0 0
      %1220 = vmatprep.subr.bf16.mxu0 0
      %1221 = vmatpush1.bf16.msra.mxu0 0
      %1222 = vmatprep.subr.bf16.mxu0 0
      %1223 = vmatpush1.bf16.msra.mxu0 0
      %1224 = vmatprep.subr.bf16.mxu0 0
      %1225 = vmatpush1.bf16.msra.mxu0 0
      %1226 = vmatprep.subr.bf16.mxu0 0
      %1227 = vmatpush1.bf16.msra.mxu0 0
      %1228 = vmatprep.subr.bf16.mxu0 0
      %1229 = vmatpush1.bf16.msra.mxu0 0
      %1230 = vmatprep.subr.bf16.mxu0 0
      %1231 = vmatpush1.bf16.msra.mxu0 %v630
      %1232 = vmatprep.subr.bf16.mxu0 0
      %1233 = vmatpush1.bf16.msra.mxu0 %v629
      %1234 = vmatprep.subr.bf16.mxu0 0
      %1235 = vmatpush2.bf16.msra.mxu0 0
      %1236 = vmatprep.subr.bf16.mxu0 0
      %1237 = vmatpush2.bf16.msra.mxu0 0
      %1238 = vmatprep.subr.bf16.mxu0 0
      %1239 = vmatpush2.bf16.msra.mxu0 0
      %1240 = vmatprep.subr.bf16.mxu0 0
      %1241 = vmatpush2.bf16.msra.mxu0 0
      %1242 = vmatprep.subr.bf16.mxu0 0
      %1243 = vmatpush2.bf16.msra.mxu0 0
      %1244 = vmatprep.subr.bf16.mxu0 0
      %1245 = vmatpush2.bf16.msra.mxu0 0
      %1246 = vmatprep.subr.bf16.mxu0 0
      %1247 = vmatpush2.bf16.msra.mxu0 0
      %1248 = vmatprep.subr.bf16.mxu0 0
      %1249 = vmatpush2.bf16.msra.mxu0 0
      %1250 = vmatprep.mubr.bf16.mxu0 0
      %1251 = vmatmul.mubr.bf16.gmra.mxu0 %v1216
      %v1252 = vpop.f32.mrf.mxu0
      %v1253 = vadd.f32 0.0, %v1252
      %v1254 = vpop.f32.mrf.mxu0
      %v1255 = vpop.f32.mrf.mxu0
      %v1256 = vpop.f32.mrf.mxu0
      %1257 = vdwg.mxu0
      %v1258 = vpack.c.bf16 %v713, %v713
      %v1259 = vpack.c.bf16 %v765, %v765
      %v1260 = vpack.c.bf16 %v817, %v817
      %v1261 = vpack.c.bf16 %v869, %v869
      %v1262 = vpack.c.bf16 %v1124, %v1124
      %v1263 = vpack.c.bf16 %v1167, %v1167
      %v1264 = vpack.c.bf16 %v1210, %v1210
      %v1265 = vpack.c.bf16 %v1253, %v1253
      %vm1266 = vcmask 64512
      %v1268 = vsel %vm1266, %v1258, 0
      %vm1270 = vcmask 1043456
      %v1272 = vsel %vm1270, %v1262, 0
      %1274 = vmatprep.subr.bf16.mxu0 0
      %1275 = vmatpush1.bf16.msra.mxu0 0
      %1276 = vmatprep.subr.bf16.mxu0 0
      %1277 = vmatpush1.bf16.msra.mxu0 0
      %1278 = vmatprep.subr.bf16.mxu0 0
      %1279 = vmatpush1.bf16.msra.mxu0 0
      %1280 = vmatprep.subr.bf16.mxu0 0
      %1281 = vmatpush1.bf16.msra.mxu0 0
      %1282 = vmatprep.subr.bf16.mxu0 0
      %1283 = vmatpush1.bf16.msra.mxu0 0
      %1284 = vmatprep.subr.bf16.mxu0 0
      %1285 = vmatpush1.bf16.msra.mxu0 0
      %1286 = vmatprep.subr.bf16.mxu0 0
      %1287 = vmatpush1.bf16.msra.mxu0 0
      %1288 = vmatprep.subr.bf16.mxu0 0
      %1289 = vmatpush1.bf16.msra.mxu0 %v1272
      %1290 = vmatprep.subr.bf16.mxu0 0
      %1291 = vmatpush2.bf16.msra.mxu0 0
      %1292 = vmatprep.subr.bf16.mxu0 0
      %1293 = vmatpush2.bf16.msra.mxu0 0
      %1294 = vmatprep.subr.bf16.mxu0 0
      %1295 = vmatpush2.bf16.msra.mxu0 0
      %1296 = vmatprep.subr.bf16.mxu0 0
      %1297 = vmatpush2.bf16.msra.mxu0 0
      %1298 = vmatprep.subr.bf16.mxu0 0
      %1299 = vmatpush2.bf16.msra.mxu0 0
      %1300 = vmatprep.subr.bf16.mxu0 0
      %1301 = vmatpush2.bf16.msra.mxu0 0
      %1302 = vmatprep.subr.bf16.mxu0 0
      %1303 = vmatpush2.bf16.msra.mxu0 0
      %1304 = vmatprep.subr.bf16.mxu0 0
      %1305 = vmatpush2.bf16.msra.mxu0 0
      %1306 = vmatprep.mubr.bf16.mxu0 0
      %1307 = vmatmul.mubr.bf16.gmra.mxu0 %v1268
      %v1308 = vpop.f32.mrf.mxu0
      %v1309 = vadd.f32 %v569, %v1308
      %v1310 = vpop.f32.mrf.mxu0
      %v1311 = vpop.f32.mrf.mxu0
      %v1312 = vpop.f32.mrf.mxu0
      %1313 = vdwg.mxu0
      %v1315 = vsel %vm1266, %v1259, 0
      %v1318 = vsel %vm1270, %v1263, 0
      %1320 = vmatprep.subr.bf16.mxu0 0
      %1321 = vmatpush1.bf16.msra.mxu0 0
      %1322 = vmatprep.subr.bf16.mxu0 0
      %1323 = vmatpush1.bf16.msra.mxu0 0
      %1324 = vmatprep.subr.bf16.mxu0 0
      %1325 = vmatpush1.bf16.msra.mxu0 0
      %1326 = vmatprep.subr.bf16.mxu0 0
      %1327 = vmatpush1.bf16.msra.mxu0 0
      %1328 = vmatprep.subr.bf16.mxu0 0
      %1329 = vmatpush1.bf16.msra.mxu0 0
      %1330 = vmatprep.subr.bf16.mxu0 0
      %1331 = vmatpush1.bf16.msra.mxu0 0
      %1332 = vmatprep.subr.bf16.mxu0 0
      %1333 = vmatpush1.bf16.msra.mxu0 0
      %1334 = vmatprep.subr.bf16.mxu0 0
      %1335 = vmatpush1.bf16.msra.mxu0 %v1318
      %1336 = vmatprep.subr.bf16.mxu0 0
      %1337 = vmatpush2.bf16.msra.mxu0 0
      %1338 = vmatprep.subr.bf16.mxu0 0
      %1339 = vmatpush2.bf16.msra.mxu0 0
      %1340 = vmatprep.subr.bf16.mxu0 0
      %1341 = vmatpush2.bf16.msra.mxu0 0
      %1342 = vmatprep.subr.bf16.mxu0 0
      %1343 = vmatpush2.bf16.msra.mxu0 0
      %1344 = vmatprep.subr.bf16.mxu0 0
      %1345 = vmatpush2.bf16.msra.mxu0 0
      %1346 = vmatprep.subr.bf16.mxu0 0
      %1347 = vmatpush2.bf16.msra.mxu0 0
      %1348 = vmatprep.subr.bf16.mxu0 0
      %1349 = vmatpush2.bf16.msra.mxu0 0
      %1350 = vmatprep.subr.bf16.mxu0 0
      %1351 = vmatpush2.bf16.msra.mxu0 0
      %1352 = vmatprep.mubr.bf16.mxu0 0
      %1353 = vmatmul.mubr.bf16.gmra.mxu0 %v1315
      %v1354 = vpop.f32.mrf.mxu0
      %v1355 = vadd.f32 %v569, %v1354
      %v1356 = vpop.f32.mrf.mxu0
      %v1357 = vpop.f32.mrf.mxu0
      %v1358 = vpop.f32.mrf.mxu0
      %1359 = vdwg.mxu0
      %v1361 = vsel %vm1266, %v1260, 0
      %v1364 = vsel %vm1270, %v1264, 0
      %1366 = vmatprep.subr.bf16.mxu0 0
      %1367 = vmatpush1.bf16.msra.mxu0 0
      %1368 = vmatprep.subr.bf16.mxu0 0
      %1369 = vmatpush1.bf16.msra.mxu0 0
      %1370 = vmatprep.subr.bf16.mxu0 0
      %1371 = vmatpush1.bf16.msra.mxu0 0
      %1372 = vmatprep.subr.bf16.mxu0 0
      %1373 = vmatpush1.bf16.msra.mxu0 0
      %1374 = vmatprep.subr.bf16.mxu0 0
      %1375 = vmatpush1.bf16.msra.mxu0 0
      %1376 = vmatprep.subr.bf16.mxu0 0
      %1377 = vmatpush1.bf16.msra.mxu0 0
      %1378 = vmatprep.subr.bf16.mxu0 0
      %1379 = vmatpush1.bf16.msra.mxu0 0
      %1380 = vmatprep.subr.bf16.mxu0 0
      %1381 = vmatpush1.bf16.msra.mxu0 %v1364
      %1382 = vmatprep.subr.bf16.mxu0 0
      %1383 = vmatpush2.bf16.msra.mxu0 0
      %1384 = vmatprep.subr.bf16.mxu0 0
      %1385 = vmatpush2.bf16.msra.mxu0 0
      %1386 = vmatprep.subr.bf16.mxu0 0
      %1387 = vmatpush2.bf16.msra.mxu0 0
      %1388 = vmatprep.subr.bf16.mxu0 0
      %1389 = vmatpush2.bf16.msra.mxu0 0
      %1390 = vmatprep.subr.bf16.mxu0 0
      %1391 = vmatpush2.bf16.msra.mxu0 0
      %1392 = vmatprep.subr.bf16.mxu0 0
      %1393 = vmatpush2.bf16.msra.mxu0 0
      %1394 = vmatprep.subr.bf16.mxu0 0
      %1395 = vmatpush2.bf16.msra.mxu0 0
      %1396 = vmatprep.subr.bf16.mxu0 0
      %1397 = vmatpush2.bf16.msra.mxu0 0
      %1398 = vmatprep.mubr.bf16.mxu0 0
      %1399 = vmatmul.mubr.bf16.gmra.mxu0 %v1361
      %v1400 = vpop.f32.mrf.mxu0
      %v1401 = vadd.f32 %v569, %v1400
      %v1402 = vpop.f32.mrf.mxu0
      %v1403 = vpop.f32.mrf.mxu0
      %v1404 = vpop.f32.mrf.mxu0
      %1405 = vdwg.mxu0
      %v1407 = vsel %vm1266, %v1261, 0
      %v1410 = vsel %vm1270, %v1265, 0
      %1412 = vmatprep.subr.bf16.mxu0 0
      %1413 = vmatpush1.bf16.msra.mxu0 0
      %1414 = vmatprep.subr.bf16.mxu0 0
      %1415 = vmatpush1.bf16.msra.mxu0 0
      %1416 = vmatprep.subr.bf16.mxu0 0
      %1417 = vmatpush1.bf16.msra.mxu0 0
      %1418 = vmatprep.subr.bf16.mxu0 0
      %1419 = vmatpush1.bf16.msra.mxu0 0
      %1420 = vmatprep.subr.bf16.mxu0 0
      %1421 = vmatpush1.bf16.msra.mxu0 0
      %1422 = vmatprep.subr.bf16.mxu0 0
      %1423 = vmatpush1.bf16.msra.mxu0 0
      %1424 = vmatprep.subr.bf16.mxu0 0
      %1425 = vmatpush1.bf16.msra.mxu0 0
      %1426 = vmatprep.subr.bf16.mxu0 0
      %1427 = vmatpush1.bf16.msra.mxu0 %v1410
      %1428 = vmatprep.subr.bf16.mxu0 0
      %1429 = vmatpush2.bf16.msra.mxu0 0
      %1430 = vmatprep.subr.bf16.mxu0 0
      %1431 = vmatpush2.bf16.msra.mxu0 0
      %1432 = vmatprep.subr.bf16.mxu0 0
      %1433 = vmatpush2.bf16.msra.mxu0 0
      %1434 = vmatprep.subr.bf16.mxu0 0
      %1435 = vmatpush2.bf16.msra.mxu0 0
      %1436 = vmatprep.subr.bf16.mxu0 0
      %1437 = vmatpush2.bf16.msra.mxu0 0
      %1438 = vmatprep.subr.bf16.mxu0 0
      %1439 = vmatpush2.bf16.msra.mxu0 0
      %1440 = vmatprep.subr.bf16.mxu0 0
      %1441 = vmatpush2.bf16.msra.mxu0 0
      %1442 = vmatprep.subr.bf16.mxu0 0
      %1443 = vmatpush2.bf16.msra.mxu0 0
      %1444 = vmatprep.mubr.bf16.mxu0 0
      %1445 = vmatmul.mubr.bf16.gmra.mxu0 %v1407
      %v1446 = vpop.f32.mrf.mxu0
      %v1447 = vadd.f32 %v569, %v1446
      %v1448 = vpop.f32.mrf.mxu0
      %v1449 = vpop.f32.mrf.mxu0
      %v1450 = vpop.f32.mrf.mxu0
      %1451 = vdwg.mxu0
      %v1452 = vsel %vm1266, %v1309, -inf
      %1453 = vmax.xlane.f32.xlu0 %v1452
      %v1454 = vpop.xlane.xlu0 %1453
      %v1455 = vsel %vm1266, %v1355, -inf
      %1456 = vmax.xlane.f32.xlu0 %v1455
      %v1457 = vpop.xlane.xlu0 %1456
      %v1458 = vsel %vm1266, %v1401, -inf
      %1459 = vmax.xlane.f32.xlu0 %v1458
      %v1460 = vpop.xlane.xlu0 %1459
      %v1461 = vsel %vm1266, %v1447, -inf
      %1462 = vmax.xlane.f32.xlu0 %v1461
      %v1463 = vpop.xlane.xlu0 %1462
      %v1464 = vsub.f32 %v1309, %v1454
      %v1465 = vsub.f32 %v1355, %v1457
      %v1466 = vsub.f32 %v1401, %v1460
      %v1467 = vsub.f32 %v1447, %v1463
      %v1468 = vmul.f32 %v1464, 1.442695
      %v1469 = vpow.pop %v1468
      %v1470 = vmul.f32 %v1465, 1.442695
      %v1471 = vpow.pop %v1470
      %v1472 = vmul.f32 %v1466, 1.442695
      %v1473 = vpow.pop %v1472
      %v1474 = vmul.f32 %v1467, 1.442695
      %v1475 = vpow.pop %v1474
      %v1476 = vsel %vm1266, %v1469, 0.0
      %1477 = vadd.xlane.f32.xlu0 %v1476
      %v1478 = vpop.xlane.xlu0 %1477
      %v1479 = vsel %vm1266, %v1471, 0.0
      %1480 = vadd.xlane.f32.xlu0 %v1479
      %v1481 = vpop.xlane.xlu0 %1480
      %v1482 = vsel %vm1266, %v1473, 0.0
      %1483 = vadd.xlane.f32.xlu0 %v1482
      %v1484 = vpop.xlane.xlu0 %1483
      %v1485 = vsel %vm1266, %v1475, 0.0
      %1486 = vadd.xlane.f32.xlu0 %v1485
      %v1487 = vpop.xlane.xlu0 %1486
      %v1488 = vrcp.pop %v1478
      %v1489 = vrcp.pop %v1481
      %v1490 = vrcp.pop %v1484
      %v1491 = vrcp.pop %v1487
      %v1492 = vmul.f32 %v1469, %v1488
      %v1493 = vmul.f32 %v1471, %v1489
      %v1494 = vmul.f32 %v1473, %v1490
      %v1495 = vmul.f32 %v1475, %v1491
      %v1496 = vpack.c.bf16 %v1492, %v1492
      %v1497 = vpack.c.bf16 %v1493, %v1493
      %v1498 = vpack.c.bf16 %v1494, %v1494
      %v1499 = vpack.c.bf16 %v1495, %v1495
      %v1500 = vpack.c.bf16 %v921, %v921
      %v1501 = vpack.c.bf16 %v973, %v973
      %v1502 = vpack.c.bf16 %v1025, %v1025
      %v1503 = vpack.c.bf16 %v1077, %v1077
      %v1505 = vsel %vm1266, %v1496, 0
      %v1508 = vsel %vm1270, %v1500, 0
      %1510 = vmatprep.subr.bf16.mxu0 0
      %1511 = vmatpush1.bf16.msra.mxu0 0
      %1512 = vmatprep.subr.bf16.mxu0 0
      %1513 = vmatpush1.bf16.msra.mxu0 0
      %1514 = vmatprep.subr.bf16.mxu0 0
      %1515 = vmatpush1.bf16.msra.mxu0 0
      %1516 = vmatprep.subr.bf16.mxu0 0
      %1517 = vmatpush1.bf16.msra.mxu0 0
      %1518 = vmatprep.subr.bf16.mxu0 0
      %1519 = vmatpush1.bf16.msra.mxu0 0
      %1520 = vmatprep.subr.bf16.mxu0 0
      %1521 = vmatpush1.bf16.msra.mxu0 0
      %1522 = vmatprep.subr.bf16.mxu0 0
      %1523 = vmatpush1.bf16.msra.mxu0 0
      %1524 = vmatprep.subr.bf16.mxu0 0
      %1525 = vmatpush1.bf16.msra.mxu0 %v1508
      %1526 = vmatprep.subr.bf16.mxu0 0
      %1527 = vmatpush2.bf16.msra.mxu0 0
      %1528 = vmatprep.subr.bf16.mxu0 0
      %1529 = vmatpush2.bf16.msra.mxu0 0
      %1530 = vmatprep.subr.bf16.mxu0 0
      %1531 = vmatpush2.bf16.msra.mxu0 0
      %1532 = vmatprep.subr.bf16.mxu0 0
      %1533 = vmatpush2.bf16.msra.mxu0 0
      %1534 = vmatprep.subr.bf16.mxu0 0
      %1535 = vmatpush2.bf16.msra.mxu0 0
      %1536 = vmatprep.subr.bf16.mxu0 0
      %1537 = vmatpush2.bf16.msra.mxu0 0
      %1538 = vmatprep.subr.bf16.mxu0 0
      %1539 = vmatpush2.bf16.msra.mxu0 0
      %1540 = vmatprep.subr.bf16.mxu0 0
      %1541 = vmatpush2.bf16.msra.mxu0 0
      %1542 = vmatprep.mubr.bf16.mxu0 0
      %1543 = vmatmul.mubr.bf16.gmra.mxu0 %v1505
      %v1544 = vpop.f32.mrf.mxu0
      %v1545 = vadd.f32 0.0, %v1544
      %v1546 = vpop.f32.mrf.mxu0
      %v1547 = vpop.f32.mrf.mxu0
      %v1548 = vpop.f32.mrf.mxu0
      %1549 = vdwg.mxu0
      %v1551 = vsel %vm1266, %v1497, 0
      %v1554 = vsel %vm1270, %v1501, 0
      %1556 = vmatprep.subr.bf16.mxu0 0
      %1557 = vmatpush1.bf16.msra.mxu0 0
      %1558 = vmatprep.subr.bf16.mxu0 0
      %1559 = vmatpush1.bf16.msra.mxu0 0
      %1560 = vmatprep.subr.bf16.mxu0 0
      %1561 = vmatpush1.bf16.msra.mxu0 0
      %1562 = vmatprep.subr.bf16.mxu0 0
      %1563 = vmatpush1.bf16.msra.mxu0 0
      %1564 = vmatprep.subr.bf16.mxu0 0
      %1565 = vmatpush1.bf16.msra.mxu0 0
      %1566 = vmatprep.subr.bf16.mxu0 0
      %1567 = vmatpush1.bf16.msra.mxu0 0
      %1568 = vmatprep.subr.bf16.mxu0 0
      %1569 = vmatpush1.bf16.msra.mxu0 0
      %1570 = vmatprep.subr.bf16.mxu0 0
      %1571 = vmatpush1.bf16.msra.mxu0 %v1554
      %1572 = vmatprep.subr.bf16.mxu0 0
      %1573 = vmatpush2.bf16.msra.mxu0 0
      %1574 = vmatprep.subr.bf16.mxu0 0
      %1575 = vmatpush2.bf16.msra.mxu0 0
      %1576 = vmatprep.subr.bf16.mxu0 0
      %1577 = vmatpush2.bf16.msra.mxu0 0
      %1578 = vmatprep.subr.bf16.mxu0 0
      %1579 = vmatpush2.bf16.msra.mxu0 0
      %1580 = vmatprep.subr.bf16.mxu0 0
      %1581 = vmatpush2.bf16.msra.mxu0 0
      %1582 = vmatprep.subr.bf16.mxu0 0
      %1583 = vmatpush2.bf16.msra.mxu0 0
      %1584 = vmatprep.subr.bf16.mxu0 0
      %1585 = vmatpush2.bf16.msra.mxu0 0
      %1586 = vmatprep.subr.bf16.mxu0 0
      %1587 = vmatpush2.bf16.msra.mxu0 0
      %1588 = vmatprep.mubr.bf16.mxu0 0
      %1589 = vmatmul.mubr.bf16.gmra.mxu0 %v1551
      %v1590 = vpop.f32.mrf.mxu0
      %v1591 = vadd.f32 0.0, %v1590
      %v1592 = vpop.f32.mrf.mxu0
      %v1593 = vpop.f32.mrf.mxu0
      %v1594 = vpop.f32.mrf.mxu0
      %1595 = vdwg.mxu0
      %v1597 = vsel %vm1266, %v1498, 0
      %v1600 = vsel %vm1270, %v1502, 0
      %1602 = vmatprep.subr.bf16.mxu0 0
      %1603 = vmatpush1.bf16.msra.mxu0 0
      %1604 = vmatprep.subr.bf16.mxu0 0
      %1605 = vmatpush1.bf16.msra.mxu0 0
      %1606 = vmatprep.subr.bf16.mxu0 0
      %1607 = vmatpush1.bf16.msra.mxu0 0
      %1608 = vmatprep.subr.bf16.mxu0 0
      %1609 = vmatpush1.bf16.msra.mxu0 0
      %1610 = vmatprep.subr.bf16.mxu0 0
      %1611 = vmatpush1.bf16.msra.mxu0 0
      %1612 = vmatprep.subr.bf16.mxu0 0
      %1613 = vmatpush1.bf16.msra.mxu0 0
      %1614 = vmatprep.subr.bf16.mxu0 0
      %1615 = vmatpush1.bf16.msra.mxu0 0
      %1616 = vmatprep.subr.bf16.mxu0 0
      %1617 = vmatpush1.bf16.msra.mxu0 %v1600
      %1618 = vmatprep.subr.bf16.mxu0 0
      %1619 = vmatpush2.bf16.msra.mxu0 0
      %1620 = vmatprep.subr.bf16.mxu0 0
      %1621 = vmatpush2.bf16.msra.mxu0 0
      %1622 = vmatprep.subr.bf16.mxu0 0
      %1623 = vmatpush2.bf16.msra.mxu0 0
      %1624 = vmatprep.subr.bf16.mxu0 0
      %1625 = vmatpush2.bf16.msra.mxu0 0
      %1626 = vmatprep.subr.bf16.mxu0 0
      %1627 = vmatpush2.bf16.msra.mxu0 0
      %1628 = vmatprep.subr.bf16.mxu0 0
      %1629 = vmatpush2.bf16.msra.mxu0 0
      %1630 = vmatprep.subr.bf16.mxu0 0
      %1631 = vmatpush2.bf16.msra.mxu0 0
      %1632 = vmatprep.subr.bf16.mxu0 0
      %1633 = vmatpush2.bf16.msra.mxu0 0
      %1634 = vmatprep.mubr.bf16.mxu0 0
      %1635 = vmatmul.mubr.bf16.gmra.mxu0 %v1597
      %v1636 = vpop.f32.mrf.mxu0
      %v1637 = vadd.f32 0.0, %v1636
      %v1638 = vpop.f32.mrf.mxu0
      %v1639 = vpop.f32.mrf.mxu0
      %v1640 = vpop.f32.mrf.mxu0
      %1641 = vdwg.mxu0
      %v1643 = vsel %vm1266, %v1499, 0
      %v1646 = vsel %vm1270, %v1503, 0
      %1648 = vmatprep.subr.bf16.mxu0 0
      %1649 = vmatpush1.bf16.msra.mxu0 0
      %1650 = vmatprep.subr.bf16.mxu0 0
      %1651 = vmatpush1.bf16.msra.mxu0 0
      %1652 = vmatprep.subr.bf16.mxu0 0
      %1653 = vmatpush1.bf16.msra.mxu0 0
      %1654 = vmatprep.subr.bf16.mxu0 0
      %1655 = vmatpush1.bf16.msra.mxu0 0
      %1656 = vmatprep.subr.bf16.mxu0 0
      %1657 = vmatpush1.bf16.msra.mxu0 0
      %1658 = vmatprep.subr.bf16.mxu0 0
      %1659 = vmatpush1.bf16.msra.mxu0 0
      %1660 = vmatprep.subr.bf16.mxu0 0
      %1661 = vmatpush1.bf16.msra.mxu0 0
      %1662 = vmatprep.subr.bf16.mxu0 0
      %1663 = vmatpush1.bf16.msra.mxu0 %v1646
      %1664 = vmatprep.subr.bf16.mxu0 0
      %1665 = vmatpush2.bf16.msra.mxu0 0
      %1666 = vmatprep.subr.bf16.mxu0 0
      %1667 = vmatpush2.bf16.msra.mxu0 0
      %1668 = vmatprep.subr.bf16.mxu0 0
      %1669 = vmatpush2.bf16.msra.mxu0 0
      %1670 = vmatprep.subr.bf16.mxu0 0
      %1671 = vmatpush2.bf16.msra.mxu0 0
      %1672 = vmatprep.subr.bf16.mxu0 0
      %1673 = vmatpush2.bf16.msra.mxu0 0
      %1674 = vmatprep.subr.bf16.mxu0 0
      %1675 = vmatpush2.bf16.msra.mxu0 0
      %1676 = vmatprep.subr.bf16.mxu0 0
      %1677 = vmatpush2.bf16.msra.mxu0 0
      %1678 = vmatprep.subr.bf16.mxu0 0
      %1679 = vmatpush2.bf16.msra.mxu0 0
      %1680 = vmatprep.mubr.bf16.mxu0 0
      %1681 = vmatmul.mubr.bf16.gmra.mxu0 %v1643
      %v1682 = vpop.f32.mrf.mxu0
      %v1683 = vadd.f32 0.0, %v1682
      %v1684 = vpop.f32.mrf.mxu0
      %v1685 = vpop.f32.mrf.mxu0
      %v1686 = vpop.f32.mrf.mxu0
      %1687 = vdwg.mxu0
      %v1688 = vpack.c.bf16 %v1545, %v1545
      %v1689 = vpack.c.bf16 %v1591, %v1591
      %v1690 = vpack.c.bf16 %v1637, %v1637
      %v1691 = vpack.c.bf16 %v1683, %v1683
      %v1692 = vld [vmem:[%s5] sm:$0xf]
      %v1693 = vld [vmem:[%s5 + $0x4] sm:$0xf]
      %v1694 = vld [vmem:[%s5 + $0x8] sm:$0xf]
      %v1695 = vld [vmem:[%s5 + $0xc] sm:$0xf]
      %v1697 = vsel %vm1266, %v1688, 0
      %v1700 = vsel %vm1270, %v1692, 0
      %1702 = vmatprep.subr.bf16.mxu0 0
      %1703 = vmatpush1.bf16.msra.mxu0 0
      %1704 = vmatprep.subr.bf16.mxu0 0
      %1705 = vmatpush1.bf16.msra.mxu0 0
      %1706 = vmatprep.subr.bf16.mxu0 0
      %1707 = vmatpush1.bf16.msra.mxu0 0
      %1708 = vmatprep.subr.bf16.mxu0 0
      %1709 = vmatpush1.bf16.msra.mxu0 0
      %1710 = vmatprep.subr.bf16.mxu0 0
      %1711 = vmatpush1.bf16.msra.mxu0 0
      %1712 = vmatprep.subr.bf16.mxu0 0
      %1713 = vmatpush1.bf16.msra.mxu0 0
      %1714 = vmatprep.subr.bf16.mxu0 0
      %1715 = vmatpush1.bf16.msra.mxu0 0
      %1716 = vmatprep.subr.bf16.mxu0 0
      %1717 = vmatpush1.bf16.msra.mxu0 %v1700
      %1718 = vmatprep.subr.bf16.mxu0 0
      %1719 = vmatpush2.bf16.msra.mxu0 0
      %1720 = vmatprep.subr.bf16.mxu0 0
      %1721 = vmatpush2.bf16.msra.mxu0 0
      %1722 = vmatprep.subr.bf16.mxu0 0
      %1723 = vmatpush2.bf16.msra.mxu0 0
      %1724 = vmatprep.subr.bf16.mxu0 0
      %1725 = vmatpush2.bf16.msra.mxu0 0
      %1726 = vmatprep.subr.bf16.mxu0 0
      %1727 = vmatpush2.bf16.msra.mxu0 0
      %1728 = vmatprep.subr.bf16.mxu0 0
      %1729 = vmatpush2.bf16.msra.mxu0 0
      %1730 = vmatprep.subr.bf16.mxu0 0
      %1731 = vmatpush2.bf16.msra.mxu0 0
      %1732 = vmatprep.subr.bf16.mxu0 0
      %1733 = vmatpush2.bf16.msra.mxu0 0
      %1734 = vmatprep.mubr.bf16.mxu0 0
      %1735 = vmatmul.mubr.bf16.gmra.mxu0 %v1697
      %v1736 = vpop.f32.mrf.mxu0
      %v1737 = vadd.f32 0.0, %v1736
      %v1738 = vpop.f32.mrf.mxu0
      %v1739 = vpop.f32.mrf.mxu0
      %v1740 = vpop.f32.mrf.mxu0
      %1741 = vdwg.mxu0
      %v1743 = vsel %vm1266, %v1689, 0
      %v1746 = vsel %vm1270, %v1693, 0
      %1748 = vmatprep.subr.bf16.mxu0 0
      %1749 = vmatpush1.bf16.msra.mxu0 0
      %1750 = vmatprep.subr.bf16.mxu0 0
      %1751 = vmatpush1.bf16.msra.mxu0 0
      %1752 = vmatprep.subr.bf16.mxu0 0
      %1753 = vmatpush1.bf16.msra.mxu0 0
      %1754 = vmatprep.subr.bf16.mxu0 0
      %1755 = vmatpush1.bf16.msra.mxu0 0
      %1756 = vmatprep.subr.bf16.mxu0 0
      %1757 = vmatpush1.bf16.msra.mxu0 0
      %1758 = vmatprep.subr.bf16.mxu0 0
      %1759 = vmatpush1.bf16.msra.mxu0 0
      %1760 = vmatprep.subr.bf16.mxu0 0
      %1761 = vmatpush1.bf16.msra.mxu0 0
      %1762 = vmatprep.subr.bf16.mxu0 0
      %1763 = vmatpush1.bf16.msra.mxu0 %v1746
      %1764 = vmatprep.subr.bf16.mxu0 0
      %1765 = vmatpush2.bf16.msra.mxu0 0
      %1766 = vmatprep.subr.bf16.mxu0 0
      %1767 = vmatpush2.bf16.msra.mxu0 0
      %1768 = vmatprep.subr.bf16.mxu0 0
      %1769 = vmatpush2.bf16.msra.mxu0 0
      %1770 = vmatprep.subr.bf16.mxu0 0
      %1771 = vmatpush2.bf16.msra.mxu0 0
      %1772 = vmatprep.subr.bf16.mxu0 0
      %1773 = vmatpush2.bf16.msra.mxu0 0
      %1774 = vmatprep.subr.bf16.mxu0 0
      %1775 = vmatpush2.bf16.msra.mxu0 0
      %1776 = vmatprep.subr.bf16.mxu0 0
      %1777 = vmatpush2.bf16.msra.mxu0 0
      %1778 = vmatprep.subr.bf16.mxu0 0
      %1779 = vmatpush2.bf16.msra.mxu0 0
      %1780 = vmatprep.mubr.bf16.mxu0 0
      %1781 = vmatmul.mubr.bf16.gmra.mxu0 %v1743
      %v1782 = vpop.f32.mrf.mxu0
      %v1783 = vadd.f32 0.0, %v1782
      %v1784 = vpop.f32.mrf.mxu0
      %v1785 = vpop.f32.mrf.mxu0
      %v1786 = vpop.f32.mrf.mxu0
      %1787 = vdwg.mxu0
      %v1789 = vsel %vm1266, %v1690, 0
      %v1792 = vsel %vm1270, %v1694, 0
      %1794 = vmatprep.subr.bf16.mxu0 0
      %1795 = vmatpush1.bf16.msra.mxu0 0
      %1796 = vmatprep.subr.bf16.mxu0 0
      %1797 = vmatpush1.bf16.msra.mxu0 0
      %1798 = vmatprep.subr.bf16.mxu0 0
      %1799 = vmatpush1.bf16.msra.mxu0 0
      %1800 = vmatprep.subr.bf16.mxu0 0
      %1801 = vmatpush1.bf16.msra.mxu0 0
      %1802 = vmatprep.subr.bf16.mxu0 0
      %1803 = vmatpush1.bf16.msra.mxu0 0
      %1804 = vmatprep.subr.bf16.mxu0 0
      %1805 = vmatpush1.bf16.msra.mxu0 0
      %1806 = vmatprep.subr.bf16.mxu0 0
      %1807 = vmatpush1.bf16.msra.mxu0 0
      %1808 = vmatprep.subr.bf16.mxu0 0
      %1809 = vmatpush1.bf16.msra.mxu0 %v1792
      %1810 = vmatprep.subr.bf16.mxu0 0
      %1811 = vmatpush2.bf16.msra.mxu0 0
      %1812 = vmatprep.subr.bf16.mxu0 0
      %1813 = vmatpush2.bf16.msra.mxu0 0
      %1814 = vmatprep.subr.bf16.mxu0 0
      %1815 = vmatpush2.bf16.msra.mxu0 0
      %1816 = vmatprep.subr.bf16.mxu0 0
      %1817 = vmatpush2.bf16.msra.mxu0 0
      %1818 = vmatprep.subr.bf16.mxu0 0
      %1819 = vmatpush2.bf16.msra.mxu0 0
      %1820 = vmatprep.subr.bf16.mxu0 0
      %1821 = vmatpush2.bf16.msra.mxu0 0
      %1822 = vmatprep.subr.bf16.mxu0 0
      %1823 = vmatpush2.bf16.msra.mxu0 0
      %1824 = vmatprep.subr.bf16.mxu0 0
      %1825 = vmatpush2.bf16.msra.mxu0 0
      %1826 = vmatprep.mubr.bf16.mxu0 0
      %1827 = vmatmul.mubr.bf16.gmra.mxu0 %v1789
      %v1828 = vpop.f32.mrf.mxu0
      %v1829 = vadd.f32 0.0, %v1828
      %v1830 = vpop.f32.mrf.mxu0
      %v1831 = vpop.f32.mrf.mxu0
      %v1832 = vpop.f32.mrf.mxu0
      %1833 = vdwg.mxu0
      %v1835 = vsel %vm1266, %v1691, 0
      %v1838 = vsel %vm1270, %v1695, 0
      %1840 = vmatprep.subr.bf16.mxu0 0
      %1841 = vmatpush1.bf16.msra.mxu0 0
      %1842 = vmatprep.subr.bf16.mxu0 0
      %1843 = vmatpush1.bf16.msra.mxu0 0
      %1844 = vmatprep.subr.bf16.mxu0 0
      %1845 = vmatpush1.bf16.msra.mxu0 0
      %1846 = vmatprep.subr.bf16.mxu0 0
      %1847 = vmatpush1.bf16.msra.mxu0 0
      %1848 = vmatprep.subr.bf16.mxu0 0
      %1849 = vmatpush1.bf16.msra.mxu0 0
      %1850 = vmatprep.subr.bf16.mxu0 0
      %1851 = vmatpush1.bf16.msra.mxu0 0
      %1852 = vmatprep.subr.bf16.mxu0 0
      %1853 = vmatpush1.bf16.msra.mxu0 0
      %1854 = vmatprep.subr.bf16.mxu0 0
      %1855 = vmatpush1.bf16.msra.mxu0 %v1838
      %1856 = vmatprep.subr.bf16.mxu0 0
      %1857 = vmatpush2.bf16.msra.mxu0 0
      %1858 = vmatprep.subr.bf16.mxu0 0
      %1859 = vmatpush2.bf16.msra.mxu0 0
      %1860 = vmatprep.subr.bf16.mxu0 0
      %1861 = vmatpush2.bf16.msra.mxu0 0
      %1862 = vmatprep.subr.bf16.mxu0 0
      %1863 = vmatpush2.bf16.msra.mxu0 0
      %1864 = vmatprep.subr.bf16.mxu0 0
      %1865 = vmatpush2.bf16.msra.mxu0 0
      %1866 = vmatprep.subr.bf16.mxu0 0
      %1867 = vmatpush2.bf16.msra.mxu0 0
      %1868 = vmatprep.subr.bf16.mxu0 0
      %1869 = vmatpush2.bf16.msra.mxu0 0
      %1870 = vmatprep.subr.bf16.mxu0 0
      %1871 = vmatpush2.bf16.msra.mxu0 0
      %1872 = vmatprep.mubr.bf16.mxu0 0
      %1873 = vmatmul.mubr.bf16.gmra.mxu0 %v1835
      %v1874 = vpop.f32.mrf.mxu0
      %v1875 = vadd.f32 0.0, %v1874
      %v1876 = vpop.f32.mrf.mxu0
      %v1877 = vpop.f32.mrf.mxu0
      %v1878 = vpop.f32.mrf.mxu0
      %1879 = vdwg.mxu0
      %v1880 = vsel %vm571, %v1737, 0.0
      %v1881 = vsel %vm571, %v1783, 0.0
      %v1882 = vadd.f32 %v1880, %v1881
      %v1883 = vsel %vm571, %v1829, 0.0
      %v1884 = vadd.f32 %v1882, %v1883
      %v1885 = vsel %vm571, %v1875, 0.0
      %v1886 = vadd.f32 %v1884, %v1885
      %v1887 = vadd.f32 %v563, %v1886
      %v1888 = vlaneseq
      %v1889 = vshrl.u32 %v1888, 7
      %v1890 = vsub.s32 4, %v1889
      %v1891 = vrot.slane %v570, %v1890
      %v1892 = vadd.f32 %v1887, %v1891
      %v1893 = vsel %vm571, %v1892, 0.0
      %1894 = vadd.xlane.f32.xlu0 %v1893
      %v1895 = vpop.xlane.xlu0 %1894
      %v1896 = vmul.f32 %v1895, %v575
      %v1897 = vsub.f32 %v1892, %v1896
      %v1898 = vmul.f32 %v1897, %v1897
      %v1899 = vsel %vm571, %v1898, 0.0
      %1900 = vadd.xlane.f32.xlu0 %v1899
      %v1901 = vpop.xlane.xlu0 %1900
      %v1902 = vmul.f32 %v1901, %v575
      %v1903 = vadd.f32 %v1902, 1e-05
      %v1904 = vrsqrt.pop %v1903
      %v1905 = vmul.f32 %v1897, %v1904
      %v1906 = vlaneseq
      %v1907 = vshrl.u32 %v1906, 7
      %v1908 = vsub.s32 2, %v1907
      %v1909 = vrot.slane %v570, %v1908
      %v1910 = vmul.f32 %v1905, %v1909
      %v1911 = vlaneseq
      %v1912 = vshrl.u32 %v1911, 7
      %v1913 = vsub.s32 3, %v1912
      %v1914 = vrot.slane %v570, %v1913
      %v1915 = vadd.f32 %v1910, %v1914
      %v1916 = vpack.c.bf16 %v1915, %v1915
      %v1917 = vld [vmem:[%s6] sm:$0xf]
      %v1918 = vld [vmem:[%s6 + $0x4] sm:$0xf]
      %v1919 = vld [vmem:[%s6 + $0x8] sm:$0xf]
      %v1920 = vld [vmem:[%s6 + $0xc] sm:$0xf]
      %v1921 = vld [vmem:[%s9] sm:$0x1]
      %v1923 = vlaneseq
      %v1924 = vshrl.u32 %v1923, 7
      %v1925 = vsub.s32 0, %v1924
      %v1926 = vrot.slane %v1921, %v1925
      %v1932 = vunpack.c.l.b16 %v1917
      %v1933 = vunpack.c.l.b16 %v1918
      %v1934 = vunpack.c.l.b16 %v1919
      %v1935 = vunpack.c.l.b16 %v1920
      %v1936 = vpack.c.b16 %v1933, %v1932
      %v1937 = vpack.c.b16 %v1935, %v1934
      %v1941 = vsel %vm571, %v1916, 0
      %1943 = vmatprep.subr.bf16.mxu0 0
      %1944 = vmatpush1.bf16.msra.mxu0 0
      %1945 = vmatprep.subr.bf16.mxu0 0
      %1946 = vmatpush1.bf16.msra.mxu0 0
      %1947 = vmatprep.subr.bf16.mxu0 0
      %1948 = vmatpush1.bf16.msra.mxu0 0
      %1949 = vmatprep.subr.bf16.mxu0 0
      %1950 = vmatpush1.bf16.msra.mxu0 0
      %1951 = vmatprep.subr.bf16.mxu0 0
      %1952 = vmatpush1.bf16.msra.mxu0 0
      %1953 = vmatprep.subr.bf16.mxu0 0
      %1954 = vmatpush1.bf16.msra.mxu0 0
      %1955 = vmatprep.subr.bf16.mxu0 0
      %1956 = vmatpush1.bf16.msra.mxu0 %v1937
      %1957 = vmatprep.subr.bf16.mxu0 0
      %1958 = vmatpush1.bf16.msra.mxu0 %v1936
      %1959 = vmatprep.subr.bf16.mxu0 0
      %1960 = vmatpush2.bf16.msra.mxu0 0
      %1961 = vmatprep.subr.bf16.mxu0 0
      %1962 = vmatpush2.bf16.msra.mxu0 0
      %1963 = vmatprep.subr.bf16.mxu0 0
      %1964 = vmatpush2.bf16.msra.mxu0 0
      %1965 = vmatprep.subr.bf16.mxu0 0
      %1966 = vmatpush2.bf16.msra.mxu0 0
      %1967 = vmatprep.subr.bf16.mxu0 0
      %1968 = vmatpush2.bf16.msra.mxu0 0
      %1969 = vmatprep.subr.bf16.mxu0 0
      %1970 = vmatpush2.bf16.msra.mxu0 0
      %1971 = vmatprep.subr.bf16.mxu0 0
      %1972 = vmatpush2.bf16.msra.mxu0 0
      %1973 = vmatprep.subr.bf16.mxu0 0
      %1974 = vmatpush2.bf16.msra.mxu0 0
      %1975 = vmatprep.mubr.bf16.mxu0 0
      %1976 = vmatmul.mubr.bf16.gmra.mxu0 %v1941
      %v1977 = vpop.f32.mrf.mxu0
      %v1978 = vadd.f32 %v1926, %v1977
      %v1979 = vpop.f32.mrf.mxu0
      %v1980 = vpop.f32.mrf.mxu0
      %v1981 = vpop.f32.mrf.mxu0
      %1982 = vdwg.mxu0
      %v1983 = vmul.f32 %v1978, 0.5
      %v1984 = vmul.f32 %v1978, 0.044715
      %v1985 = vmul.f32 %v1984, %v1978
      %v1986 = vmul.f32 %v1985, %v1978
      %v1987 = vadd.f32 %v1978, %v1986
      %v1988 = vmul.f32 %v1987, 0.7978846
      %v1989 = vtanh.pop %v1988
      %v1990 = vadd.f32 %v1989, 1.0
      %v1991 = vmul.f32 %v1983, %v1990
      %v1992 = vpack.c.bf16 %v1991, %v1991
      %v1993 = vld [vmem:[%s7] sm:$0xf]
      %v1994 = vld [vmem:[%s7 + $0x4] sm:$0xf]
      %v1995 = vld [vmem:[%s7 + $0x8] sm:$0xf]
      %v1996 = vld [vmem:[%s7 + $0xc] sm:$0xf]
      %v1997 = vld [vmem:[%s7 + $0x10] sm:$0xf]
      %v1998 = vld [vmem:[%s7 + $0x14] sm:$0xf]
      %v1999 = vld [vmem:[%s7 + $0x18] sm:$0xf]
      %v2000 = vld [vmem:[%s7 + $0x1c] sm:$0xf]
      %v2001 = vld [vmem:[%s7 + $0x20] sm:$0xf]
      %v2002 = vld [vmem:[%s7 + $0x24] sm:$0xf]
      %v2003 = vld [vmem:[%s7 + $0x28] sm:$0xf]
      %v2004 = vld [vmem:[%s7 + $0x2c] sm:$0xf]
      %v2005 = vld [vmem:[%s7 + $0x30] sm:$0xf]
      %v2006 = vld [vmem:[%s7 + $0x34] sm:$0xf]
      %v2007 = vld [vmem:[%s7 + $0x38] sm:$0xf]
      %v2008 = vld [vmem:[%s7 + $0x3c] sm:$0xf]
      %v2025 = vunpack.c.l.b16 %v1993
      %v2026 = vunpack.c.l.b16 %v1994
      %v2027 = vunpack.c.l.b16 %v1995
      %v2028 = vunpack.c.l.b16 %v1996
      %v2029 = vunpack.c.l.b16 %v1997
      %v2030 = vunpack.c.l.b16 %v1998
      %v2031 = vunpack.c.l.b16 %v1999
      %v2032 = vunpack.c.l.b16 %v2000
      %v2033 = vunpack.c.l.b16 %v2001
      %v2034 = vunpack.c.l.b16 %v2002
      %v2035 = vunpack.c.l.b16 %v2003
      %v2036 = vunpack.c.l.b16 %v2004
      %v2037 = vunpack.c.l.b16 %v2005
      %v2038 = vunpack.c.l.b16 %v2006
      %v2039 = vunpack.c.l.b16 %v2007
      %v2040 = vunpack.c.l.b16 %v2008
      %v2041 = vpack.c.b16 %v2026, %v2025
      %v2042 = vpack.c.b16 %v2028, %v2027
      %v2043 = vpack.c.b16 %v2030, %v2029
      %v2044 = vpack.c.b16 %v2032, %v2031
      %v2045 = vpack.c.b16 %v2034, %v2033
      %v2046 = vpack.c.b16 %v2036, %v2035
      %v2047 = vpack.c.b16 %v2038, %v2037
      %v2048 = vpack.c.b16 %v2040, %v2039
      %2057 = vmatprep.subr.bf16.mxu0 0
      %2058 = vmatpush1.bf16.msra.mxu0 %v2048
      %2059 = vmatprep.subr.bf16.mxu0 0
      %2060 = vmatpush1.bf16.msra.mxu0 %v2047
      %2061 = vmatprep.subr.bf16.mxu0 0
      %2062 = vmatpush1.bf16.msra.mxu0 %v2046
      %2063 = vmatprep.subr.bf16.mxu0 0
      %2064 = vmatpush1.bf16.msra.mxu0 %v2045
      %2065 = vmatprep.subr.bf16.mxu0 0
      %2066 = vmatpush1.bf16.msra.mxu0 %v2044
      %2067 = vmatprep.subr.bf16.mxu0 0
      %2068 = vmatpush1.bf16.msra.mxu0 %v2043
      %2069 = vmatprep.subr.bf16.mxu0 0
      %2070 = vmatpush1.bf16.msra.mxu0 %v2042
      %2071 = vmatprep.subr.bf16.mxu0 0
      %2072 = vmatpush1.bf16.msra.mxu0 %v2041
      %2073 = vmatprep.subr.bf16.mxu0 0
      %2074 = vmatpush2.bf16.msra.mxu0 0
      %2075 = vmatprep.subr.bf16.mxu0 0
      %2076 = vmatpush2.bf16.msra.mxu0 0
      %2077 = vmatprep.subr.bf16.mxu0 0
      %2078 = vmatpush2.bf16.msra.mxu0 0
      %2079 = vmatprep.subr.bf16.mxu0 0
      %2080 = vmatpush2.bf16.msra.mxu0 0
      %2081 = vmatprep.subr.bf16.mxu0 0
      %2082 = vmatpush2.bf16.msra.mxu0 0
      %2083 = vmatprep.subr.bf16.mxu0 0
      %2084 = vmatpush2.bf16.msra.mxu0 0
      %2085 = vmatprep.subr.bf16.mxu0 0
      %2086 = vmatpush2.bf16.msra.mxu0 0
      %2087 = vmatprep.subr.bf16.mxu0 0
      %2088 = vmatpush2.bf16.msra.mxu0 0
      %2089 = vmatprep.mubr.bf16.mxu0 0
      %2090 = vmatmul.mubr.bf16.gmra.mxu0 %v1992
      %v2091 = vpop.f32.mrf.mxu0
      %v2092 = vadd.f32 0.0, %v2091
      %v2093 = vpop.f32.mrf.mxu0
      %v2094 = vpop.f32.mrf.mxu0
      %v2095 = vpop.f32.mrf.mxu0
      %2096 = vdwg.mxu0
      %v2097 = vadd.f32 %v1892, %v2092
      %v2098 = vlaneseq
      %v2099 = vshrl.u32 %v2098, 7
      %v2100 = vsub.s32 5, %v2099
      %v2101 = vrot.slane %v570, %v2100
      %v2102 = vadd.f32 %v2097, %v2101
      %s2103 = scalar_lea.vmem %s8, 8
      %v2104 = vld [vmem:[%s2103] sm:$0x3f]
      %v2105 = vsel %vm571, %v2102, 0.0
      %2106 = vadd.xlane.f32.xlu0 %v2105
      %v2107 = vpop.xlane.xlu0 %2106
      %v2108 = vmul.f32 %v2107, %v575
      %v2109 = vsub.f32 %v2102, %v2108
      %v2110 = vmul.f32 %v2109, %v2109
      %v2111 = vsel %vm571, %v2110, 0.0
      %2112 = vadd.xlane.f32.xlu0 %v2111
      %v2113 = vpop.xlane.xlu0 %2112
      %v2114 = vmul.f32 %v2113, %v575
      %v2115 = vadd.f32 %v2114, 1e-05
      %v2116 = vrsqrt.pop %v2115
      %v2117 = vmul.f32 %v2109, %v2116
      %v2118 = vlaneseq
      %v2119 = vshrl.u32 %v2118, 7
      %v2120 = vsub.s32 0, %v2119
      %v2121 = vrot.slane %v2104, %v2120
      %v2122 = vmul.f32 %v2117, %v2121
      %v2123 = vlaneseq
      %v2124 = vshrl.u32 %v2123, 7
      %v2125 = vsub.s32 1, %v2124
      %v2126 = vrot.slane %v2104, %v2125
      %v2127 = vadd.f32 %v2122, %v2126
      %v2128 = vpack.c.bf16 %v2127, %v2127
      %2129 = vxpose.xlu0.b32.start [1/16] %v2127, 128
      %2130 = vxpose.xlu0.b32.cont [2/16] 0.0, 128
      %2131 = vxpose.xlu0.b32.cont [3/16] 0.0, 128
      %2132 = vxpose.xlu0.b32.cont [4/16] 0.0, 128
      %2133 = vxpose.xlu0.b32.cont [5/16] 0.0, 128
      %2134 = vxpose.xlu0.b32.cont [6/16] 0.0, 128
      %2135 = vxpose.xlu0.b32.cont [7/16] 0.0, 128
      %2136 = vxpose.xlu0.b32.cont [8/16] 0.0, 128
      %2137 = vxpose.xlu0.b32.cont [9/16] 0.0, 128
      %2138 = vxpose.xlu0.b32.cont [10/16] 0.0, 128
      %2139 = vxpose.xlu0.b32.cont [11/16] 0.0, 128
      %2140 = vxpose.xlu0.b32.cont [12/16] 0.0, 128
      %2141 = vxpose.xlu0.b32.cont [13/16] 0.0, 128
      %2142 = vxpose.xlu0.b32.cont [14/16] 0.0, 128
      %2143 = vxpose.xlu0.b32.cont [15/16] 0.0, 128
      %2144 = vxpose.xlu0.b32.end [16/16] 0.0, 128
      %v2145 = vpop.trf.xlu0
      %v2146 = vpop.trf.xlu0
      %v2147 = vpop.trf.xlu0
      %v2148 = vpop.trf.xlu0
      %v2149 = vpop.trf.xlu0
      %v2150 = vpop.trf.xlu0
      %v2151 = vpop.trf.xlu0
      %v2152 = vpop.trf.xlu0
      %v2153 = vpop.trf.xlu0
      %v2154 = vpop.trf.xlu0
      %v2155 = vpop.trf.xlu0
      %v2156 = vpop.trf.xlu0
      %v2157 = vpop.trf.xlu0
      %v2158 = vpop.trf.xlu0
      %v2159 = vpop.trf.xlu0
      %v2160 = vpop.trf.xlu0
      %v2161 = vpack.c.bf16 %v2146, %v2145
      %v2162 = vpack.c.bf16 %v2148, %v2147
      %s2163 = scalar_lea.vmem %s3, 128
      %v2164 = vld [vmem:[%s2163] sm:$0xf]
      %v2165 = vld [vmem:[%s2163 + $0x4] sm:$0xf]
      %v2166 = vld [vmem:[%s2163 + $0x8] sm:$0xf]
      %v2167 = vld [vmem:[%s2163 + $0xc] sm:$0xf]
      %v2168 = vld [vmem:[%s2163 + $0x10] sm:$0xf]
      %v2169 = vld [vmem:[%s2163 + $0x14] sm:$0xf]
      %v2170 = vld [vmem:[%s2163 + $0x18] sm:$0xf]
      %v2171 = vld [vmem:[%s2163 + $0x1c] sm:$0xf]
      %v2172 = vld [vmem:[%s2163 + $0x20] sm:$0xf]
      %v2173 = vld [vmem:[%s2163 + $0x24] sm:$0xf]
      %v2174 = vld [vmem:[%s2163 + $0x28] sm:$0xf]
      %v2175 = vld [vmem:[%s2163 + $0x2c] sm:$0xf]
      %v2176 = vld [vmem:[%s2163 + $0x30] sm:$0xf]
      %v2177 = vld [vmem:[%s2163 + $0x34] sm:$0xf]
      %v2178 = vld [vmem:[%s2163 + $0x38] sm:$0xf]
      %v2179 = vld [vmem:[%s2163 + $0x3c] sm:$0xf]
      %v2180 = vld [vmem:[%s2163 + $0x40] sm:$0xf]
      %v2181 = vld [vmem:[%s2163 + $0x44] sm:$0xf]
      %v2182 = vld [vmem:[%s2163 + $0x48] sm:$0xf]
      %v2183 = vld [vmem:[%s2163 + $0x4c] sm:$0xf]
      %v2184 = vld [vmem:[%s2163 + $0x50] sm:$0xf]
      %v2185 = vld [vmem:[%s2163 + $0x54] sm:$0xf]
      %v2186 = vld [vmem:[%s2163 + $0x58] sm:$0xf]
      %v2187 = vld [vmem:[%s2163 + $0x5c] sm:$0xf]
      %v2188 = vld [vmem:[%s2163 + $0x60] sm:$0xf]
      %v2189 = vld [vmem:[%s2163 + $0x64] sm:$0xf]
      %v2190 = vld [vmem:[%s2163 + $0x68] sm:$0xf]
      %v2191 = vld [vmem:[%s2163 + $0x6c] sm:$0xf]
      %v2192 = vld [vmem:[%s2163 + $0x70] sm:$0xf]
      %v2193 = vld [vmem:[%s2163 + $0x74] sm:$0xf]
      %v2194 = vld [vmem:[%s2163 + $0x78] sm:$0xf]
      %v2195 = vld [vmem:[%s2163 + $0x7c] sm:$0xf]
      %v2200 = vunpack.c.l.b16 %v2164
      %v2201 = vunpack.c.l.b16 %v2165
      %v2202 = vunpack.c.l.b16 %v2166
      %v2203 = vunpack.c.l.b16 %v2167
      %v2204 = vpack.c.b16 %v2201, %v2200
      %v2205 = vpack.c.b16 %v2203, %v2202
      %v2209 = vsel %vm571, %v2128, 0
      %2211 = vmatprep.subr.bf16.mxu0 0
      %2212 = vmatpush1.bf16.msra.mxu0 0
      %2213 = vmatprep.subr.bf16.mxu0 0
      %2214 = vmatpush1.bf16.msra.mxu0 0
      %2215 = vmatprep.subr.bf16.mxu0 0
      %2216 = vmatpush1.bf16.msra.mxu0 0
      %2217 = vmatprep.subr.bf16.mxu0 0
      %2218 = vmatpush1.bf16.msra.mxu0 0
      %2219 = vmatprep.subr.bf16.mxu0 0
      %2220 = vmatpush1.bf16.msra.mxu0 0
      %2221 = vmatprep.subr.bf16.mxu0 0
      %2222 = vmatpush1.bf16.msra.mxu0 0
      %2223 = vmatprep.subr.bf16.mxu0 0
      %2224 = vmatpush1.bf16.msra.mxu0 %v2205
      %2225 = vmatprep.subr.bf16.mxu0 0
      %2226 = vmatpush1.bf16.msra.mxu0 %v2204
      %2227 = vmatprep.subr.bf16.mxu0 0
      %2228 = vmatpush2.bf16.msra.mxu0 0
      %2229 = vmatprep.subr.bf16.mxu0 0
      %2230 = vmatpush2.bf16.msra.mxu0 0
      %2231 = vmatprep.subr.bf16.mxu0 0
      %2232 = vmatpush2.bf16.msra.mxu0 0
      %2233 = vmatprep.subr.bf16.mxu0 0
      %2234 = vmatpush2.bf16.msra.mxu0 0
      %2235 = vmatprep.subr.bf16.mxu0 0
      %2236 = vmatpush2.bf16.msra.mxu0 0
      %2237 = vmatprep.subr.bf16.mxu0 0
      %2238 = vmatpush2.bf16.msra.mxu0 0
      %2239 = vmatprep.subr.bf16.mxu0 0
      %2240 = vmatpush2.bf16.msra.mxu0 0
      %2241 = vmatprep.subr.bf16.mxu0 0
      %2242 = vmatpush2.bf16.msra.mxu0 0
      %2243 = vmatprep.mubr.bf16.mxu0 0
      %2244 = vmatmul.mubr.bf16.gmra.mxu0 %v2209
      %v2245 = vpop.f32.mrf.mxu0
      %v2246 = vadd.f32 0.0, %v2245
      %v2247 = vpop.f32.mrf.mxu0
      %v2248 = vpop.f32.mrf.mxu0
      %v2249 = vpop.f32.mrf.mxu0
      %2250 = vdwg.mxu0
      %v2255 = vunpack.c.l.b16 %v2168
      %v2256 = vunpack.c.l.b16 %v2169
      %v2257 = vunpack.c.l.b16 %v2170
      %v2258 = vunpack.c.l.b16 %v2171
      %v2259 = vpack.c.b16 %v2256, %v2255
      %v2260 = vpack.c.b16 %v2258, %v2257
      %2263 = vmatprep.subr.bf16.mxu0 0
      %2264 = vmatpush1.bf16.msra.mxu0 0
      %2265 = vmatprep.subr.bf16.mxu0 0
      %2266 = vmatpush1.bf16.msra.mxu0 0
      %2267 = vmatprep.subr.bf16.mxu0 0
      %2268 = vmatpush1.bf16.msra.mxu0 0
      %2269 = vmatprep.subr.bf16.mxu0 0
      %2270 = vmatpush1.bf16.msra.mxu0 0
      %2271 = vmatprep.subr.bf16.mxu0 0
      %2272 = vmatpush1.bf16.msra.mxu0 0
      %2273 = vmatprep.subr.bf16.mxu0 0
      %2274 = vmatpush1.bf16.msra.mxu0 0
      %2275 = vmatprep.subr.bf16.mxu0 0
      %2276 = vmatpush1.bf16.msra.mxu0 %v2260
      %2277 = vmatprep.subr.bf16.mxu0 0
      %2278 = vmatpush1.bf16.msra.mxu0 %v2259
      %2279 = vmatprep.subr.bf16.mxu0 0
      %2280 = vmatpush2.bf16.msra.mxu0 0
      %2281 = vmatprep.subr.bf16.mxu0 0
      %2282 = vmatpush2.bf16.msra.mxu0 0
      %2283 = vmatprep.subr.bf16.mxu0 0
      %2284 = vmatpush2.bf16.msra.mxu0 0
      %2285 = vmatprep.subr.bf16.mxu0 0
      %2286 = vmatpush2.bf16.msra.mxu0 0
      %2287 = vmatprep.subr.bf16.mxu0 0
      %2288 = vmatpush2.bf16.msra.mxu0 0
      %2289 = vmatprep.subr.bf16.mxu0 0
      %2290 = vmatpush2.bf16.msra.mxu0 0
      %2291 = vmatprep.subr.bf16.mxu0 0
      %2292 = vmatpush2.bf16.msra.mxu0 0
      %2293 = vmatprep.subr.bf16.mxu0 0
      %2294 = vmatpush2.bf16.msra.mxu0 0
      %2295 = vmatprep.mubr.bf16.mxu0 0
      %2296 = vmatmul.mubr.bf16.gmra.mxu0 %v2209
      %v2297 = vpop.f32.mrf.mxu0
      %v2298 = vadd.f32 0.0, %v2297
      %v2299 = vpop.f32.mrf.mxu0
      %v2300 = vpop.f32.mrf.mxu0
      %v2301 = vpop.f32.mrf.mxu0
      %2302 = vdwg.mxu0
      %v2307 = vunpack.c.l.b16 %v2172
      %v2308 = vunpack.c.l.b16 %v2173
      %v2309 = vunpack.c.l.b16 %v2174
      %v2310 = vunpack.c.l.b16 %v2175
      %v2311 = vpack.c.b16 %v2308, %v2307
      %v2312 = vpack.c.b16 %v2310, %v2309
      %2315 = vmatprep.subr.bf16.mxu0 0
      %2316 = vmatpush1.bf16.msra.mxu0 0
      %2317 = vmatprep.subr.bf16.mxu0 0
      %2318 = vmatpush1.bf16.msra.mxu0 0
      %2319 = vmatprep.subr.bf16.mxu0 0
      %2320 = vmatpush1.bf16.msra.mxu0 0
      %2321 = vmatprep.subr.bf16.mxu0 0
      %2322 = vmatpush1.bf16.msra.mxu0 0
      %2323 = vmatprep.subr.bf16.mxu0 0
      %2324 = vmatpush1.bf16.msra.mxu0 0
      %2325 = vmatprep.subr.bf16.mxu0 0
      %2326 = vmatpush1.bf16.msra.mxu0 0
      %2327 = vmatprep.subr.bf16.mxu0 0
      %2328 = vmatpush1.bf16.msra.mxu0 %v2312
      %2329 = vmatprep.subr.bf16.mxu0 0
      %2330 = vmatpush1.bf16.msra.mxu0 %v2311
      %2331 = vmatprep.subr.bf16.mxu0 0
      %2332 = vmatpush2.bf16.msra.mxu0 0
      %2333 = vmatprep.subr.bf16.mxu0 0
      %2334 = vmatpush2.bf16.msra.mxu0 0
      %2335 = vmatprep.subr.bf16.mxu0 0
      %2336 = vmatpush2.bf16.msra.mxu0 0
      %2337 = vmatprep.subr.bf16.mxu0 0
      %2338 = vmatpush2.bf16.msra.mxu0 0
      %2339 = vmatprep.subr.bf16.mxu0 0
      %2340 = vmatpush2.bf16.msra.mxu0 0
      %2341 = vmatprep.subr.bf16.mxu0 0
      %2342 = vmatpush2.bf16.msra.mxu0 0
      %2343 = vmatprep.subr.bf16.mxu0 0
      %2344 = vmatpush2.bf16.msra.mxu0 0
      %2345 = vmatprep.subr.bf16.mxu0 0
      %2346 = vmatpush2.bf16.msra.mxu0 0
      %2347 = vmatprep.mubr.bf16.mxu0 0
      %2348 = vmatmul.mubr.bf16.gmra.mxu0 %v2209
      %v2349 = vpop.f32.mrf.mxu0
      %v2350 = vadd.f32 0.0, %v2349
      %v2351 = vpop.f32.mrf.mxu0
      %v2352 = vpop.f32.mrf.mxu0
      %v2353 = vpop.f32.mrf.mxu0
      %2354 = vdwg.mxu0
      %v2359 = vunpack.c.l.b16 %v2176
      %v2360 = vunpack.c.l.b16 %v2177
      %v2361 = vunpack.c.l.b16 %v2178
      %v2362 = vunpack.c.l.b16 %v2179
      %v2363 = vpack.c.b16 %v2360, %v2359
      %v2364 = vpack.c.b16 %v2362, %v2361
      %2367 = vmatprep.subr.bf16.mxu0 0
      %2368 = vmatpush1.bf16.msra.mxu0 0
      %2369 = vmatprep.subr.bf16.mxu0 0
      %2370 = vmatpush1.bf16.msra.mxu0 0
      %2371 = vmatprep.subr.bf16.mxu0 0
      %2372 = vmatpush1.bf16.msra.mxu0 0
      %2373 = vmatprep.subr.bf16.mxu0 0
      %2374 = vmatpush1.bf16.msra.mxu0 0
      %2375 = vmatprep.subr.bf16.mxu0 0
      %2376 = vmatpush1.bf16.msra.mxu0 0
      %2377 = vmatprep.subr.bf16.mxu0 0
      %2378 = vmatpush1.bf16.msra.mxu0 0
      %2379 = vmatprep.subr.bf16.mxu0 0
      %2380 = vmatpush1.bf16.msra.mxu0 %v2364
      %2381 = vmatprep.subr.bf16.mxu0 0
      %2382 = vmatpush1.bf16.msra.mxu0 %v2363
      %2383 = vmatprep.subr.bf16.mxu0 0
      %2384 = vmatpush2.bf16.msra.mxu0 0
      %2385 = vmatprep.subr.bf16.mxu0 0
      %2386 = vmatpush2.bf16.msra.mxu0 0
      %2387 = vmatprep.subr.bf16.mxu0 0
      %2388 = vmatpush2.bf16.msra.mxu0 0
      %2389 = vmatprep.subr.bf16.mxu0 0
      %2390 = vmatpush2.bf16.msra.mxu0 0
      %2391 = vmatprep.subr.bf16.mxu0 0
      %2392 = vmatpush2.bf16.msra.mxu0 0
      %2393 = vmatprep.subr.bf16.mxu0 0
      %2394 = vmatpush2.bf16.msra.mxu0 0
      %2395 = vmatprep.subr.bf16.mxu0 0
      %2396 = vmatpush2.bf16.msra.mxu0 0
      %2397 = vmatprep.subr.bf16.mxu0 0
      %2398 = vmatpush2.bf16.msra.mxu0 0
      %2399 = vmatprep.mubr.bf16.mxu0 0
      %2400 = vmatmul.mubr.bf16.gmra.mxu0 %v2209
      %v2401 = vpop.f32.mrf.mxu0
      %v2402 = vadd.f32 0.0, %v2401
      %v2403 = vpop.f32.mrf.mxu0
      %v2404 = vpop.f32.mrf.mxu0
      %v2405 = vpop.f32.mrf.mxu0
      %2406 = vdwg.mxu0
      %v2411 = vunpack.c.l.b16 %v2180
      %v2412 = vunpack.c.l.b16 %v2181
      %v2413 = vunpack.c.l.b16 %v2182
      %v2414 = vunpack.c.l.b16 %v2183
      %v2415 = vpack.c.b16 %v2412, %v2411
      %v2416 = vpack.c.b16 %v2414, %v2413
      %2419 = vmatprep.subr.bf16.mxu0 0
      %2420 = vmatpush1.bf16.msra.mxu0 0
      %2421 = vmatprep.subr.bf16.mxu0 0
      %2422 = vmatpush1.bf16.msra.mxu0 0
      %2423 = vmatprep.subr.bf16.mxu0 0
      %2424 = vmatpush1.bf16.msra.mxu0 0
      %2425 = vmatprep.subr.bf16.mxu0 0
      %2426 = vmatpush1.bf16.msra.mxu0 0
      %2427 = vmatprep.subr.bf16.mxu0 0
      %2428 = vmatpush1.bf16.msra.mxu0 0
      %2429 = vmatprep.subr.bf16.mxu0 0
      %2430 = vmatpush1.bf16.msra.mxu0 0
      %2431 = vmatprep.subr.bf16.mxu0 0
      %2432 = vmatpush1.bf16.msra.mxu0 %v2416
      %2433 = vmatprep.subr.bf16.mxu0 0
      %2434 = vmatpush1.bf16.msra.mxu0 %v2415
      %2435 = vmatprep.subr.bf16.mxu0 0
      %2436 = vmatpush2.bf16.msra.mxu0 0
      %2437 = vmatprep.subr.bf16.mxu0 0
      %2438 = vmatpush2.bf16.msra.mxu0 0
      %2439 = vmatprep.subr.bf16.mxu0 0
      %2440 = vmatpush2.bf16.msra.mxu0 0
      %2441 = vmatprep.subr.bf16.mxu0 0
      %2442 = vmatpush2.bf16.msra.mxu0 0
      %2443 = vmatprep.subr.bf16.mxu0 0
      %2444 = vmatpush2.bf16.msra.mxu0 0
      %2445 = vmatprep.subr.bf16.mxu0 0
      %2446 = vmatpush2.bf16.msra.mxu0 0
      %2447 = vmatprep.subr.bf16.mxu0 0
      %2448 = vmatpush2.bf16.msra.mxu0 0
      %2449 = vmatprep.subr.bf16.mxu0 0
      %2450 = vmatpush2.bf16.msra.mxu0 0
      %2451 = vmatprep.mubr.bf16.mxu0 0
      %2452 = vmatmul.mubr.bf16.gmra.mxu0 %v2209
      %v2453 = vpop.f32.mrf.mxu0
      %v2454 = vadd.f32 0.0, %v2453
      %v2455 = vpop.f32.mrf.mxu0
      %v2456 = vpop.f32.mrf.mxu0
      %v2457 = vpop.f32.mrf.mxu0
      %2458 = vdwg.mxu0
      %v2463 = vunpack.c.l.b16 %v2184
      %v2464 = vunpack.c.l.b16 %v2185
      %v2465 = vunpack.c.l.b16 %v2186
      %v2466 = vunpack.c.l.b16 %v2187
      %v2467 = vpack.c.b16 %v2464, %v2463
      %v2468 = vpack.c.b16 %v2466, %v2465
      %2471 = vmatprep.subr.bf16.mxu0 0
      %2472 = vmatpush1.bf16.msra.mxu0 0
      %2473 = vmatprep.subr.bf16.mxu0 0
      %2474 = vmatpush1.bf16.msra.mxu0 0
      %2475 = vmatprep.subr.bf16.mxu0 0
      %2476 = vmatpush1.bf16.msra.mxu0 0
      %2477 = vmatprep.subr.bf16.mxu0 0
      %2478 = vmatpush1.bf16.msra.mxu0 0
      %2479 = vmatprep.subr.bf16.mxu0 0
      %2480 = vmatpush1.bf16.msra.mxu0 0
      %2481 = vmatprep.subr.bf16.mxu0 0
      %2482 = vmatpush1.bf16.msra.mxu0 0
      %2483 = vmatprep.subr.bf16.mxu0 0
      %2484 = vmatpush1.bf16.msra.mxu0 %v2468
      %2485 = vmatprep.subr.bf16.mxu0 0
      %2486 = vmatpush1.bf16.msra.mxu0 %v2467
      %2487 = vmatprep.subr.bf16.mxu0 0
      %2488 = vmatpush2.bf16.msra.mxu0 0
      %2489 = vmatprep.subr.bf16.mxu0 0
      %2490 = vmatpush2.bf16.msra.mxu0 0
      %2491 = vmatprep.subr.bf16.mxu0 0
      %2492 = vmatpush2.bf16.msra.mxu0 0
      %2493 = vmatprep.subr.bf16.mxu0 0
      %2494 = vmatpush2.bf16.msra.mxu0 0
      %2495 = vmatprep.subr.bf16.mxu0 0
      %2496 = vmatpush2.bf16.msra.mxu0 0
      %2497 = vmatprep.subr.bf16.mxu0 0
      %2498 = vmatpush2.bf16.msra.mxu0 0
      %2499 = vmatprep.subr.bf16.mxu0 0
      %2500 = vmatpush2.bf16.msra.mxu0 0
      %2501 = vmatprep.subr.bf16.mxu0 0
      %2502 = vmatpush2.bf16.msra.mxu0 0
      %2503 = vmatprep.mubr.bf16.mxu0 0
      %2504 = vmatmul.mubr.bf16.gmra.mxu0 %v2209
      %v2505 = vpop.f32.mrf.mxu0
      %v2506 = vadd.f32 0.0, %v2505
      %v2507 = vpop.f32.mrf.mxu0
      %v2508 = vpop.f32.mrf.mxu0
      %v2509 = vpop.f32.mrf.mxu0
      %2510 = vdwg.mxu0
      %v2515 = vunpack.c.l.b16 %v2188
      %v2516 = vunpack.c.l.b16 %v2189
      %v2517 = vunpack.c.l.b16 %v2190
      %v2518 = vunpack.c.l.b16 %v2191
      %v2519 = vpack.c.b16 %v2516, %v2515
      %v2520 = vpack.c.b16 %v2518, %v2517
      %2523 = vmatprep.subr.bf16.mxu0 0
      %2524 = vmatpush1.bf16.msra.mxu0 0
      %2525 = vmatprep.subr.bf16.mxu0 0
      %2526 = vmatpush1.bf16.msra.mxu0 0
      %2527 = vmatprep.subr.bf16.mxu0 0
      %2528 = vmatpush1.bf16.msra.mxu0 0
      %2529 = vmatprep.subr.bf16.mxu0 0
      %2530 = vmatpush1.bf16.msra.mxu0 0
      %2531 = vmatprep.subr.bf16.mxu0 0
      %2532 = vmatpush1.bf16.msra.mxu0 0
      %2533 = vmatprep.subr.bf16.mxu0 0
      %2534 = vmatpush1.bf16.msra.mxu0 0
      %2535 = vmatprep.subr.bf16.mxu0 0
      %2536 = vmatpush1.bf16.msra.mxu0 %v2520
      %2537 = vmatprep.subr.bf16.mxu0 0
      %2538 = vmatpush1.bf16.msra.mxu0 %v2519
      %2539 = vmatprep.subr.bf16.mxu0 0
      %2540 = vmatpush2.bf16.msra.mxu0 0
      %2541 = vmatprep.subr.bf16.mxu0 0
      %2542 = vmatpush2.bf16.msra.mxu0 0
      %2543 = vmatprep.subr.bf16.mxu0 0
      %2544 = vmatpush2.bf16.msra.mxu0 0
      %2545 = vmatprep.subr.bf16.mxu0 0
      %2546 = vmatpush2.bf16.msra.mxu0 0
      %2547 = vmatprep.subr.bf16.mxu0 0
      %2548 = vmatpush2.bf16.msra.mxu0 0
      %2549 = vmatprep.subr.bf16.mxu0 0
      %2550 = vmatpush2.bf16.msra.mxu0 0
      %2551 = vmatprep.subr.bf16.mxu0 0
      %2552 = vmatpush2.bf16.msra.mxu0 0
      %2553 = vmatprep.subr.bf16.mxu0 0
      %2554 = vmatpush2.bf16.msra.mxu0 0
      %2555 = vmatprep.mubr.bf16.mxu0 0
      %2556 = vmatmul.mubr.bf16.gmra.mxu0 %v2209
      %v2557 = vpop.f32.mrf.mxu0
      %v2558 = vadd.f32 0.0, %v2557
      %v2559 = vpop.f32.mrf.mxu0
      %v2560 = vpop.f32.mrf.mxu0
      %v2561 = vpop.f32.mrf.mxu0
      %2562 = vdwg.mxu0
      %v2567 = vunpack.c.l.b16 %v2192
      %v2568 = vunpack.c.l.b16 %v2193
      %v2569 = vunpack.c.l.b16 %v2194
      %v2570 = vunpack.c.l.b16 %v2195
      %v2571 = vpack.c.b16 %v2568, %v2567
      %v2572 = vpack.c.b16 %v2570, %v2569
      %2575 = vmatprep.subr.bf16.mxu0 0
      %2576 = vmatpush1.bf16.msra.mxu0 0
      %2577 = vmatprep.subr.bf16.mxu0 0
      %2578 = vmatpush1.bf16.msra.mxu0 0
      %2579 = vmatprep.subr.bf16.mxu0 0
      %2580 = vmatpush1.bf16.msra.mxu0 0
      %2581 = vmatprep.subr.bf16.mxu0 0
      %2582 = vmatpush1.bf16.msra.mxu0 0
      %2583 = vmatprep.subr.bf16.mxu0 0
      %2584 = vmatpush1.bf16.msra.mxu0 0
      %2585 = vmatprep.subr.bf16.mxu0 0
      %2586 = vmatpush1.bf16.msra.mxu0 0
      %2587 = vmatprep.subr.bf16.mxu0 0
      %2588 = vmatpush1.bf16.msra.mxu0 %v2572
      %2589 = vmatprep.subr.bf16.mxu0 0
      %2590 = vmatpush1.bf16.msra.mxu0 %v2571
      %2591 = vmatprep.subr.bf16.mxu0 0
      %2592 = vmatpush2.bf16.msra.mxu0 0
      %2593 = vmatprep.subr.bf16.mxu0 0
      %2594 = vmatpush2.bf16.msra.mxu0 0
      %2595 = vmatprep.subr.bf16.mxu0 0
      %2596 = vmatpush2.bf16.msra.mxu0 0
      %2597 = vmatprep.subr.bf16.mxu0 0
      %2598 = vmatpush2.bf16.msra.mxu0 0
      %2599 = vmatprep.subr.bf16.mxu0 0
      %2600 = vmatpush2.bf16.msra.mxu0 0
      %2601 = vmatprep.subr.bf16.mxu0 0
      %2602 = vmatpush2.bf16.msra.mxu0 0
      %2603 = vmatprep.subr.bf16.mxu0 0
      %2604 = vmatpush2.bf16.msra.mxu0 0
      %2605 = vmatprep.subr.bf16.mxu0 0
      %2606 = vmatpush2.bf16.msra.mxu0 0
      %2607 = vmatprep.mubr.bf16.mxu0 0
      %2608 = vmatmul.mubr.bf16.gmra.mxu0 %v2209
      %v2609 = vpop.f32.mrf.mxu0
      %v2610 = vadd.f32 0.0, %v2609
      %v2611 = vpop.f32.mrf.mxu0
      %v2612 = vpop.f32.mrf.mxu0
      %v2613 = vpop.f32.mrf.mxu0
      %2614 = vdwg.mxu0
      %s2615 = scalar_lea.vmem %s4, 16
      %v2616 = vld [vmem:[%s2615] sm:$0xf]
      %v2617 = vld [vmem:[%s2615 + $0x4] sm:$0xf]
      %v2618 = vld [vmem:[%s2615 + $0x8] sm:$0xf]
      %v2619 = vld [vmem:[%s2615 + $0xc] sm:$0xf]
      %v2621 = vsel %vm571, %v2616, 0
      %2623 = vmatprep.subr.bf16.mxu0 0
      %2624 = vmatpush1.bf16.msra.mxu0 0
      %2625 = vmatprep.subr.bf16.mxu0 0
      %2626 = vmatpush1.bf16.msra.mxu0 0
      %2627 = vmatprep.subr.bf16.mxu0 0
      %2628 = vmatpush1.bf16.msra.mxu0 0
      %2629 = vmatprep.subr.bf16.mxu0 0
      %2630 = vmatpush1.bf16.msra.mxu0 0
      %2631 = vmatprep.subr.bf16.mxu0 0
      %2632 = vmatpush1.bf16.msra.mxu0 0
      %2633 = vmatprep.subr.bf16.mxu0 0
      %2634 = vmatpush1.bf16.msra.mxu0 0
      %2635 = vmatprep.subr.bf16.mxu0 0
      %2636 = vmatpush1.bf16.msra.mxu0 %v2162
      %2637 = vmatprep.subr.bf16.mxu0 0
      %2638 = vmatpush1.bf16.msra.mxu0 %v2161
      %2639 = vmatprep.subr.bf16.mxu0 0
      %2640 = vmatpush2.bf16.msra.mxu0 0
      %2641 = vmatprep.subr.bf16.mxu0 0
      %2642 = vmatpush2.bf16.msra.mxu0 0
      %2643 = vmatprep.subr.bf16.mxu0 0
      %2644 = vmatpush2.bf16.msra.mxu0 0
      %2645 = vmatprep.subr.bf16.mxu0 0
      %2646 = vmatpush2.bf16.msra.mxu0 0
      %2647 = vmatprep.subr.bf16.mxu0 0
      %2648 = vmatpush2.bf16.msra.mxu0 0
      %2649 = vmatprep.subr.bf16.mxu0 0
      %2650 = vmatpush2.bf16.msra.mxu0 0
      %2651 = vmatprep.subr.bf16.mxu0 0
      %2652 = vmatpush2.bf16.msra.mxu0 0
      %2653 = vmatprep.subr.bf16.mxu0 0
      %2654 = vmatpush2.bf16.msra.mxu0 0
      %2655 = vmatprep.mubr.bf16.mxu0 0
      %2656 = vmatmul.mubr.bf16.gmra.mxu0 %v2621
      %v2657 = vpop.f32.mrf.mxu0
      %v2658 = vadd.f32 0.0, %v2657
      %v2659 = vpop.f32.mrf.mxu0
      %v2660 = vpop.f32.mrf.mxu0
      %v2661 = vpop.f32.mrf.mxu0
      %2662 = vdwg.mxu0
      %v2664 = vsel %vm571, %v2617, 0
      %2666 = vmatprep.subr.bf16.mxu0 0
      %2667 = vmatpush1.bf16.msra.mxu0 0
      %2668 = vmatprep.subr.bf16.mxu0 0
      %2669 = vmatpush1.bf16.msra.mxu0 0
      %2670 = vmatprep.subr.bf16.mxu0 0
      %2671 = vmatpush1.bf16.msra.mxu0 0
      %2672 = vmatprep.subr.bf16.mxu0 0
      %2673 = vmatpush1.bf16.msra.mxu0 0
      %2674 = vmatprep.subr.bf16.mxu0 0
      %2675 = vmatpush1.bf16.msra.mxu0 0
      %2676 = vmatprep.subr.bf16.mxu0 0
      %2677 = vmatpush1.bf16.msra.mxu0 0
      %2678 = vmatprep.subr.bf16.mxu0 0
      %2679 = vmatpush1.bf16.msra.mxu0 %v2162
      %2680 = vmatprep.subr.bf16.mxu0 0
      %2681 = vmatpush1.bf16.msra.mxu0 %v2161
      %2682 = vmatprep.subr.bf16.mxu0 0
      %2683 = vmatpush2.bf16.msra.mxu0 0
      %2684 = vmatprep.subr.bf16.mxu0 0
      %2685 = vmatpush2.bf16.msra.mxu0 0
      %2686 = vmatprep.subr.bf16.mxu0 0
      %2687 = vmatpush2.bf16.msra.mxu0 0
      %2688 = vmatprep.subr.bf16.mxu0 0
      %2689 = vmatpush2.bf16.msra.mxu0 0
      %2690 = vmatprep.subr.bf16.mxu0 0
      %2691 = vmatpush2.bf16.msra.mxu0 0
      %2692 = vmatprep.subr.bf16.mxu0 0
      %2693 = vmatpush2.bf16.msra.mxu0 0
      %2694 = vmatprep.subr.bf16.mxu0 0
      %2695 = vmatpush2.bf16.msra.mxu0 0
      %2696 = vmatprep.subr.bf16.mxu0 0
      %2697 = vmatpush2.bf16.msra.mxu0 0
      %2698 = vmatprep.mubr.bf16.mxu0 0
      %2699 = vmatmul.mubr.bf16.gmra.mxu0 %v2664
      %v2700 = vpop.f32.mrf.mxu0
      %v2701 = vadd.f32 0.0, %v2700
      %v2702 = vpop.f32.mrf.mxu0
      %v2703 = vpop.f32.mrf.mxu0
      %v2704 = vpop.f32.mrf.mxu0
      %2705 = vdwg.mxu0
      %v2707 = vsel %vm571, %v2618, 0
      %2709 = vmatprep.subr.bf16.mxu0 0
      %2710 = vmatpush1.bf16.msra.mxu0 0
      %2711 = vmatprep.subr.bf16.mxu0 0
      %2712 = vmatpush1.bf16.msra.mxu0 0
      %2713 = vmatprep.subr.bf16.mxu0 0
      %2714 = vmatpush1.bf16.msra.mxu0 0
      %2715 = vmatprep.subr.bf16.mxu0 0
      %2716 = vmatpush1.bf16.msra.mxu0 0
      %2717 = vmatprep.subr.bf16.mxu0 0
      %2718 = vmatpush1.bf16.msra.mxu0 0
      %2719 = vmatprep.subr.bf16.mxu0 0
      %2720 = vmatpush1.bf16.msra.mxu0 0
      %2721 = vmatprep.subr.bf16.mxu0 0
      %2722 = vmatpush1.bf16.msra.mxu0 %v2162
      %2723 = vmatprep.subr.bf16.mxu0 0
      %2724 = vmatpush1.bf16.msra.mxu0 %v2161
      %2725 = vmatprep.subr.bf16.mxu0 0
      %2726 = vmatpush2.bf16.msra.mxu0 0
      %2727 = vmatprep.subr.bf16.mxu0 0
      %2728 = vmatpush2.bf16.msra.mxu0 0
      %2729 = vmatprep.subr.bf16.mxu0 0
      %2730 = vmatpush2.bf16.msra.mxu0 0
      %2731 = vmatprep.subr.bf16.mxu0 0
      %2732 = vmatpush2.bf16.msra.mxu0 0
      %2733 = vmatprep.subr.bf16.mxu0 0
      %2734 = vmatpush2.bf16.msra.mxu0 0
      %2735 = vmatprep.subr.bf16.mxu0 0
      %2736 = vmatpush2.bf16.msra.mxu0 0
      %2737 = vmatprep.subr.bf16.mxu0 0
      %2738 = vmatpush2.bf16.msra.mxu0 0
      %2739 = vmatprep.subr.bf16.mxu0 0
      %2740 = vmatpush2.bf16.msra.mxu0 0
      %2741 = vmatprep.mubr.bf16.mxu0 0
      %2742 = vmatmul.mubr.bf16.gmra.mxu0 %v2707
      %v2743 = vpop.f32.mrf.mxu0
      %v2744 = vadd.f32 0.0, %v2743
      %v2745 = vpop.f32.mrf.mxu0
      %v2746 = vpop.f32.mrf.mxu0
      %v2747 = vpop.f32.mrf.mxu0
      %2748 = vdwg.mxu0
      %v2750 = vsel %vm571, %v2619, 0
      %2752 = vmatprep.subr.bf16.mxu0 0
      %2753 = vmatpush1.bf16.msra.mxu0 0
      %2754 = vmatprep.subr.bf16.mxu0 0
      %2755 = vmatpush1.bf16.msra.mxu0 0
      %2756 = vmatprep.subr.bf16.mxu0 0
      %2757 = vmatpush1.bf16.msra.mxu0 0
      %2758 = vmatprep.subr.bf16.mxu0 0
      %2759 = vmatpush1.bf16.msra.mxu0 0
      %2760 = vmatprep.subr.bf16.mxu0 0
      %2761 = vmatpush1.bf16.msra.mxu0 0
      %2762 = vmatprep.subr.bf16.mxu0 0
      %2763 = vmatpush1.bf16.msra.mxu0 0
      %2764 = vmatprep.subr.bf16.mxu0 0
      %2765 = vmatpush1.bf16.msra.mxu0 %v2162
      %2766 = vmatprep.subr.bf16.mxu0 0
      %2767 = vmatpush1.bf16.msra.mxu0 %v2161
      %2768 = vmatprep.subr.bf16.mxu0 0
      %2769 = vmatpush2.bf16.msra.mxu0 0
      %2770 = vmatprep.subr.bf16.mxu0 0
      %2771 = vmatpush2.bf16.msra.mxu0 0
      %2772 = vmatprep.subr.bf16.mxu0 0
      %2773 = vmatpush2.bf16.msra.mxu0 0
      %2774 = vmatprep.subr.bf16.mxu0 0
      %2775 = vmatpush2.bf16.msra.mxu0 0
      %2776 = vmatprep.subr.bf16.mxu0 0
      %2777 = vmatpush2.bf16.msra.mxu0 0
      %2778 = vmatprep.subr.bf16.mxu0 0
      %2779 = vmatpush2.bf16.msra.mxu0 0
      %2780 = vmatprep.subr.bf16.mxu0 0
      %2781 = vmatpush2.bf16.msra.mxu0 0
      %2782 = vmatprep.subr.bf16.mxu0 0
      %2783 = vmatpush2.bf16.msra.mxu0 0
      %2784 = vmatprep.mubr.bf16.mxu0 0
      %2785 = vmatmul.mubr.bf16.gmra.mxu0 %v2750
      %v2786 = vpop.f32.mrf.mxu0
      %v2787 = vadd.f32 0.0, %v2786
      %v2788 = vpop.f32.mrf.mxu0
      %v2789 = vpop.f32.mrf.mxu0
      %v2790 = vpop.f32.mrf.mxu0
      %2791 = vdwg.mxu0
      %v2792 = vpack.c.bf16 %v2246, %v2246
      %v2793 = vpack.c.bf16 %v2298, %v2298
      %v2794 = vpack.c.bf16 %v2350, %v2350
      %v2795 = vpack.c.bf16 %v2402, %v2402
      %v2796 = vpack.c.bf16 %v2658, %v2658
      %v2797 = vpack.c.bf16 %v2701, %v2701
      %v2798 = vpack.c.bf16 %v2744, %v2744
      %v2799 = vpack.c.bf16 %v2787, %v2787
      %v2801 = vsel %vm1266, %v2792, 0
      %v2804 = vsel %vm1270, %v2796, 0
      %2806 = vmatprep.subr.bf16.mxu0 0
      %2807 = vmatpush1.bf16.msra.mxu0 0
      %2808 = vmatprep.subr.bf16.mxu0 0
      %2809 = vmatpush1.bf16.msra.mxu0 0
      %2810 = vmatprep.subr.bf16.mxu0 0
      %2811 = vmatpush1.bf16.msra.mxu0 0
      %2812 = vmatprep.subr.bf16.mxu0 0
      %2813 = vmatpush1.bf16.msra.mxu0 0
      %2814 = vmatprep.subr.bf16.mxu0 0
      %2815 = vmatpush1.bf16.msra.mxu0 0
      %2816 = vmatprep.subr.bf16.mxu0 0
      %2817 = vmatpush1.bf16.msra.mxu0 0
      %2818 = vmatprep.subr.bf16.mxu0 0
      %2819 = vmatpush1.bf16.msra.mxu0 0
      %2820 = vmatprep.subr.bf16.mxu0 0
      %2821 = vmatpush1.bf16.msra.mxu0 %v2804
      %2822 = vmatprep.subr.bf16.mxu0 0
      %2823 = vmatpush2.bf16.msra.mxu0 0
      %2824 = vmatprep.subr.bf16.mxu0 0
      %2825 = vmatpush2.bf16.msra.mxu0 0
      %2826 = vmatprep.subr.bf16.mxu0 0
      %2827 = vmatpush2.bf16.msra.mxu0 0
      %2828 = vmatprep.subr.bf16.mxu0 0
      %2829 = vmatpush2.bf16.msra.mxu0 0
      %2830 = vmatprep.subr.bf16.mxu0 0
      %2831 = vmatpush2.bf16.msra.mxu0 0
      %2832 = vmatprep.subr.bf16.mxu0 0
      %2833 = vmatpush2.bf16.msra.mxu0 0
      %2834 = vmatprep.subr.bf16.mxu0 0
      %2835 = vmatpush2.bf16.msra.mxu0 0
      %2836 = vmatprep.subr.bf16.mxu0 0
      %2837 = vmatpush2.bf16.msra.mxu0 0
      %2838 = vmatprep.mubr.bf16.mxu0 0
      %2839 = vmatmul.mubr.bf16.gmra.mxu0 %v2801
      %v2840 = vpop.f32.mrf.mxu0
      %v2841 = vadd.f32 %v569, %v2840
      %v2842 = vpop.f32.mrf.mxu0
      %v2843 = vpop.f32.mrf.mxu0
      %v2844 = vpop.f32.mrf.mxu0
      %2845 = vdwg.mxu0
      %v2847 = vsel %vm1266, %v2793, 0
      %v2850 = vsel %vm1270, %v2797, 0
      %2852 = vmatprep.subr.bf16.mxu0 0
      %2853 = vmatpush1.bf16.msra.mxu0 0
      %2854 = vmatprep.subr.bf16.mxu0 0
      %2855 = vmatpush1.bf16.msra.mxu0 0
      %2856 = vmatprep.subr.bf16.mxu0 0
      %2857 = vmatpush1.bf16.msra.mxu0 0
      %2858 = vmatprep.subr.bf16.mxu0 0
      %2859 = vmatpush1.bf16.msra.mxu0 0
      %2860 = vmatprep.subr.bf16.mxu0 0
      %2861 = vmatpush1.bf16.msra.mxu0 0
      %2862 = vmatprep.subr.bf16.mxu0 0
      %2863 = vmatpush1.bf16.msra.mxu0 0
      %2864 = vmatprep.subr.bf16.mxu0 0
      %2865 = vmatpush1.bf16.msra.mxu0 0
      %2866 = vmatprep.subr.bf16.mxu0 0
      %2867 = vmatpush1.bf16.msra.mxu0 %v2850
      %2868 = vmatprep.subr.bf16.mxu0 0
      %2869 = vmatpush2.bf16.msra.mxu0 0
      %2870 = vmatprep.subr.bf16.mxu0 0
      %2871 = vmatpush2.bf16.msra.mxu0 0
      %2872 = vmatprep.subr.bf16.mxu0 0
      %2873 = vmatpush2.bf16.msra.mxu0 0
      %2874 = vmatprep.subr.bf16.mxu0 0
      %2875 = vmatpush2.bf16.msra.mxu0 0
      %2876 = vmatprep.subr.bf16.mxu0 0
      %2877 = vmatpush2.bf16.msra.mxu0 0
      %2878 = vmatprep.subr.bf16.mxu0 0
      %2879 = vmatpush2.bf16.msra.mxu0 0
      %2880 = vmatprep.subr.bf16.mxu0 0
      %2881 = vmatpush2.bf16.msra.mxu0 0
      %2882 = vmatprep.subr.bf16.mxu0 0
      %2883 = vmatpush2.bf16.msra.mxu0 0
      %2884 = vmatprep.mubr.bf16.mxu0 0
      %2885 = vmatmul.mubr.bf16.gmra.mxu0 %v2847
      %v2886 = vpop.f32.mrf.mxu0
      %v2887 = vadd.f32 %v569, %v2886
      %v2888 = vpop.f32.mrf.mxu0
      %v2889 = vpop.f32.mrf.mxu0
      %v2890 = vpop.f32.mrf.mxu0
      %2891 = vdwg.mxu0
      %v2893 = vsel %vm1266, %v2794, 0
      %v2896 = vsel %vm1270, %v2798, 0
      %2898 = vmatprep.subr.bf16.mxu0 0
      %2899 = vmatpush1.bf16.msra.mxu0 0
      %2900 = vmatprep.subr.bf16.mxu0 0
      %2901 = vmatpush1.bf16.msra.mxu0 0
      %2902 = vmatprep.subr.bf16.mxu0 0
      %2903 = vmatpush1.bf16.msra.mxu0 0
      %2904 = vmatprep.subr.bf16.mxu0 0
      %2905 = vmatpush1.bf16.msra.mxu0 0
      %2906 = vmatprep.subr.bf16.mxu0 0
      %2907 = vmatpush1.bf16.msra.mxu0 0
      %2908 = vmatprep.subr.bf16.mxu0 0
      %2909 = vmatpush1.bf16.msra.mxu0 0
      %2910 = vmatprep.subr.bf16.mxu0 0
      %2911 = vmatpush1.bf16.msra.mxu0 0
      %2912 = vmatprep.subr.bf16.mxu0 0
      %2913 = vmatpush1.bf16.msra.mxu0 %v2896
      %2914 = vmatprep.subr.bf16.mxu0 0
      %2915 = vmatpush2.bf16.msra.mxu0 0
      %2916 = vmatprep.subr.bf16.mxu0 0
      %2917 = vmatpush2.bf16.msra.mxu0 0
      %2918 = vmatprep.subr.bf16.mxu0 0
      %2919 = vmatpush2.bf16.msra.mxu0 0
      %2920 = vmatprep.subr.bf16.mxu0 0
      %2921 = vmatpush2.bf16.msra.mxu0 0
      %2922 = vmatprep.subr.bf16.mxu0 0
      %2923 = vmatpush2.bf16.msra.mxu0 0
      %2924 = vmatprep.subr.bf16.mxu0 0
      %2925 = vmatpush2.bf16.msra.mxu0 0
      %2926 = vmatprep.subr.bf16.mxu0 0
      %2927 = vmatpush2.bf16.msra.mxu0 0
      %2928 = vmatprep.subr.bf16.mxu0 0
      %2929 = vmatpush2.bf16.msra.mxu0 0
      %2930 = vmatprep.mubr.bf16.mxu0 0
      %2931 = vmatmul.mubr.bf16.gmra.mxu0 %v2893
      %v2932 = vpop.f32.mrf.mxu0
      %v2933 = vadd.f32 %v569, %v2932
      %v2934 = vpop.f32.mrf.mxu0
      %v2935 = vpop.f32.mrf.mxu0
      %v2936 = vpop.f32.mrf.mxu0
      %2937 = vdwg.mxu0
      %v2939 = vsel %vm1266, %v2795, 0
      %v2942 = vsel %vm1270, %v2799, 0
      %2944 = vmatprep.subr.bf16.mxu0 0
      %2945 = vmatpush1.bf16.msra.mxu0 0
      %2946 = vmatprep.subr.bf16.mxu0 0
      %2947 = vmatpush1.bf16.msra.mxu0 0
      %2948 = vmatprep.subr.bf16.mxu0 0
      %2949 = vmatpush1.bf16.msra.mxu0 0
      %2950 = vmatprep.subr.bf16.mxu0 0
      %2951 = vmatpush1.bf16.msra.mxu0 0
      %2952 = vmatprep.subr.bf16.mxu0 0
      %2953 = vmatpush1.bf16.msra.mxu0 0
      %2954 = vmatprep.subr.bf16.mxu0 0
      %2955 = vmatpush1.bf16.msra.mxu0 0
      %2956 = vmatprep.subr.bf16.mxu0 0
      %2957 = vmatpush1.bf16.msra.mxu0 0
      %2958 = vmatprep.subr.bf16.mxu0 0
      %2959 = vmatpush1.bf16.msra.mxu0 %v2942
      %2960 = vmatprep.subr.bf16.mxu0 0
      %2961 = vmatpush2.bf16.msra.mxu0 0
      %2962 = vmatprep.subr.bf16.mxu0 0
      %2963 = vmatpush2.bf16.msra.mxu0 0
      %2964 = vmatprep.subr.bf16.mxu0 0
      %2965 = vmatpush2.bf16.msra.mxu0 0
      %2966 = vmatprep.subr.bf16.mxu0 0
      %2967 = vmatpush2.bf16.msra.mxu0 0
      %2968 = vmatprep.subr.bf16.mxu0 0
      %2969 = vmatpush2.bf16.msra.mxu0 0
      %2970 = vmatprep.subr.bf16.mxu0 0
      %2971 = vmatpush2.bf16.msra.mxu0 0
      %2972 = vmatprep.subr.bf16.mxu0 0
      %2973 = vmatpush2.bf16.msra.mxu0 0
      %2974 = vmatprep.subr.bf16.mxu0 0
      %2975 = vmatpush2.bf16.msra.mxu0 0
      %2976 = vmatprep.mubr.bf16.mxu0 0
      %2977 = vmatmul.mubr.bf16.gmra.mxu0 %v2939
      %v2978 = vpop.f32.mrf.mxu0
      %v2979 = vadd.f32 %v569, %v2978
      %v2980 = vpop.f32.mrf.mxu0
      %v2981 = vpop.f32.mrf.mxu0
      %v2982 = vpop.f32.mrf.mxu0
      %2983 = vdwg.mxu0
      %v2984 = vsel %vm1266, %v2841, -inf
      %2985 = vmax.xlane.f32.xlu0 %v2984
      %v2986 = vpop.xlane.xlu0 %2985
      %v2987 = vsel %vm1266, %v2887, -inf
      %2988 = vmax.xlane.f32.xlu0 %v2987
      %v2989 = vpop.xlane.xlu0 %2988
      %v2990 = vsel %vm1266, %v2933, -inf
      %2991 = vmax.xlane.f32.xlu0 %v2990
      %v2992 = vpop.xlane.xlu0 %2991
      %v2993 = vsel %vm1266, %v2979, -inf
      %2994 = vmax.xlane.f32.xlu0 %v2993
      %v2995 = vpop.xlane.xlu0 %2994
      %v2996 = vsub.f32 %v2841, %v2986
      %v2997 = vsub.f32 %v2887, %v2989
      %v2998 = vsub.f32 %v2933, %v2992
      %v2999 = vsub.f32 %v2979, %v2995
      %v3000 = vmul.f32 %v2996, 1.442695
      %v3001 = vpow.pop %v3000
      %v3002 = vmul.f32 %v2997, 1.442695
      %v3003 = vpow.pop %v3002
      %v3004 = vmul.f32 %v2998, 1.442695
      %v3005 = vpow.pop %v3004
      %v3006 = vmul.f32 %v2999, 1.442695
      %v3007 = vpow.pop %v3006
      %v3008 = vsel %vm1266, %v3001, 0.0
      %3009 = vadd.xlane.f32.xlu0 %v3008
      %v3010 = vpop.xlane.xlu0 %3009
      %v3011 = vsel %vm1266, %v3003, 0.0
      %3012 = vadd.xlane.f32.xlu0 %v3011
      %v3013 = vpop.xlane.xlu0 %3012
      %v3014 = vsel %vm1266, %v3005, 0.0
      %3015 = vadd.xlane.f32.xlu0 %v3014
      %v3016 = vpop.xlane.xlu0 %3015
      %v3017 = vsel %vm1266, %v3007, 0.0
      %3018 = vadd.xlane.f32.xlu0 %v3017
      %v3019 = vpop.xlane.xlu0 %3018
      %v3020 = vrcp.pop %v3010
      %v3021 = vrcp.pop %v3013
      %v3022 = vrcp.pop %v3016
      %v3023 = vrcp.pop %v3019
      %v3024 = vmul.f32 %v3001, %v3020
      %v3025 = vmul.f32 %v3003, %v3021
      %v3026 = vmul.f32 %v3005, %v3022
      %v3027 = vmul.f32 %v3007, %v3023
      %v3028 = vpack.c.bf16 %v3024, %v3024
      %v3029 = vpack.c.bf16 %v3025, %v3025
      %v3030 = vpack.c.bf16 %v3026, %v3026
      %v3031 = vpack.c.bf16 %v3027, %v3027
      %v3032 = vpack.c.bf16 %v2454, %v2454
      %v3033 = vpack.c.bf16 %v2506, %v2506
      %v3034 = vpack.c.bf16 %v2558, %v2558
      %v3035 = vpack.c.bf16 %v2610, %v2610
      %v3037 = vsel %vm1266, %v3028, 0
      %v3040 = vsel %vm1270, %v3032, 0
      %3042 = vmatprep.subr.bf16.mxu0 0
      %3043 = vmatpush1.bf16.msra.mxu0 0
      %3044 = vmatprep.subr.bf16.mxu0 0
      %3045 = vmatpush1.bf16.msra.mxu0 0
      %3046 = vmatprep.subr.bf16.mxu0 0
      %3047 = vmatpush1.bf16.msra.mxu0 0
      %3048 = vmatprep.subr.bf16.mxu0 0
      %3049 = vmatpush1.bf16.msra.mxu0 0
      %3050 = vmatprep.subr.bf16.mxu0 0
      %3051 = vmatpush1.bf16.msra.mxu0 0
      %3052 = vmatprep.subr.bf16.mxu0 0
      %3053 = vmatpush1.bf16.msra.mxu0 0
      %3054 = vmatprep.subr.bf16.mxu0 0
      %3055 = vmatpush1.bf16.msra.mxu0 0
      %3056 = vmatprep.subr.bf16.mxu0 0
      %3057 = vmatpush1.bf16.msra.mxu0 %v3040
      %3058 = vmatprep.subr.bf16.mxu0 0
      %3059 = vmatpush2.bf16.msra.mxu0 0
      %3060 = vmatprep.subr.bf16.mxu0 0
      %3061 = vmatpush2.bf16.msra.mxu0 0
      %3062 = vmatprep.subr.bf16.mxu0 0
      %3063 = vmatpush2.bf16.msra.mxu0 0
      %3064 = vmatprep.subr.bf16.mxu0 0
      %3065 = vmatpush2.bf16.msra.mxu0 0
      %3066 = vmatprep.subr.bf16.mxu0 0
      %3067 = vmatpush2.bf16.msra.mxu0 0
      %3068 = vmatprep.subr.bf16.mxu0 0
      %3069 = vmatpush2.bf16.msra.mxu0 0
      %3070 = vmatprep.subr.bf16.mxu0 0
      %3071 = vmatpush2.bf16.msra.mxu0 0
      %3072 = vmatprep.subr.bf16.mxu0 0
      %3073 = vmatpush2.bf16.msra.mxu0 0
      %3074 = vmatprep.mubr.bf16.mxu0 0
      %3075 = vmatmul.mubr.bf16.gmra.mxu0 %v3037
      %v3076 = vpop.f32.mrf.mxu0
      %v3077 = vadd.f32 0.0, %v3076
      %v3078 = vpop.f32.mrf.mxu0
      %v3079 = vpop.f32.mrf.mxu0
      %v3080 = vpop.f32.mrf.mxu0
      %3081 = vdwg.mxu0
      %v3083 = vsel %vm1266, %v3029, 0
      %v3086 = vsel %vm1270, %v3033, 0
      %3088 = vmatprep.subr.bf16.mxu0 0
      %3089 = vmatpush1.bf16.msra.mxu0 0
      %3090 = vmatprep.subr.bf16.mxu0 0
      %3091 = vmatpush1.bf16.msra.mxu0 0
      %3092 = vmatprep.subr.bf16.mxu0 0
      %3093 = vmatpush1.bf16.msra.mxu0 0
      %3094 = vmatprep.subr.bf16.mxu0 0
      %3095 = vmatpush1.bf16.msra.mxu0 0
      %3096 = vmatprep.subr.bf16.mxu0 0
      %3097 = vmatpush1.bf16.msra.mxu0 0
      %3098 = vmatprep.subr.bf16.mxu0 0
      %3099 = vmatpush1.bf16.msra.mxu0 0
      %3100 = vmatprep.subr.bf16.mxu0 0
      %3101 = vmatpush1.bf16.msra.mxu0 0
      %3102 = vmatprep.subr.bf16.mxu0 0
      %3103 = vmatpush1.bf16.msra.mxu0 %v3086
      %3104 = vmatprep.subr.bf16.mxu0 0
      %3105 = vmatpush2.bf16.msra.mxu0 0
      %3106 = vmatprep.subr.bf16.mxu0 0
      %3107 = vmatpush2.bf16.msra.mxu0 0
      %3108 = vmatprep.subr.bf16.mxu0 0
      %3109 = vmatpush2.bf16.msra.mxu0 0
      %3110 = vmatprep.subr.bf16.mxu0 0
      %3111 = vmatpush2.bf16.msra.mxu0 0
      %3112 = vmatprep.subr.bf16.mxu0 0
      %3113 = vmatpush2.bf16.msra.mxu0 0
      %3114 = vmatprep.subr.bf16.mxu0 0
      %3115 = vmatpush2.bf16.msra.mxu0 0
      %3116 = vmatprep.subr.bf16.mxu0 0
      %3117 = vmatpush2.bf16.msra.mxu0 0
      %3118 = vmatprep.subr.bf16.mxu0 0
      %3119 = vmatpush2.bf16.msra.mxu0 0
      %3120 = vmatprep.mubr.bf16.mxu0 0
      %3121 = vmatmul.mubr.bf16.gmra.mxu0 %v3083
      %v3122 = vpop.f32.mrf.mxu0
      %v3123 = vadd.f32 0.0, %v3122
      %v3124 = vpop.f32.mrf.mxu0
      %v3125 = vpop.f32.mrf.mxu0
      %v3126 = vpop.f32.mrf.mxu0
      %3127 = vdwg.mxu0
      %v3129 = vsel %vm1266, %v3030, 0
      %v3132 = vsel %vm1270, %v3034, 0
      %3134 = vmatprep.subr.bf16.mxu0 0
      %3135 = vmatpush1.bf16.msra.mxu0 0
      %3136 = vmatprep.subr.bf16.mxu0 0
      %3137 = vmatpush1.bf16.msra.mxu0 0
      %3138 = vmatprep.subr.bf16.mxu0 0
      %3139 = vmatpush1.bf16.msra.mxu0 0
      %3140 = vmatprep.subr.bf16.mxu0 0
      %3141 = vmatpush1.bf16.msra.mxu0 0
      %3142 = vmatprep.subr.bf16.mxu0 0
      %3143 = vmatpush1.bf16.msra.mxu0 0
      %3144 = vmatprep.subr.bf16.mxu0 0
      %3145 = vmatpush1.bf16.msra.mxu0 0
      %3146 = vmatprep.subr.bf16.mxu0 0
      %3147 = vmatpush1.bf16.msra.mxu0 0
      %3148 = vmatprep.subr.bf16.mxu0 0
      %3149 = vmatpush1.bf16.msra.mxu0 %v3132
      %3150 = vmatprep.subr.bf16.mxu0 0
      %3151 = vmatpush2.bf16.msra.mxu0 0
      %3152 = vmatprep.subr.bf16.mxu0 0
      %3153 = vmatpush2.bf16.msra.mxu0 0
      %3154 = vmatprep.subr.bf16.mxu0 0
      %3155 = vmatpush2.bf16.msra.mxu0 0
      %3156 = vmatprep.subr.bf16.mxu0 0
      %3157 = vmatpush2.bf16.msra.mxu0 0
      %3158 = vmatprep.subr.bf16.mxu0 0
      %3159 = vmatpush2.bf16.msra.mxu0 0
      %3160 = vmatprep.subr.bf16.mxu0 0
      %3161 = vmatpush2.bf16.msra.mxu0 0
      %3162 = vmatprep.subr.bf16.mxu0 0
      %3163 = vmatpush2.bf16.msra.mxu0 0
      %3164 = vmatprep.subr.bf16.mxu0 0
      %3165 = vmatpush2.bf16.msra.mxu0 0
      %3166 = vmatprep.mubr.bf16.mxu0 0
      %3167 = vmatmul.mubr.bf16.gmra.mxu0 %v3129
      %v3168 = vpop.f32.mrf.mxu0
      %v3169 = vadd.f32 0.0, %v3168
      %v3170 = vpop.f32.mrf.mxu0
      %v3171 = vpop.f32.mrf.mxu0
      %v3172 = vpop.f32.mrf.mxu0
      %3173 = vdwg.mxu0
      %v3175 = vsel %vm1266, %v3031, 0
      %v3178 = vsel %vm1270, %v3035, 0
      %3180 = vmatprep.subr.bf16.mxu0 0
      %3181 = vmatpush1.bf16.msra.mxu0 0
      %3182 = vmatprep.subr.bf16.mxu0 0
      %3183 = vmatpush1.bf16.msra.mxu0 0
      %3184 = vmatprep.subr.bf16.mxu0 0
      %3185 = vmatpush1.bf16.msra.mxu0 0
      %3186 = vmatprep.subr.bf16.mxu0 0
      %3187 = vmatpush1.bf16.msra.mxu0 0
      %3188 = vmatprep.subr.bf16.mxu0 0
      %3189 = vmatpush1.bf16.msra.mxu0 0
      %3190 = vmatprep.subr.bf16.mxu0 0
      %3191 = vmatpush1.bf16.msra.mxu0 0
      %3192 = vmatprep.subr.bf16.mxu0 0
      %3193 = vmatpush1.bf16.msra.mxu0 0
      %3194 = vmatprep.subr.bf16.mxu0 0
      %3195 = vmatpush1.bf16.msra.mxu0 %v3178
      %3196 = vmatprep.subr.bf16.mxu0 0
      %3197 = vmatpush2.bf16.msra.mxu0 0
      %3198 = vmatprep.subr.bf16.mxu0 0
      %3199 = vmatpush2.bf16.msra.mxu0 0
      %3200 = vmatprep.subr.bf16.mxu0 0
      %3201 = vmatpush2.bf16.msra.mxu0 0
      %3202 = vmatprep.subr.bf16.mxu0 0
      %3203 = vmatpush2.bf16.msra.mxu0 0
      %3204 = vmatprep.subr.bf16.mxu0 0
      %3205 = vmatpush2.bf16.msra.mxu0 0
      %3206 = vmatprep.subr.bf16.mxu0 0
      %3207 = vmatpush2.bf16.msra.mxu0 0
      %3208 = vmatprep.subr.bf16.mxu0 0
      %3209 = vmatpush2.bf16.msra.mxu0 0
      %3210 = vmatprep.subr.bf16.mxu0 0
      %3211 = vmatpush2.bf16.msra.mxu0 0
      %3212 = vmatprep.mubr.bf16.mxu0 0
      %3213 = vmatmul.mubr.bf16.gmra.mxu0 %v3175
      %v3214 = vpop.f32.mrf.mxu0
      %v3215 = vadd.f32 0.0, %v3214
      %v3216 = vpop.f32.mrf.mxu0
      %v3217 = vpop.f32.mrf.mxu0
      %v3218 = vpop.f32.mrf.mxu0
      %3219 = vdwg.mxu0
      %v3220 = vpack.c.bf16 %v3077, %v3077
      %v3221 = vpack.c.bf16 %v3123, %v3123
      %v3222 = vpack.c.bf16 %v3169, %v3169
      %v3223 = vpack.c.bf16 %v3215, %v3215
      %s3224 = scalar_lea.vmem %s5, 16
      %v3225 = vld [vmem:[%s3224] sm:$0xf]
      %v3226 = vld [vmem:[%s3224 + $0x4] sm:$0xf]
      %v3227 = vld [vmem:[%s3224 + $0x8] sm:$0xf]
      %v3228 = vld [vmem:[%s3224 + $0xc] sm:$0xf]
      %v3230 = vsel %vm1266, %v3220, 0
      %v3233 = vsel %vm1270, %v3225, 0
      %3235 = vmatprep.subr.bf16.mxu0 0
      %3236 = vmatpush1.bf16.msra.mxu0 0
      %3237 = vmatprep.subr.bf16.mxu0 0
      %3238 = vmatpush1.bf16.msra.mxu0 0
      %3239 = vmatprep.subr.bf16.mxu0 0
      %3240 = vmatpush1.bf16.msra.mxu0 0
      %3241 = vmatprep.subr.bf16.mxu0 0
      %3242 = vmatpush1.bf16.msra.mxu0 0
      %3243 = vmatprep.subr.bf16.mxu0 0
      %3244 = vmatpush1.bf16.msra.mxu0 0
      %3245 = vmatprep.subr.bf16.mxu0 0
      %3246 = vmatpush1.bf16.msra.mxu0 0
      %3247 = vmatprep.subr.bf16.mxu0 0
      %3248 = vmatpush1.bf16.msra.mxu0 0
      %3249 = vmatprep.subr.bf16.mxu0 0
      %3250 = vmatpush1.bf16.msra.mxu0 %v3233
      %3251 = vmatprep.subr.bf16.mxu0 0
      %3252 = vmatpush2.bf16.msra.mxu0 0
      %3253 = vmatprep.subr.bf16.mxu0 0
      %3254 = vmatpush2.bf16.msra.mxu0 0
      %3255 = vmatprep.subr.bf16.mxu0 0
      %3256 = vmatpush2.bf16.msra.mxu0 0
      %3257 = vmatprep.subr.bf16.mxu0 0
      %3258 = vmatpush2.bf16.msra.mxu0 0
      %3259 = vmatprep.subr.bf16.mxu0 0
      %3260 = vmatpush2.bf16.msra.mxu0 0
      %3261 = vmatprep.subr.bf16.mxu0 0
      %3262 = vmatpush2.bf16.msra.mxu0 0
      %3263 = vmatprep.subr.bf16.mxu0 0
      %3264 = vmatpush2.bf16.msra.mxu0 0
      %3265 = vmatprep.subr.bf16.mxu0 0
      %3266 = vmatpush2.bf16.msra.mxu0 0
      %3267 = vmatprep.mubr.bf16.mxu0 0
      %3268 = vmatmul.mubr.bf16.gmra.mxu0 %v3230
      %v3269 = vpop.f32.mrf.mxu0
      %v3270 = vadd.f32 0.0, %v3269
      %v3271 = vpop.f32.mrf.mxu0
      %v3272 = vpop.f32.mrf.mxu0
      %v3273 = vpop.f32.mrf.mxu0
      %3274 = vdwg.mxu0
      %v3276 = vsel %vm1266, %v3221, 0
      %v3279 = vsel %vm1270, %v3226, 0
      %3281 = vmatprep.subr.bf16.mxu0 0
      %3282 = vmatpush1.bf16.msra.mxu0 0
      %3283 = vmatprep.subr.bf16.mxu0 0
      %3284 = vmatpush1.bf16.msra.mxu0 0
      %3285 = vmatprep.subr.bf16.mxu0 0
      %3286 = vmatpush1.bf16.msra.mxu0 0
      %3287 = vmatprep.subr.bf16.mxu0 0
      %3288 = vmatpush1.bf16.msra.mxu0 0
      %3289 = vmatprep.subr.bf16.mxu0 0
      %3290 = vmatpush1.bf16.msra.mxu0 0
      %3291 = vmatprep.subr.bf16.mxu0 0
      %3292 = vmatpush1.bf16.msra.mxu0 0
      %3293 = vmatprep.subr.bf16.mxu0 0
      %3294 = vmatpush1.bf16.msra.mxu0 0
      %3295 = vmatprep.subr.bf16.mxu0 0
      %3296 = vmatpush1.bf16.msra.mxu0 %v3279
      %3297 = vmatprep.subr.bf16.mxu0 0
      %3298 = vmatpush2.bf16.msra.mxu0 0
      %3299 = vmatprep.subr.bf16.mxu0 0
      %3300 = vmatpush2.bf16.msra.mxu0 0
      %3301 = vmatprep.subr.bf16.mxu0 0
      %3302 = vmatpush2.bf16.msra.mxu0 0
      %3303 = vmatprep.subr.bf16.mxu0 0
      %3304 = vmatpush2.bf16.msra.mxu0 0
      %3305 = vmatprep.subr.bf16.mxu0 0
      %3306 = vmatpush2.bf16.msra.mxu0 0
      %3307 = vmatprep.subr.bf16.mxu0 0
      %3308 = vmatpush2.bf16.msra.mxu0 0
      %3309 = vmatprep.subr.bf16.mxu0 0
      %3310 = vmatpush2.bf16.msra.mxu0 0
      %3311 = vmatprep.subr.bf16.mxu0 0
      %3312 = vmatpush2.bf16.msra.mxu0 0
      %3313 = vmatprep.mubr.bf16.mxu0 0
      %3314 = vmatmul.mubr.bf16.gmra.mxu0 %v3276
      %v3315 = vpop.f32.mrf.mxu0
      %v3316 = vadd.f32 0.0, %v3315
      %v3317 = vpop.f32.mrf.mxu0
      %v3318 = vpop.f32.mrf.mxu0
      %v3319 = vpop.f32.mrf.mxu0
      %3320 = vdwg.mxu0
      %v3322 = vsel %vm1266, %v3222, 0
      %v3325 = vsel %vm1270, %v3227, 0
      %3327 = vmatprep.subr.bf16.mxu0 0
      %3328 = vmatpush1.bf16.msra.mxu0 0
      %3329 = vmatprep.subr.bf16.mxu0 0
      %3330 = vmatpush1.bf16.msra.mxu0 0
      %3331 = vmatprep.subr.bf16.mxu0 0
      %3332 = vmatpush1.bf16.msra.mxu0 0
      %3333 = vmatprep.subr.bf16.mxu0 0
      %3334 = vmatpush1.bf16.msra.mxu0 0
      %3335 = vmatprep.subr.bf16.mxu0 0
      %3336 = vmatpush1.bf16.msra.mxu0 0
      %3337 = vmatprep.subr.bf16.mxu0 0
      %3338 = vmatpush1.bf16.msra.mxu0 0
      %3339 = vmatprep.subr.bf16.mxu0 0
      %3340 = vmatpush1.bf16.msra.mxu0 0
      %3341 = vmatprep.subr.bf16.mxu0 0
      %3342 = vmatpush1.bf16.msra.mxu0 %v3325
      %3343 = vmatprep.subr.bf16.mxu0 0
      %3344 = vmatpush2.bf16.msra.mxu0 0
      %3345 = vmatprep.subr.bf16.mxu0 0
      %3346 = vmatpush2.bf16.msra.mxu0 0
      %3347 = vmatprep.subr.bf16.mxu0 0
      %3348 = vmatpush2.bf16.msra.mxu0 0
      %3349 = vmatprep.subr.bf16.mxu0 0
      %3350 = vmatpush2.bf16.msra.mxu0 0
      %3351 = vmatprep.subr.bf16.mxu0 0
      %3352 = vmatpush2.bf16.msra.mxu0 0
      %3353 = vmatprep.subr.bf16.mxu0 0
      %3354 = vmatpush2.bf16.msra.mxu0 0
      %3355 = vmatprep.subr.bf16.mxu0 0
      %3356 = vmatpush2.bf16.msra.mxu0 0
      %3357 = vmatprep.subr.bf16.mxu0 0
      %3358 = vmatpush2.bf16.msra.mxu0 0
      %3359 = vmatprep.mubr.bf16.mxu0 0
      %3360 = vmatmul.mubr.bf16.gmra.mxu0 %v3322
      %v3361 = vpop.f32.mrf.mxu0
      %v3362 = vadd.f32 0.0, %v3361
      %v3363 = vpop.f32.mrf.mxu0
      %v3364 = vpop.f32.mrf.mxu0
      %v3365 = vpop.f32.mrf.mxu0
      %3366 = vdwg.mxu0
      %v3368 = vsel %vm1266, %v3223, 0
      %v3371 = vsel %vm1270, %v3228, 0
      %3373 = vmatprep.subr.bf16.mxu0 0
      %3374 = vmatpush1.bf16.msra.mxu0 0
      %3375 = vmatprep.subr.bf16.mxu0 0
      %3376 = vmatpush1.bf16.msra.mxu0 0
      %3377 = vmatprep.subr.bf16.mxu0 0
      %3378 = vmatpush1.bf16.msra.mxu0 0
      %3379 = vmatprep.subr.bf16.mxu0 0
      %3380 = vmatpush1.bf16.msra.mxu0 0
      %3381 = vmatprep.subr.bf16.mxu0 0
      %3382 = vmatpush1.bf16.msra.mxu0 0
      %3383 = vmatprep.subr.bf16.mxu0 0
      %3384 = vmatpush1.bf16.msra.mxu0 0
      %3385 = vmatprep.subr.bf16.mxu0 0
      %3386 = vmatpush1.bf16.msra.mxu0 0
      %3387 = vmatprep.subr.bf16.mxu0 0
      %3388 = vmatpush1.bf16.msra.mxu0 %v3371
      %3389 = vmatprep.subr.bf16.mxu0 0
      %3390 = vmatpush2.bf16.msra.mxu0 0
      %3391 = vmatprep.subr.bf16.mxu0 0
      %3392 = vmatpush2.bf16.msra.mxu0 0
      %3393 = vmatprep.subr.bf16.mxu0 0
      %3394 = vmatpush2.bf16.msra.mxu0 0
      %3395 = vmatprep.subr.bf16.mxu0 0
      %3396 = vmatpush2.bf16.msra.mxu0 0
      %3397 = vmatprep.subr.bf16.mxu0 0
      %3398 = vmatpush2.bf16.msra.mxu0 0
      %3399 = vmatprep.subr.bf16.mxu0 0
      %3400 = vmatpush2.bf16.msra.mxu0 0
      %3401 = vmatprep.subr.bf16.mxu0 0
      %3402 = vmatpush2.bf16.msra.mxu0 0
      %3403 = vmatprep.subr.bf16.mxu0 0
      %3404 = vmatpush2.bf16.msra.mxu0 0
      %3405 = vmatprep.mubr.bf16.mxu0 0
      %3406 = vmatmul.mubr.bf16.gmra.mxu0 %v3368
      %v3407 = vpop.f32.mrf.mxu0
      %v3408 = vadd.f32 0.0, %v3407
      %v3409 = vpop.f32.mrf.mxu0
      %v3410 = vpop.f32.mrf.mxu0
      %v3411 = vpop.f32.mrf.mxu0
      %3412 = vdwg.mxu0
      %v3413 = vsel %vm571, %v3270, 0.0
      %v3414 = vsel %vm571, %v3316, 0.0
      %v3415 = vadd.f32 %v3413, %v3414
      %v3416 = vsel %vm571, %v3362, 0.0
      %v3417 = vadd.f32 %v3415, %v3416
      %v3418 = vsel %vm571, %v3408, 0.0
      %v3419 = vadd.f32 %v3417, %v3418
      %v3420 = vadd.f32 %v2102, %v3419
      %v3421 = vlaneseq
      %v3422 = vshrl.u32 %v3421, 7
      %v3423 = vsub.s32 4, %v3422
      %v3424 = vrot.slane %v2104, %v3423
      %v3425 = vadd.f32 %v3420, %v3424
      %v3426 = vsel %vm571, %v3425, 0.0
      %3427 = vadd.xlane.f32.xlu0 %v3426
      %v3428 = vpop.xlane.xlu0 %3427
      %v3429 = vmul.f32 %v3428, %v575
      %v3430 = vsub.f32 %v3425, %v3429
      %v3431 = vmul.f32 %v3430, %v3430
      %v3432 = vsel %vm571, %v3431, 0.0
      %3433 = vadd.xlane.f32.xlu0 %v3432
      %v3434 = vpop.xlane.xlu0 %3433
      %v3435 = vmul.f32 %v3434, %v575
      %v3436 = vadd.f32 %v3435, 1e-05
      %v3437 = vrsqrt.pop %v3436
      %v3438 = vmul.f32 %v3430, %v3437
      %v3439 = vlaneseq
      %v3440 = vshrl.u32 %v3439, 7
      %v3441 = vsub.s32 2, %v3440
      %v3442 = vrot.slane %v2104, %v3441
      %v3443 = vmul.f32 %v3438, %v3442
      %v3444 = vlaneseq
      %v3445 = vshrl.u32 %v3444, 7
      %v3446 = vsub.s32 3, %v3445
      %v3447 = vrot.slane %v2104, %v3446
      %v3448 = vadd.f32 %v3443, %v3447
      %v3449 = vpack.c.bf16 %v3448, %v3448
      %s3450 = scalar_lea.vmem %s6, 16
      %v3451 = vld [vmem:[%s3450] sm:$0xf]
      %v3452 = vld [vmem:[%s3450 + $0x4] sm:$0xf]
      %v3453 = vld [vmem:[%s3450 + $0x8] sm:$0xf]
      %v3454 = vld [vmem:[%s3450 + $0xc] sm:$0xf]
      %s3455 = scalar_lea.vmem %s9, 1
      %v3456 = vld [vmem:[%s3455] sm:$0x1]
      %v3458 = vlaneseq
      %v3459 = vshrl.u32 %v3458, 7
      %v3460 = vsub.s32 0, %v3459
      %v3461 = vrot.slane %v3456, %v3460
      %v3467 = vunpack.c.l.b16 %v3451
      %v3468 = vunpack.c.l.b16 %v3452
      %v3469 = vunpack.c.l.b16 %v3453
      %v3470 = vunpack.c.l.b16 %v3454
      %v3471 = vpack.c.b16 %v3468, %v3467
      %v3472 = vpack.c.b16 %v3470, %v3469
      %v3476 = vsel %vm571, %v3449, 0
      %3478 = vmatprep.subr.bf16.mxu0 0
      %3479 = vmatpush1.bf16.msra.mxu0 0
      %3480 = vmatprep.subr.bf16.mxu0 0
      %3481 = vmatpush1.bf16.msra.mxu0 0
      %3482 = vmatprep.subr.bf16.mxu0 0
      %3483 = vmatpush1.bf16.msra.mxu0 0
      %3484 = vmatprep.subr.bf16.mxu0 0
      %3485 = vmatpush1.bf16.msra.mxu0 0
      %3486 = vmatprep.subr.bf16.mxu0 0
      %3487 = vmatpush1.bf16.msra.mxu0 0
      %3488 = vmatprep.subr.bf16.mxu0 0
      %3489 = vmatpush1.bf16.msra.mxu0 0
      %3490 = vmatprep.subr.bf16.mxu0 0
      %3491 = vmatpush1.bf16.msra.mxu0 %v3472
      %3492 = vmatprep.subr.bf16.mxu0 0
      %3493 = vmatpush1.bf16.msra.mxu0 %v3471
      %3494 = vmatprep.subr.bf16.mxu0 0
      %3495 = vmatpush2.bf16.msra.mxu0 0
      %3496 = vmatprep.subr.bf16.mxu0 0
      %3497 = vmatpush2.bf16.msra.mxu0 0
      %3498 = vmatprep.subr.bf16.mxu0 0
      %3499 = vmatpush2.bf16.msra.mxu0 0
      %3500 = vmatprep.subr.bf16.mxu0 0
      %3501 = vmatpush2.bf16.msra.mxu0 0
      %3502 = vmatprep.subr.bf16.mxu0 0
      %3503 = vmatpush2.bf16.msra.mxu0 0
      %3504 = vmatprep.subr.bf16.mxu0 0
      %3505 = vmatpush2.bf16.msra.mxu0 0
      %3506 = vmatprep.subr.bf16.mxu0 0
      %3507 = vmatpush2.bf16.msra.mxu0 0
      %3508 = vmatprep.subr.bf16.mxu0 0
      %3509 = vmatpush2.bf16.msra.mxu0 0
      %3510 = vmatprep.mubr.bf16.mxu0 0
      %3511 = vmatmul.mubr.bf16.gmra.mxu0 %v3476
      %v3512 = vpop.f32.mrf.mxu0
      %v3513 = vadd.f32 %v3461, %v3512
      %v3514 = vpop.f32.mrf.mxu0
      %v3515 = vpop.f32.mrf.mxu0
      %v3516 = vpop.f32.mrf.mxu0
      %3517 = vdwg.mxu0
      %v3518 = vmul.f32 %v3513, 0.5
      %v3519 = vmul.f32 %v3513, 0.044715
      %v3520 = vmul.f32 %v3519, %v3513
      %v3521 = vmul.f32 %v3520, %v3513
      %v3522 = vadd.f32 %v3513, %v3521
      %v3523 = vmul.f32 %v3522, 0.7978846
      %v3524 = vtanh.pop %v3523
      %v3525 = vadd.f32 %v3524, 1.0
      %v3526 = vmul.f32 %v3518, %v3525
      %v3527 = vpack.c.bf16 %v3526, %v3526
      %s3528 = scalar_lea.vmem %s7, 64
      %v3529 = vld [vmem:[%s3528] sm:$0xf]
      %v3530 = vld [vmem:[%s3528 + $0x4] sm:$0xf]
      %v3531 = vld [vmem:[%s3528 + $0x8] sm:$0xf]
      %v3532 = vld [vmem:[%s3528 + $0xc] sm:$0xf]
      %v3533 = vld [vmem:[%s3528 + $0x10] sm:$0xf]
      %v3534 = vld [vmem:[%s3528 + $0x14] sm:$0xf]
      %v3535 = vld [vmem:[%s3528 + $0x18] sm:$0xf]
      %v3536 = vld [vmem:[%s3528 + $0x1c] sm:$0xf]
      %v3537 = vld [vmem:[%s3528 + $0x20] sm:$0xf]
      %v3538 = vld [vmem:[%s3528 + $0x24] sm:$0xf]
      %v3539 = vld [vmem:[%s3528 + $0x28] sm:$0xf]
      %v3540 = vld [vmem:[%s3528 + $0x2c] sm:$0xf]
      %v3541 = vld [vmem:[%s3528 + $0x30] sm:$0xf]
      %v3542 = vld [vmem:[%s3528 + $0x34] sm:$0xf]
      %v3543 = vld [vmem:[%s3528 + $0x38] sm:$0xf]
      %v3544 = vld [vmem:[%s3528 + $0x3c] sm:$0xf]
      %v3561 = vunpack.c.l.b16 %v3529
      %v3562 = vunpack.c.l.b16 %v3530
      %v3563 = vunpack.c.l.b16 %v3531
      %v3564 = vunpack.c.l.b16 %v3532
      %v3565 = vunpack.c.l.b16 %v3533
      %v3566 = vunpack.c.l.b16 %v3534
      %v3567 = vunpack.c.l.b16 %v3535
      %v3568 = vunpack.c.l.b16 %v3536
      %v3569 = vunpack.c.l.b16 %v3537
      %v3570 = vunpack.c.l.b16 %v3538
      %v3571 = vunpack.c.l.b16 %v3539
      %v3572 = vunpack.c.l.b16 %v3540
      %v3573 = vunpack.c.l.b16 %v3541
      %v3574 = vunpack.c.l.b16 %v3542
      %v3575 = vunpack.c.l.b16 %v3543
      %v3576 = vunpack.c.l.b16 %v3544
      %v3577 = vpack.c.b16 %v3562, %v3561
      %v3578 = vpack.c.b16 %v3564, %v3563
      %v3579 = vpack.c.b16 %v3566, %v3565
      %v3580 = vpack.c.b16 %v3568, %v3567
      %v3581 = vpack.c.b16 %v3570, %v3569
      %v3582 = vpack.c.b16 %v3572, %v3571
      %v3583 = vpack.c.b16 %v3574, %v3573
      %v3584 = vpack.c.b16 %v3576, %v3575
      %3593 = vmatprep.subr.bf16.mxu0 0
      %3594 = vmatpush1.bf16.msra.mxu0 %v3584
      %3595 = vmatprep.subr.bf16.mxu0 0
      %3596 = vmatpush1.bf16.msra.mxu0 %v3583
      %3597 = vmatprep.subr.bf16.mxu0 0
      %3598 = vmatpush1.bf16.msra.mxu0 %v3582
      %3599 = vmatprep.subr.bf16.mxu0 0
      %3600 = vmatpush1.bf16.msra.mxu0 %v3581
      %3601 = vmatprep.subr.bf16.mxu0 0
      %3602 = vmatpush1.bf16.msra.mxu0 %v3580
      %3603 = vmatprep.subr.bf16.mxu0 0
      %3604 = vmatpush1.bf16.msra.mxu0 %v3579
      %3605 = vmatprep.subr.bf16.mxu0 0
      %3606 = vmatpush1.bf16.msra.mxu0 %v3578
      %3607 = vmatprep.subr.bf16.mxu0 0
      %3608 = vmatpush1.bf16.msra.mxu0 %v3577
      %3609 = vmatprep.subr.bf16.mxu0 0
      %3610 = vmatpush2.bf16.msra.mxu0 0
      %3611 = vmatprep.subr.bf16.mxu0 0
      %3612 = vmatpush2.bf16.msra.mxu0 0
      %3613 = vmatprep.subr.bf16.mxu0 0
      %3614 = vmatpush2.bf16.msra.mxu0 0
      %3615 = vmatprep.subr.bf16.mxu0 0
      %3616 = vmatpush2.bf16.msra.mxu0 0
      %3617 = vmatprep.subr.bf16.mxu0 0
      %3618 = vmatpush2.bf16.msra.mxu0 0
      %3619 = vmatprep.subr.bf16.mxu0 0
      %3620 = vmatpush2.bf16.msra.mxu0 0
      %3621 = vmatprep.subr.bf16.mxu0 0
      %3622 = vmatpush2.bf16.msra.mxu0 0
      %3623 = vmatprep.subr.bf16.mxu0 0
      %3624 = vmatpush2.bf16.msra.mxu0 0
      %3625 = vmatprep.mubr.bf16.mxu0 0
      %3626 = vmatmul.mubr.bf16.gmra.mxu0 %v3527
      %v3627 = vpop.f32.mrf.mxu0
      %v3628 = vadd.f32 0.0, %v3627
      %v3629 = vpop.f32.mrf.mxu0
      %v3630 = vpop.f32.mrf.mxu0
      %v3631 = vpop.f32.mrf.mxu0
      %3632 = vdwg.mxu0
      %v3633 = vadd.f32 %v3425, %v3628
      %v3634 = vlaneseq
      %v3635 = vshrl.u32 %v3634, 7
      %v3636 = vsub.s32 5, %v3635
      %v3637 = vrot.slane %v2104, %v3636
      %v3638 = vadd.f32 %v3633, %v3637
      %v3639 = vld [vmem:[%s10] sm:$0x3]
      %v3640 = vsel %vm571, %v3638, 0.0
      %3641 = vadd.xlane.f32.xlu0 %v3640
      %v3642 = vpop.xlane.xlu0 %3641
      %v3643 = vmul.f32 %v3642, %v575
      %v3644 = vsub.f32 %v3638, %v3643
      %v3645 = vmul.f32 %v3644, %v3644
      %v3646 = vsel %vm571, %v3645, 0.0
      %3647 = vadd.xlane.f32.xlu0 %v3646
      %v3648 = vpop.xlane.xlu0 %3647
      %v3649 = vmul.f32 %v3648, %v575
      %v3650 = vadd.f32 %v3649, 1e-05
      %v3651 = vrsqrt.pop %v3650
      %v3652 = vmul.f32 %v3644, %v3651
      %v3653 = vlaneseq
      %v3654 = vshrl.u32 %v3653, 7
      %v3655 = vsub.s32 0, %v3654
      %v3656 = vrot.slane %v3639, %v3655
      %v3657 = vmul.f32 %v3652, %v3656
      %v3658 = vlaneseq
      %v3659 = vshrl.u32 %v3658, 7
      %v3660 = vsub.s32 1, %v3659
      %v3661 = vrot.slane %v3639, %v3660
      %v3662 = vadd.f32 %v3657, %v3661
      %v3663 = vpack.c.bf16 %v3662, %v3662
      %v3664 = vld [vmem:[%s1] sm:$0xf]
      %v3665 = vld [vmem:[%s1 + $0x4] sm:$0xf]
      %v3666 = vld [vmem:[%s1 + $0x8] sm:$0xf]
      %v3667 = vld [vmem:[%s1 + $0xc] sm:$0xf]
      %v3668 = vld [vmem:[%s1 + $0x10] sm:$0xf]
      %v3669 = vld [vmem:[%s1 + $0x14] sm:$0xf]
      %v3670 = vld [vmem:[%s1 + $0x18] sm:$0xf]
      %v3671 = vld [vmem:[%s1 + $0x1c] sm:$0xf]
      %v3672 = vld [vmem:[%s1 + $0x20] sm:$0xf]
      %v3673 = vld [vmem:[%s1 + $0x24] sm:$0xf]
      %v3674 = vld [vmem:[%s1 + $0x28] sm:$0xf]
      %v3675 = vld [vmem:[%s1 + $0x2c] sm:$0xf]
      %v3676 = vld [vmem:[%s1 + $0x30] sm:$0xf]
      %v3677 = vld [vmem:[%s1 + $0x34] sm:$0xf]
      %v3678 = vld [vmem:[%s1 + $0x38] sm:$0xf]
      %v3679 = vld [vmem:[%s1 + $0x3c] sm:$0xf]
      %v3680 = vld [vmem:[%s1 + $0x40] sm:$0xf]
      %v3681 = vld [vmem:[%s1 + $0x44] sm:$0xf]
      %v3682 = vld [vmem:[%s1 + $0x48] sm:$0xf]
      %v3683 = vld [vmem:[%s1 + $0x4c] sm:$0xf]
      %v3684 = vld [vmem:[%s1 + $0x50] sm:$0xf]
      %v3685 = vld [vmem:[%s1 + $0x54] sm:$0xf]
      %v3686 = vld [vmem:[%s1 + $0x58] sm:$0xf]
      %v3687 = vld [vmem:[%s1 + $0x5c] sm:$0xf]
      %v3688 = vld [vmem:[%s1 + $0x60] sm:$0xf]
      %v3689 = vld [vmem:[%s1 + $0x64] sm:$0xf]
      %v3690 = vld [vmem:[%s1 + $0x68] sm:$0xf]
      %v3691 = vld [vmem:[%s1 + $0x6c] sm:$0xf]
      %v3692 = vld [vmem:[%s1 + $0x70] sm:$0xf]
      %v3693 = vld [vmem:[%s1 + $0x74] sm:$0xf]
      %v3694 = vld [vmem:[%s1 + $0x78] sm:$0xf]
      %v3695 = vld [vmem:[%s1 + $0x7c] sm:$0xf]
      %v3728 = vunpack.c.l.b16 %v3664
      %v3729 = vunpack.c.l.b16 %v3665
      %v3730 = vunpack.c.l.b16 %v3666
      %v3731 = vunpack.c.l.b16 %v3667
      %v3732 = vunpack.c.l.b16 %v3668
      %v3733 = vunpack.c.l.b16 %v3669
      %v3734 = vunpack.c.l.b16 %v3670
      %v3735 = vunpack.c.l.b16 %v3671
      %v3736 = vunpack.c.l.b16 %v3672
      %v3737 = vunpack.c.l.b16 %v3673
      %v3738 = vunpack.c.l.b16 %v3674
      %v3739 = vunpack.c.l.b16 %v3675
      %v3740 = vunpack.c.l.b16 %v3676
      %v3741 = vunpack.c.l.b16 %v3677
      %v3742 = vunpack.c.l.b16 %v3678
      %v3743 = vunpack.c.l.b16 %v3679
      %v3744 = vunpack.c.l.b16 %v3680
      %v3745 = vunpack.c.l.b16 %v3681
      %v3746 = vunpack.c.l.b16 %v3682
      %v3747 = vunpack.c.l.b16 %v3683
      %v3748 = vunpack.c.l.b16 %v3684
      %v3749 = vunpack.c.l.b16 %v3685
      %v3750 = vunpack.c.l.b16 %v3686
      %v3751 = vunpack.c.l.b16 %v3687
      %v3752 = vunpack.c.l.b16 %v3688
      %v3753 = vunpack.c.l.b16 %v3689
      %v3754 = vunpack.c.l.b16 %v3690
      %v3755 = vunpack.c.l.b16 %v3691
      %v3756 = vunpack.c.l.b16 %v3692
      %v3757 = vunpack.c.l.b16 %v3693
      %v3758 = vunpack.c.l.b16 %v3694
      %v3759 = vunpack.c.l.b16 %v3695
      %v3760 = vpack.c.b16 %v3729, %v3728
      %v3761 = vpack.c.b16 %v3731, %v3730
      %v3762 = vpack.c.b16 %v3733, %v3732
      %v3763 = vpack.c.b16 %v3735, %v3734
      %v3764 = vpack.c.b16 %v3737, %v3736
      %v3765 = vpack.c.b16 %v3739, %v3738
      %v3766 = vpack.c.b16 %v3741, %v3740
      %v3767 = vpack.c.b16 %v3743, %v3742
      %v3768 = vpack.c.b16 %v3745, %v3744
      %v3769 = vpack.c.b16 %v3747, %v3746
      %v3770 = vpack.c.b16 %v3749, %v3748
      %v3771 = vpack.c.b16 %v3751, %v3750
      %v3772 = vpack.c.b16 %v3753, %v3752
      %v3773 = vpack.c.b16 %v3755, %v3754
      %v3774 = vpack.c.b16 %v3757, %v3756
      %v3775 = vpack.c.b16 %v3759, %v3758
      %v3777 = vsel %vm571, %v3663, 0
      %v3780 = vsel %vm571, %v3760, 0
      %v3783 = vsel %vm571, %v3761, 0
      %v3786 = vsel %vm571, %v3762, 0
      %v3789 = vsel %vm571, %v3763, 0
      %v3792 = vsel %vm571, %v3764, 0
      %v3795 = vsel %vm571, %v3765, 0
      %v3798 = vsel %vm571, %v3766, 0
      %v3801 = vsel %vm571, %v3767, 0
      %v3804 = vsel %vm571, %v3768, 0
      %v3807 = vsel %vm571, %v3769, 0
      %v3810 = vsel %vm571, %v3770, 0
      %v3813 = vsel %vm571, %v3771, 0
      %v3816 = vsel %vm571, %v3772, 0
      %v3819 = vsel %vm571, %v3773, 0
      %v3822 = vsel %vm571, %v3774, 0
      %v3825 = vsel %vm571, %v3775, 0
      %3827 = vmatprep.subr.bf16.mxu0 0
      %3828 = vmatpush1.bf16.xpose.msra.mxu0 %v3801
      %3829 = vmatprep.subr.bf16.mxu0 0
      %3830 = vmatpush1.bf16.xpose.msra.mxu0 %v3798
      %3831 = vmatprep.subr.bf16.mxu0 0
      %3832 = vmatpush1.bf16.xpose.msra.mxu0 %v3795
      %3833 = vmatprep.subr.bf16.mxu0 0
      %3834 = vmatpush1.bf16.xpose.msra.mxu0 %v3792
      %3835 = vmatprep.subr.bf16.mxu0 0
      %3836 = vmatpush1.bf16.xpose.msra.mxu0 %v3789
      %3837 = vmatprep.subr.bf16.mxu0 0
      %3838 = vmatpush1.bf16.xpose.msra.mxu0 %v3786
      %3839 = vmatprep.subr.bf16.mxu0 0
      %3840 = vmatpush1.bf16.xpose.msra.mxu0 %v3783
      %3841 = vmatprep.subr.bf16.mxu0 0
      %3842 = vmatpush1.bf16.xpose.msra.mxu0 %v3780
      %3843 = vmatprep.subr.bf16.mxu0 0
      %3844 = vmatpush2.bf16.xpose.msra.mxu0 %v3825
      %3845 = vmatprep.subr.bf16.mxu0 0
      %3846 = vmatpush2.bf16.xpose.msra.mxu0 %v3822
      %3847 = vmatprep.subr.bf16.mxu0 0
      %3848 = vmatpush2.bf16.xpose.msra.mxu0 %v3819
      %3849 = vmatprep.subr.bf16.mxu0 0
      %3850 = vmatpush2.bf16.xpose.msra.mxu0 %v3816
      %3851 = vmatprep.subr.bf16.mxu0 0
      %3852 = vmatpush2.bf16.xpose.msra.mxu0 %v3813
      %3853 = vmatprep.subr.bf16.mxu0 0
      %3854 = vmatpush2.bf16.xpose.msra.mxu0 %v3810
      %3855 = vmatprep.subr.bf16.mxu0 0
      %3856 = vmatpush2.bf16.xpose.msra.mxu0 %v3807
      %3857 = vmatprep.subr.bf16.mxu0 0
      %3858 = vmatpush2.bf16.xpose.msra.mxu0 %v3804
      %3859 = vmatprep.mubr.bf16.mxu0 0
      %3860 = vmatmul.mubr.bf16.gmra.mxu0 %v3777
      %v3861 = vpop.f32.mrf.mxu0
      %v3862 = vadd.f32 0.0, %v3861
      %v3863 = vpop.f32.mrf.mxu0
      %v3864 = vadd.f32 0.0, %v3863
      %v3865 = vpop.f32.mrf.mxu0
      %v3866 = vpop.f32.mrf.mxu0
      %3867 = vdwg.mxu0
      %v3868 = vmax.f32 %v3862, %v3864
      %3869 = vmax.xlane.f32.xlu0 %v3868
      %v3870 = vpop.xlane.xlu0 %3869
      %vm3871 = vcmp.eq.f32.partialorder %v3862, %v3870
      %vm3872 = vcmp.eq.f32.partialorder %v3864, %v3870
      %v3873 = vsel %vm3871, %v389, 256
      %v3874 = vsel %vm3872, %v390, 256
      %vm3875 = vcmp.lt.s32.totalorder %v3873, %v3874
      %v3876 = vsel %vm3875, %v3873, %v3874
      %v3877 = vand.u32 %v3876, 65535
      %v3878 = vshra.s32 %v3876, 16
      %v3879 = vcvt.s32.f32 %v3877
      %v3880 = vcvt.s32.f32 %v3878
      %3881 = vmin.xlane.f32.xlu0 %v3880
      %v3882 = vpop.xlane.xlu0 %3881
      %vm3883 = vcmp.eq.f32.partialorder %v3880, %v3882
      %v3884 = vsel %vm3883, %v3879, inf
      %3885 = vmin.xlane.f32.xlu0 %v3884
      %v3886 = vpop.xlane.xlu0 %3885
      %v3887 = vcvt.f32.s32 %v3886
      %v3888 = vcvt.f32.s32 %v3882
      %v3889 = vshll.u32 %v3888, 16
      %v3890 = vadd.s32 %v3889, %v3887
      %3891 = vst [vmem:[%s344] sm:$0xff] %v3890
      %p3892 = scmp.lt.s32.totalorder %s28, 1
      %s3893 = scalar_select %p3892, %s28, 1
      %s3894 = smul.addr %s3893, 8
      %s3895 = scalar_lea.vmem %s11, %s3894
      // Predicated region
      $region61: #{gpt_wrapper_forward.1} parent=59 // pred_check
        %p3896 = pneg %p256
      $region62: #{gpt_wrapper_forward.1} parent=59 // pred_check_branch
        %3898 = sbr.rel (%p3896) target = $region64
      $region63: #{gpt_wrapper_forward.1} parent=59 // pred_region
        _
      $region64: #{gpt_wrapper_forward.1} parent=59 // pred_fallthru
        _
    $region60: #{gpt_wrapper_forward.1} parent=5 // pred_fallthru
      _
    %p3899 = scmp.le.s32.totalorder 2, %s23
    // Predicated region
    $region65: #{gpt_wrapper_forward.1} parent=5 // pred_check
      %p3900 = pneg %p3899
    $region66: #{gpt_wrapper_forward.1} parent=5 // pred_check_branch
      %3902 = sbr.rel (%p3900) target = $region68
    $region67: #{gpt_wrapper_forward.1} parent=5 // pred_region
      %s3903 = ssub.s32 %s23, 2
      // Predicated region
      $region69: #{gpt_wrapper_forward.1} parent=67 // pred_check
        %p3904 = pneg %p262
      $region70: #{gpt_wrapper_forward.1} parent=67 // pred_check_branch
        %3906 = sbr.rel (%p3904) target = $region72
      $region71: #{gpt_wrapper_forward.1} parent=67 // pred_region
        %p3907 = scmp.lt.s32.totalorder %s29, 1
        %s3908 = scalar_select %p3907, %s29, 1
        %s3909 = smul.addr %s3908, 8
        %s3910 = scalar_lea.vmem %s11, %s3909
      $region72: #{gpt_wrapper_forward.1} parent=67 // pred_fallthru
        _
    $region68: #{gpt_wrapper_forward.1} parent=5 // pred_fallthru
      _
  $region6: #{gpt_wrapper_forward.1} parent=0 // loop_footer
    %s27 = sadd.s32 1, %s23
  $region7: #{gpt_wrapper_forward.1} parent=0 // loop_footer_branch
    %22 = sbr.rel target = $region3
  $region8: #{gpt_wrapper_forward.1} parent=0 // loop_exit
    _

</llo_original>
